<compile_context>
chip_gen: v7x
topology: tpu7x:2x2x1
jax: 0.10.0
libtpu: 0.0.40
codegen_flags: <defaults>
</compile_context>

<pallas_src>
import functools

import jax
import jax.numpy as jnp
import numpy as np
from jax.experimental import pallas as pl
from jax.experimental.pallas import tpu as pltpu

# MXU precision for the conv matmuls.  HIGHEST keeps the kernel faithful to the
# f32 reference (the 1e-3 check below needs it); at K = 9*Cin <= 72 the extra
# MXU passes are noise next to launch/DMA cost.  On v6e/v7x switch to
# jax.lax.Precision.DEFAULT (bf16 operands, f32 accumulate) if ~1e-2 output
# tolerance is acceptable.
MATMUL_PRECISION = jax.lax.Precision.HIGHEST


# ---------------------------------------------------------------------------
# Fused kernel: pool + (conv3x3 -> BN -> ReLU) x2, all resident in VMEM
# ---------------------------------------------------------------------------
def _down_kernel(x_ref, w1_ref, w2_ref, g1_ref, b1_ref, g2_ref, b2_ref, o_ref,
                 *, N, Ho, Wo, Cin, eps):
    P = N * Ho * Wo
    Hp, Wp = Ho + 2, Wo + 2

    # ---- fused 2x2 max-pool (input read exactly once) ---------------------
    # x_ref: (N, Hp, 2, Wp, 2*Cin) view of the spatially zero-padded NHWC input
    x = x_ref[...]
    xw = jnp.maximum(x[..., :Cin], x[..., Cin:])     # max over the W pair
    xp = jnp.max(xw, axis=2)                         # max over the H pair
    # xp: (N, Hp, Wp, Cin) -- pooled map incl. the 1-pixel zero ring conv1 needs
    # (input was pre-padded by 2 = one pool window, so the pooled border is 0).

    def im2col(xpad):
        # lane-concatenated 3x3 taps -> single (P, 9*C) patch matrix
        taps = [xpad[:, dy:dy + Ho, dx:dx + Wo, :]
                for dy in range(3) for dx in range(3)]
        patches = jnp.concatenate(taps, axis=-1)     # (N, Ho, Wo, 9*C)
        return patches.reshape(P, patches.shape[-1])

    # ---- DoubleConv block 1: conv -> BN -> ReLU, layout (P, Cmid) ----------
    y1 = jnp.dot(im2col(xp), w1_ref[...],
                 preferred_element_type=jnp.float32,
                 precision=MATMUL_PRECISION)         # (P, Cmid)
    m1 = jnp.mean(y1, axis=0, keepdims=True)         # (1, Cmid)
    v1 = jnp.mean((y1 - m1) ** 2, axis=0, keepdims=True)
    y1 = (y1 - m1) * jax.lax.rsqrt(v1 + eps) * g1_ref[...] + b1_ref[...]
    y1 = jnp.maximum(y1, 0.0)

    # zero-pad block-1 output for conv2 (pure value concats; stays in VMEM)
    Cmid = y1.shape[-1]
    y1 = y1.reshape(N, Ho, Wo, Cmid)
    zr = jnp.zeros((N, 1, Wo, Cmid), jnp.float32)
    y1 = jnp.concatenate([zr, y1, zr], axis=1)       # (N, Hp, Wo, Cmid)
    zc = jnp.zeros((N, Hp, 1, Cmid), jnp.float32)
    y1 = jnp.concatenate([zc, y1, zc], axis=2)       # (N, Hp, Wp, Cmid)

    # ---- DoubleConv block 2: conv -> BN -> ReLU, layout (Cout, P) ----------
    # dot_general contracts w2's K dim against the patches' K dim and emits the
    # result already transposed to (Cout, P): the output store is a full
    # lane-dense block (P = N*Ho*Wo lanes), no Cout-wide masked stores and no
    # separate transpose op.
    y2 = jax.lax.dot_general(
        w2_ref[...], im2col(y1),
        dimension_numbers=(((0,), (1,)), ((), ())),
        preferred_element_type=jnp.float32,
        precision=MATMUL_PRECISION)                  # (Cout, P)
    m2 = jnp.mean(y2, axis=1, keepdims=True)         # (Cout, 1)
    v2 = jnp.mean((y2 - m2) ** 2, axis=1, keepdims=True)
    y2 = (y2 - m2) * jax.lax.rsqrt(v2 + eps) * g2_ref[...] + b2_ref[...]
    o_ref[...] = jnp.maximum(y2, 0.0)


# ---------------------------------------------------------------------------
# Wrapper (boundary layout plumbing only)
# ---------------------------------------------------------------------------
def down_forward(x_nchw, params, eps=1e-5):
    """Pallas implementation of Down.forward. Input/output are NCHW."""
    N, Cin, H, W = x_nchw.shape
    assert H % 2 == 0 and W % 2 == 0
    Ho, Wo = H // 2, W // 2
    Hp, Wp = Ho + 2, Wo + 2
    Cmid = params["w1"].shape[-1]
    Cout = params["w2"].shape[-1]
    P = N * Ho * Wo

    # NCHW -> NHWC, zero-pad spatial by 2 (pad 2 == one pool window, so after
    # pooling it becomes exactly conv1's padding=1 zero ring), then expose as a
    # free row-major view so the kernel pools from a single block.
    x = jnp.transpose(x_nchw, (0, 2, 3, 1)).astype(jnp.float32)
    x = jnp.pad(x, ((0, 0), (2, 2), (2, 2), (0, 0)))
    x = x.reshape(N, Hp, 2, Wp, 2 * Cin)

    kern = functools.partial(_down_kernel, N=N, Ho=Ho, Wo=Wo, Cin=Cin, eps=eps)
    out = pl.pallas_call(
        kern,
        out_shape=jax.ShapeDtypeStruct((Cout, P), jnp.float32),
        grid=(1,),
        in_specs=[
            pl.BlockSpec((N, Hp, 2, Wp, 2 * Cin), lambda i: (0, 0, 0, 0, 0)),
            pl.BlockSpec((9 * Cin, Cmid), lambda i: (0, 0)),
            pl.BlockSpec((9 * Cmid, Cout), lambda i: (0, 0)),
            pl.BlockSpec((1, Cmid), lambda i: (0, 0)),
            pl.BlockSpec((1, Cmid), lambda i: (0, 0)),
            pl.BlockSpec((Cout, 1), lambda i: (0, 0)),
            pl.BlockSpec((Cout, 1), lambda i: (0, 0)),
        ],
        out_specs=pl.BlockSpec((Cout, P), lambda i: (0, 0)),
        compiler_params=pltpu.CompilerParams(
            dimension_semantics=("arbitrary",)),
    )(x,
      params["w1"], params["w2"],
      params["gamma1"].reshape(1, Cmid), params["beta1"].reshape(1, Cmid),
      params["gamma2"].reshape(Cout, 1), params["beta2"].reshape(Cout, 1))

    # (Cout, N*Ho*Wo) -> (N, Cout, Ho, Wo)
    return jnp.transpose(out.reshape(Cout, N, Ho, Wo), (1, 0, 2, 3))


# ---------------------------------------------------------------------------
# Pure-JAX reference (NCHW, matches PyTorch training-mode forward)
# ---------------------------------------------------------------------------
def ref_forward(x, w1, w2, g1, b1, g2, b2, eps=1e-5):
    N, C, H, W = x.shape
    x = x.reshape(N, C, H // 2, 2, W // 2, 2).max(axis=(3, 5))

    def conv(x, w):
        return jax.lax.conv_general_dilated(
            x, w, (1, 1), ((1, 1), (1, 1)),
            dimension_numbers=("NCHW", "OIHW", "NCHW"),
            precision=jax.lax.Precision.HIGHEST)

    def bnrelu(x, g, b):
        mean = x.mean(axis=(0, 2, 3), keepdims=True)
        var = ((x - mean) ** 2).mean(axis=(0, 2, 3), keepdims=True)
        y = (x - mean) / jnp.sqrt(var + eps)
        y = y * g.reshape(1, -1, 1, 1) + b.reshape(1, -1, 1, 1)
        return jnp.maximum(y, 0.0)

    x = bnrelu(conv(x, w1), g1, b1)
    return bnrelu(conv(x, w2), g2, b2)


# ---------------------------------------------------------------------------
if __name__ == "__main__":
    key = jax.random.PRNGKey(0)
    N, Cin, H, W = 2, 4, 16, 16
    Cout = 8                       # Down(in_channels=4, out_channels=8), mid == out
    k1, k2, k3, k4, k5 = jax.random.split(key, 5)

    x = jax.random.normal(k1, (N, Cin, H, W), jnp.float32)

    # Conv weights in PyTorch OIHW layout; BN affine params (block 1 non-trivial,
    # block 2 at PyTorch defaults gamma=1 / beta=0).
    w1_oihw = jax.random.normal(k2, (Cout, Cin, 3, 3), jnp.float32) * 0.1
    w2_oihw = jax.random.normal(k3, (Cout, Cout, 3, 3), jnp.float32) * 0.1
    gamma1 = 1.0 + 0.1 * jax.random.normal(k4, (Cout,), jnp.float32)
    beta1 = 0.1 * jax.random.normal(k5, (Cout,), jnp.float32)
    gamma2 = jnp.ones((Cout,), jnp.float32)
    beta2 = jnp.zeros((Cout,), jnp.float32)

    params = {
        # (O, I, 3, 3) -> (3, 3, I, O) -> (9*I, O): rows ordered (dy, dx, cin),
        # matching the kernel's lane-concatenated im2col patch columns.
        "w1": jnp.transpose(w1_oihw, (2, 3, 1, 0)).reshape(9 * Cin, Cout),
        "w2": jnp.transpose(w2_oihw, (2, 3, 1, 0)).reshape(9 * Cout, Cout),
        "gamma1": gamma1, "beta1": beta1,
        "gamma2": gamma2, "beta2": beta2,
    }

    out = jax.block_until_ready(jax.jit(down_forward)(x, params))
    assert out.shape == (N, Cout, H // 2, W // 2), out.shape

    ref = jax.block_until_ready(
        ref_forward(x, w1_oihw, w2_oihw, gamma1, beta1, gamma2, beta2))
    np.testing.assert_allclose(np.asarray(out), np.asarray(ref),
                               rtol=1e-3, atol=1e-3)

    print("KERNEL_OK")
</pallas_src>

<mosaic_0001>
module attributes {stable_mosaic.version = 11 : i64} {
  func.func @_down_kernel(%arg0: i32, %arg1: memref<2x10x2x10x8xf32, #tpu.memory_space<vmem>>, %arg2: memref<36x8xf32, #tpu.memory_space<vmem>>, %arg3: memref<72x8xf32, #tpu.memory_space<vmem>>, %arg4: memref<1x8xf32, #tpu.memory_space<vmem>>, %arg5: memref<1x8xf32, #tpu.memory_space<vmem>>, %arg6: memref<8x1xf32, #tpu.memory_space<vmem>>, %arg7: memref<8x1xf32, #tpu.memory_space<vmem>>, %arg8: memref<8x128xf32, #tpu.memory_space<vmem>>) attributes {dimension_semantics = [#tpu.dimension_semantics<arbitrary>], iteration_bounds = array<i64: 1>, scalar_prefetch = 0 : i64, scratch_operands = 0 : i64, tpu.core_type = #tpu.core_type<tc>, window_params = [{pipeline_mode = #tpu.pipeline_mode<synchronous>, transform_indices = @transform_0, window_bounds = array<i64: 2, 10, 2, 10, 8>}, {pipeline_mode = #tpu.pipeline_mode<synchronous>, transform_indices = @transform_1, window_bounds = array<i64: 36, 8>}, {pipeline_mode = #tpu.pipeline_mode<synchronous>, transform_indices = @transform_2, window_bounds = array<i64: 72, 8>}, {pipeline_mode = #tpu.pipeline_mode<synchronous>, transform_indices = @transform_3, window_bounds = array<i64: 1, 8>}, {pipeline_mode = #tpu.pipeline_mode<synchronous>, transform_indices = @transform_4, window_bounds = array<i64: 1, 8>}, {pipeline_mode = #tpu.pipeline_mode<synchronous>, transform_indices = @transform_5, window_bounds = array<i64: 8, 1>}, {pipeline_mode = #tpu.pipeline_mode<synchronous>, transform_indices = @transform_6, window_bounds = array<i64: 8, 1>}, {pipeline_mode = #tpu.pipeline_mode<synchronous>, transform_indices = @transform_7, window_bounds = array<i64: 8, 128>}]} {
    %c0 = arith.constant 0 : index
    %c0_0 = arith.constant 0 : index
    %c0_1 = arith.constant 0 : index
    %c0_2 = arith.constant 0 : index
    %c0_3 = arith.constant 0 : index
    %0 = vector.load %arg1[%c0, %c0_0, %c0_1, %c0_2, %c0_3] : memref<2x10x2x10x8xf32, #tpu.memory_space<vmem>>, vector<2x10x2x10x8xf32>
    %1 = vector.extract_strided_slice %0 {offsets = [0, 0, 0, 0, 0], sizes = [2, 10, 2, 10, 4], strides = [1, 1, 1, 1, 1]} : vector<2x10x2x10x8xf32> to vector<2x10x2x10x4xf32>
    %2 = vector.extract_strided_slice %0 {offsets = [0, 0, 0, 0, 4], sizes = [2, 10, 2, 10, 4], strides = [1, 1, 1, 1, 1]} : vector<2x10x2x10x8xf32> to vector<2x10x2x10x4xf32>
    %3 = arith.maximumf %1, %2 : vector<2x10x2x10x4xf32>
    %cst = arith.constant dense<0xFF800000> : vector<2x10x10x4xf32>
    %4 = vector.multi_reduction <maximumf>, %3, %cst [2] : vector<2x10x2x10x4xf32> to vector<2x10x10x4xf32>
    %5 = vector.extract_strided_slice %4 {offsets = [0, 0, 0, 0], sizes = [2, 8, 8, 4], strides = [1, 1, 1, 1]} : vector<2x10x10x4xf32> to vector<2x8x8x4xf32>
    %6 = vector.extract_strided_slice %4 {offsets = [0, 0, 1, 0], sizes = [2, 8, 8, 4], strides = [1, 1, 1, 1]} : vector<2x10x10x4xf32> to vector<2x8x8x4xf32>
    %7 = vector.extract_strided_slice %4 {offsets = [0, 0, 2, 0], sizes = [2, 8, 8, 4], strides = [1, 1, 1, 1]} : vector<2x10x10x4xf32> to vector<2x8x8x4xf32>
    %8 = vector.extract_strided_slice %4 {offsets = [0, 1, 0, 0], sizes = [2, 8, 8, 4], strides = [1, 1, 1, 1]} : vector<2x10x10x4xf32> to vector<2x8x8x4xf32>
    %9 = vector.extract_strided_slice %4 {offsets = [0, 1, 1, 0], sizes = [2, 8, 8, 4], strides = [1, 1, 1, 1]} : vector<2x10x10x4xf32> to vector<2x8x8x4xf32>
    %10 = vector.extract_strided_slice %4 {offsets = [0, 1, 2, 0], sizes = [2, 8, 8, 4], strides = [1, 1, 1, 1]} : vector<2x10x10x4xf32> to vector<2x8x8x4xf32>
    %11 = vector.extract_strided_slice %4 {offsets = [0, 2, 0, 0], sizes = [2, 8, 8, 4], strides = [1, 1, 1, 1]} : vector<2x10x10x4xf32> to vector<2x8x8x4xf32>
    %12 = vector.extract_strided_slice %4 {offsets = [0, 2, 1, 0], sizes = [2, 8, 8, 4], strides = [1, 1, 1, 1]} : vector<2x10x10x4xf32> to vector<2x8x8x4xf32>
    %13 = vector.extract_strided_slice %4 {offsets = [0, 2, 2, 0], sizes = [2, 8, 8, 4], strides = [1, 1, 1, 1]} : vector<2x10x10x4xf32> to vector<2x8x8x4xf32>
    %14 = tpu.concatenate %5, %6, %7, %8, %9, %10, %11, %12, %13 in 3 : vector<2x8x8x4xf32>, vector<2x8x8x4xf32>, vector<2x8x8x4xf32>, vector<2x8x8x4xf32>, vector<2x8x8x4xf32>, vector<2x8x8x4xf32>, vector<2x8x8x4xf32>, vector<2x8x8x4xf32>, vector<2x8x8x4xf32> -> vector<2x8x8x36xf32>
    %15 = vector.shape_cast %14 : vector<2x8x8x36xf32> to vector<128x36xf32>
    %c0_4 = arith.constant 0 : index
    %c0_5 = arith.constant 0 : index
    %16 = vector.load %arg2[%c0_4, %c0_5] : memref<36x8xf32, #tpu.memory_space<vmem>>, vector<36x8xf32>
    %cst_6 = arith.constant dense<0.000000e+00> : vector<128x8xf32>
    %17 = tpu.matmul %15, %16, %cst_6 {dimension_numbers = #tpu.dot_dimension_numbers<[1], [0], [0], [1], [0, 0, 1, 1], [], []>, precision = #tpu.contract_precision<fp32>} : vector<128x36xf32>, vector<36x8xf32>, vector<128x8xf32> -> vector<128x8xf32>
    %cst_7 = arith.constant dense<0.000000e+00> : vector<8xf32>
    %18 = vector.multi_reduction <add>, %17, %cst_7 [0] : vector<128x8xf32> to vector<8xf32>
    %19 = vector.shape_cast %18 : vector<8xf32> to vector<1x8xf32>
    %cst_8 = arith.constant 1.280000e+02 : f32
    %20 = vector.broadcast %cst_8 : f32 to vector<1x8xf32>
    %21 = arith.divf %19, %20 : vector<1x8xf32>
    %22 = vector.broadcast %21 : vector<1x8xf32> to vector<128x8xf32>
    %23 = arith.subf %17, %22 : vector<128x8xf32>
    %24 = arith.mulf %23, %23 : vector<128x8xf32>
    %cst_9 = arith.constant dense<0.000000e+00> : vector<8xf32>
    %25 = vector.multi_reduction <add>, %24, %cst_9 [0] : vector<128x8xf32> to vector<8xf32>
    %26 = vector.shape_cast %25 : vector<8xf32> to vector<1x8xf32>
    %cst_10 = arith.constant 1.280000e+02 : f32
    %27 = vector.broadcast %cst_10 : f32 to vector<1x8xf32>
    %28 = arith.divf %26, %27 : vector<1x8xf32>
    %29 = vector.broadcast %21 : vector<1x8xf32> to vector<128x8xf32>
    %30 = arith.subf %17, %29 : vector<128x8xf32>
    %cst_11 = arith.constant 9.99999974E-6 : f32
    %31 = vector.broadcast %cst_11 : f32 to vector<1x8xf32>
    %32 = arith.addf %28, %31 : vector<1x8xf32>
    %33 = math.rsqrt %32 : vector<1x8xf32>
    %34 = vector.broadcast %33 : vector<1x8xf32> to vector<128x8xf32>
    %35 = arith.mulf %30, %34 : vector<128x8xf32>
    %c0_12 = arith.constant 0 : index
    %c0_13 = arith.constant 0 : index
    %36 = vector.load %arg4[%c0_12, %c0_13] : memref<1x8xf32, #tpu.memory_space<vmem>>, vector<1x8xf32>
    %37 = vector.broadcast %36 : vector<1x8xf32> to vector<128x8xf32>
    %38 = arith.mulf %35, %37 : vector<128x8xf32>
    %c0_14 = arith.constant 0 : index
    %c0_15 = arith.constant 0 : index
    %39 = vector.load %arg5[%c0_14, %c0_15] : memref<1x8xf32, #tpu.memory_space<vmem>>, vector<1x8xf32>
    %40 = vector.broadcast %39 : vector<1x8xf32> to vector<128x8xf32>
    %41 = arith.addf %38, %40 : vector<128x8xf32>
    %cst_16 = arith.constant 0.000000e+00 : f32
    %42 = vector.broadcast %cst_16 : f32 to vector<128x8xf32>
    %43 = arith.maximumf %41, %42 : vector<128x8xf32>
    %44 = vector.shape_cast %43 : vector<128x8xf32> to vector<2x8x8x8xf32>
    %cst_17 = arith.constant 0.000000e+00 : f32
    %45 = vector.broadcast %cst_17 : f32 to vector<2x1x8x8xf32>
    %46 = tpu.concatenate %45, %44, %45 in 1 : vector<2x1x8x8xf32>, vector<2x8x8x8xf32>, vector<2x1x8x8xf32> -> vector<2x10x8x8xf32>
    %cst_18 = arith.constant 0.000000e+00 : f32
    %47 = vector.broadcast %cst_18 : f32 to vector<2x10x1x8xf32>
    %48 = tpu.concatenate %47, %46, %47 in 2 : vector<2x10x1x8xf32>, vector<2x10x8x8xf32>, vector<2x10x1x8xf32> -> vector<2x10x10x8xf32>
    %c0_19 = arith.constant 0 : index
    %c0_20 = arith.constant 0 : index
    %49 = vector.load %arg3[%c0_19, %c0_20] : memref<72x8xf32, #tpu.memory_space<vmem>>, vector<72x8xf32>
    %50 = vector.extract_strided_slice %48 {offsets = [0, 0, 0, 0], sizes = [2, 8, 8, 8], strides = [1, 1, 1, 1]} : vector<2x10x10x8xf32> to vector<2x8x8x8xf32>
    %51 = vector.extract_strided_slice %48 {offsets = [0, 0, 1, 0], sizes = [2, 8, 8, 8], strides = [1, 1, 1, 1]} : vector<2x10x10x8xf32> to vector<2x8x8x8xf32>
    %52 = vector.extract_strided_slice %48 {offsets = [0, 0, 2, 0], sizes = [2, 8, 8, 8], strides = [1, 1, 1, 1]} : vector<2x10x10x8xf32> to vector<2x8x8x8xf32>
    %53 = vector.extract_strided_slice %48 {offsets = [0, 1, 0, 0], sizes = [2, 8, 8, 8], strides = [1, 1, 1, 1]} : vector<2x10x10x8xf32> to vector<2x8x8x8xf32>
    %54 = vector.extract_strided_slice %48 {offsets = [0, 1, 1, 0], sizes = [2, 8, 8, 8], strides = [1, 1, 1, 1]} : vector<2x10x10x8xf32> to vector<2x8x8x8xf32>
    %55 = vector.extract_strided_slice %48 {offsets = [0, 1, 2, 0], sizes = [2, 8, 8, 8], strides = [1, 1, 1, 1]} : vector<2x10x10x8xf32> to vector<2x8x8x8xf32>
    %56 = vector.extract_strided_slice %48 {offsets = [0, 2, 0, 0], sizes = [2, 8, 8, 8], strides = [1, 1, 1, 1]} : vector<2x10x10x8xf32> to vector<2x8x8x8xf32>
    %57 = vector.extract_strided_slice %48 {offsets = [0, 2, 1, 0], sizes = [2, 8, 8, 8], strides = [1, 1, 1, 1]} : vector<2x10x10x8xf32> to vector<2x8x8x8xf32>
    %58 = vector.extract_strided_slice %48 {offsets = [0, 2, 2, 0], sizes = [2, 8, 8, 8], strides = [1, 1, 1, 1]} : vector<2x10x10x8xf32> to vector<2x8x8x8xf32>
    %59 = tpu.concatenate %50, %51, %52, %53, %54, %55, %56, %57, %58 in 3 : vector<2x8x8x8xf32>, vector<2x8x8x8xf32>, vector<2x8x8x8xf32>, vector<2x8x8x8xf32>, vector<2x8x8x8xf32>, vector<2x8x8x8xf32>, vector<2x8x8x8xf32>, vector<2x8x8x8xf32>, vector<2x8x8x8xf32> -> vector<2x8x8x72xf32>
    %60 = vector.shape_cast %59 : vector<2x8x8x72xf32> to vector<128x72xf32>
    %cst_21 = arith.constant dense<0.000000e+00> : vector<8x128xf32>
    %61 = tpu.matmul %49, %60, %cst_21 {dimension_numbers = #tpu.dot_dimension_numbers<[0], [1], [1], [0], [0, 1, 1, 0], [], []>, precision = #tpu.contract_precision<fp32>} : vector<72x8xf32>, vector<128x72xf32>, vector<8x128xf32> -> vector<8x128xf32>
    %cst_22 = arith.constant dense<0.000000e+00> : vector<8xf32>
    %62 = vector.multi_reduction <add>, %61, %cst_22 [1] : vector<8x128xf32> to vector<8xf32>
    %63 = vector.shape_cast %62 : vector<8xf32> to vector<8x1xf32>
    %cst_23 = arith.constant 1.280000e+02 : f32
    %64 = vector.broadcast %cst_23 : f32 to vector<8x1xf32>
    %65 = arith.divf %63, %64 : vector<8x1xf32>
    %66 = vector.broadcast %65 : vector<8x1xf32> to vector<8x128xf32>
    %67 = arith.subf %61, %66 : vector<8x128xf32>
    %68 = arith.mulf %67, %67 : vector<8x128xf32>
    %cst_24 = arith.constant dense<0.000000e+00> : vector<8xf32>
    %69 = vector.multi_reduction <add>, %68, %cst_24 [1] : vector<8x128xf32> to vector<8xf32>
    %70 = vector.shape_cast %69 : vector<8xf32> to vector<8x1xf32>
    %cst_25 = arith.constant 1.280000e+02 : f32
    %71 = vector.broadcast %cst_25 : f32 to vector<8x1xf32>
    %72 = arith.divf %70, %71 : vector<8x1xf32>
    %73 = vector.broadcast %65 : vector<8x1xf32> to vector<8x128xf32>
    %74 = arith.subf %61, %73 : vector<8x128xf32>
    %cst_26 = arith.constant 9.99999974E-6 : f32
    %75 = vector.broadcast %cst_26 : f32 to vector<8x1xf32>
    %76 = arith.addf %72, %75 : vector<8x1xf32>
    %77 = math.rsqrt %76 : vector<8x1xf32>
    %78 = vector.broadcast %77 : vector<8x1xf32> to vector<8x128xf32>
    %79 = arith.mulf %74, %78 : vector<8x128xf32>
    %c0_27 = arith.constant 0 : index
    %c0_28 = arith.constant 0 : index
    %80 = vector.load %arg6[%c0_27, %c0_28] : memref<8x1xf32, #tpu.memory_space<vmem>>, vector<8x1xf32>
    %81 = vector.broadcast %80 : vector<8x1xf32> to vector<8x128xf32>
    %82 = arith.mulf %79, %81 : vector<8x128xf32>
    %c0_29 = arith.constant 0 : index
    %c0_30 = arith.constant 0 : index
    %83 = vector.load %arg7[%c0_29, %c0_30] : memref<8x1xf32, #tpu.memory_space<vmem>>, vector<8x1xf32>
    %84 = vector.broadcast %83 : vector<8x1xf32> to vector<8x128xf32>
    %85 = arith.addf %82, %84 : vector<8x128xf32>
    %cst_31 = arith.constant 0.000000e+00 : f32
    %86 = vector.broadcast %cst_31 : f32 to vector<8x128xf32>
    %87 = arith.maximumf %85, %86 : vector<8x128xf32>
    %c0_32 = arith.constant 0 : index
    %c0_33 = arith.constant 0 : index
    %88 = vector.load %arg8[%c0_32, %c0_33] : memref<8x128xf32, #tpu.memory_space<vmem>>, vector<8x128xf32>
    tpu.vector_store %arg8[%c0_32, %c0_33], %87 {strides = array<i32>} : memref<8x128xf32, #tpu.memory_space<vmem>>, vector<8x128xf32>,
    return
  }
  func.func @transform_0(%arg0: i32) -> (i32, i32, i32, i32, i32) {
    %c0_i32 = arith.constant 0 : i32
    %c0_i32_0 = arith.constant 0 : i32
    %c0_i32_1 = arith.constant 0 : i32
    %c0_i32_2 = arith.constant 0 : i32
    %c0_i32_3 = arith.constant 0 : i32
    %c0_i32_4 = arith.constant 0 : i32
    return %c0_i32, %c0_i32_0, %c0_i32_1, %c0_i32_2, %c0_i32_3 : i32, i32, i32, i32, i32
  }
  func.func @transform_1(%arg0: i32) -> (i32, i32) {
    %c0_i32 = arith.constant 0 : i32
    %c0_i32_0 = arith.constant 0 : i32
    %c0_i32_1 = arith.constant 0 : i32
    return %c0_i32, %c0_i32_0 : i32, i32
  }
  func.func @transform_2(%arg0: i32) -> (i32, i32) {
    %c0_i32 = arith.constant 0 : i32
    %c0_i32_0 = arith.constant 0 : i32
    %c0_i32_1 = arith.constant 0 : i32
    return %c0_i32, %c0_i32_0 : i32, i32
  }
  func.func @transform_3(%arg0: i32) -> (i32, i32) {
    %c0_i32 = arith.constant 0 : i32
    %c0_i32_0 = arith.constant 0 : i32
    %c0_i32_1 = arith.constant 0 : i32
    return %c0_i32, %c0_i32_0 : i32, i32
  }
  func.func @transform_4(%arg0: i32) -> (i32, i32) {
    %c0_i32 = arith.constant 0 : i32
    %c0_i32_0 = arith.constant 0 : i32
    %c0_i32_1 = arith.constant 0 : i32
    return %c0_i32, %c0_i32_0 : i32, i32
  }
  func.func @transform_5(%arg0: i32) -> (i32, i32) {
    %c0_i32 = arith.constant 0 : i32
    %c0_i32_0 = arith.constant 0 : i32
    %c0_i32_1 = arith.constant 0 : i32
    return %c0_i32, %c0_i32_0 : i32, i32
  }
  func.func @transform_6(%arg0: i32) -> (i32, i32) {
    %c0_i32 = arith.constant 0 : i32
    %c0_i32_0 = arith.constant 0 : i32
    %c0_i32_1 = arith.constant 0 : i32
    return %c0_i32, %c0_i32_0 : i32, i32
  }
  func.func @transform_7(%arg0: i32) -> (i32, i32) {
    %c0_i32 = arith.constant 0 : i32
    %c0_i32_0 = arith.constant 0 : i32
    %c0_i32_1 = arith.constant 0 : i32
    return %c0_i32, %c0_i32_0 : i32, i32
  }
}

</mosaic_0001>

<llo_original>
// kernel: down_forward.1
$region0: #{down_forward.1}
  #allocation0 [shape = 'u32[]', space=smem, size = 0x4, offset = 0x4, fixed_abs, tag = 'smem constant byte address 0x4 - core index']
  #allocation1 [shape = 'u32[144,128]{1,0:T(1,128)}', space=vmem, size = 0x12000, scoped, tag = 'internal scratch']
  %s0 = inlined_call_operand.vmem [shape: f32[2,10,2,10,8], index: 0, kind: input, shape index: {}]
  %s1 = inlined_call_operand.vmem [shape: f32[36,8], index: 1, kind: input, shape index: {}]
  %s2 = inlined_call_operand.vmem [shape: f32[72,8], index: 2, kind: input, shape index: {}]
  %s3 = inlined_call_operand.vmem [shape: f32[1,8], index: 3, kind: input, shape index: {}]
  %s4 = inlined_call_operand.vmem [shape: f32[1,8], index: 4, kind: input, shape index: {}]
  %s5 = inlined_call_operand.vmem [shape: f32[8,1], index: 5, kind: input, shape index: {}]
  %s6 = inlined_call_operand.vmem [shape: f32[8,1], index: 6, kind: input, shape index: {}]
  %s7 = inlined_call_operand.vmem [shape: f32[8,128], index: 7, kind: output, shape index: {}]
  %s8 = sld [smem:[#allocation0]]
  $region38: #{down_forward.1} parent=0
    _
  %s10 = ssub.s32 1, %s8
  %s11 = scalar_select 0, %s10, %s8
  // Predicated region
  $region2: #{down_forward.1} parent=0 // pred_check
    _
  $region3: #{down_forward.1} parent=0 // pred_check_branch
    %13 = sbr.rel (0) target = $region5
  $region4: #{down_forward.1} parent=0 // pred_region
    _
  $region5: #{down_forward.1} parent=0 // pred_fallthru
    _
  // Predicated region
  $region6: #{down_forward.1} parent=0 // pred_check
    _
  $region7: #{down_forward.1} parent=0 // pred_check_branch
    %15 = sbr.rel (0) target = $region9
  $region8: #{down_forward.1} parent=0 // pred_region
    _
  $region9: #{down_forward.1} parent=0 // pred_fallthru
    _
  // Predicated region
  $region10: #{down_forward.1} parent=0 // pred_check
    _
  $region11: #{down_forward.1} parent=0 // pred_check_branch
    %17 = sbr.rel (0) target = $region13
  $region12: #{down_forward.1} parent=0 // pred_region
    _
  $region13: #{down_forward.1} parent=0 // pred_fallthru
    _
  // Predicated region
  $region14: #{down_forward.1} parent=0 // pred_check
    _
  $region15: #{down_forward.1} parent=0 // pred_check_branch
    %19 = sbr.rel (0) target = $region17
  $region16: #{down_forward.1} parent=0 // pred_region
    _
  $region17: #{down_forward.1} parent=0 // pred_fallthru
    _
  // Predicated region
  $region18: #{down_forward.1} parent=0 // pred_check
    _
  $region19: #{down_forward.1} parent=0 // pred_check_branch
    %21 = sbr.rel (0) target = $region21
  $region20: #{down_forward.1} parent=0 // pred_region
    _
  $region21: #{down_forward.1} parent=0 // pred_fallthru
    _
  // Predicated region
  $region22: #{down_forward.1} parent=0 // pred_check
    _
  $region23: #{down_forward.1} parent=0 // pred_check_branch
    %23 = sbr.rel (0) target = $region25
  $region24: #{down_forward.1} parent=0 // pred_region
    _
  $region25: #{down_forward.1} parent=0 // pred_fallthru
    _
  // Predicated region
  $region26: #{down_forward.1} parent=0 // pred_check
    _
  $region27: #{down_forward.1} parent=0 // pred_check_branch
    %25 = sbr.rel (0) target = $region29
  $region28: #{down_forward.1} parent=0 // pred_region
    _
  $region29: #{down_forward.1} parent=0 // pred_fallthru
    _
  %v26 = vld [vmem:[%s0] sm:$0xff]
  %v27 = vld [vmem:[%s0 + $0x8] sm:$0x3]
  %v28 = vld [vmem:[%s0 + $0x10] sm:$0xff]
  %v29 = vld [vmem:[%s0 + $0x18] sm:$0x3]
  %v30 = vld [vmem:[%s0 + $0x20] sm:$0xff]
  %v31 = vld [vmem:[%s0 + $0x28] sm:$0x3]
  %v32 = vld [vmem:[%s0 + $0x30] sm:$0xff]
  %v33 = vld [vmem:[%s0 + $0x38] sm:$0x3]
  %v34 = vld [vmem:[%s0 + $0x40] sm:$0xff]
  %v35 = vld [vmem:[%s0 + $0x48] sm:$0x3]
  %v36 = vld [vmem:[%s0 + $0x50] sm:$0xff]
  %v37 = vld [vmem:[%s0 + $0x58] sm:$0x3]
  %v38 = vld [vmem:[%s0 + $0x60] sm:$0xff]
  %v39 = vld [vmem:[%s0 + $0x68] sm:$0x3]
  %v40 = vld [vmem:[%s0 + $0x70] sm:$0xff]
  %v41 = vld [vmem:[%s0 + $0x78] sm:$0x3]
  %v42 = vld [vmem:[%s0 + $0x80] sm:$0xff]
  %v43 = vld [vmem:[%s0 + $0x88] sm:$0x3]
  %v44 = vld [vmem:[%s0 + $0x90] sm:$0xff]
  %v45 = vld [vmem:[%s0 + $0x98] sm:$0x3]
  %v46 = vld [vmem:[%s0 + $0xa0] sm:$0xff]
  %v47 = vld [vmem:[%s0 + $0xa8] sm:$0x3]
  %v48 = vld [vmem:[%s0 + $0xb0] sm:$0xff]
  %v49 = vld [vmem:[%s0 + $0xb8] sm:$0x3]
  %v50 = vld [vmem:[%s0 + $0xc0] sm:$0xff]
  %v51 = vld [vmem:[%s0 + $0xc8] sm:$0x3]
  %v52 = vld [vmem:[%s0 + $0xd0] sm:$0xff]
  %v53 = vld [vmem:[%s0 + $0xd8] sm:$0x3]
  %v54 = vld [vmem:[%s0 + $0xe0] sm:$0xff]
  %v55 = vld [vmem:[%s0 + $0xe8] sm:$0x3]
  %v56 = vld [vmem:[%s0 + $0xf0] sm:$0xff]
  %v57 = vld [vmem:[%s0 + $0xf8] sm:$0x3]
  %v58 = vld [vmem:[%s0 + $0x100] sm:$0xff]
  %v59 = vld [vmem:[%s0 + $0x108] sm:$0x3]
  %v60 = vld [vmem:[%s0 + $0x110] sm:$0xff]
  %v61 = vld [vmem:[%s0 + $0x118] sm:$0x3]
  %v62 = vld [vmem:[%s0 + $0x120] sm:$0xff]
  %v63 = vld [vmem:[%s0 + $0x128] sm:$0x3]
  %v64 = vld [vmem:[%s0 + $0x130] sm:$0xff]
  %v65 = vld [vmem:[%s0 + $0x138] sm:$0x3]
  %v66 = vld [vmem:[%s0 + $0x140] sm:$0xff]
  %v67 = vld [vmem:[%s0 + $0x148] sm:$0x3]
  %v68 = vld [vmem:[%s0 + $0x150] sm:$0xff]
  %v69 = vld [vmem:[%s0 + $0x158] sm:$0x3]
  %v70 = vld [vmem:[%s0 + $0x160] sm:$0xff]
  %v71 = vld [vmem:[%s0 + $0x168] sm:$0x3]
  %v72 = vld [vmem:[%s0 + $0x170] sm:$0xff]
  %v73 = vld [vmem:[%s0 + $0x178] sm:$0x3]
  %v74 = vld [vmem:[%s0 + $0x180] sm:$0xff]
  %v75 = vld [vmem:[%s0 + $0x188] sm:$0x3]
  %v76 = vld [vmem:[%s0 + $0x190] sm:$0xff]
  %v77 = vld [vmem:[%s0 + $0x198] sm:$0x3]
  %v78 = vld [vmem:[%s0 + $0x1a0] sm:$0xff]
  %v79 = vld [vmem:[%s0 + $0x1a8] sm:$0x3]
  %v80 = vld [vmem:[%s0 + $0x1b0] sm:$0xff]
  %v81 = vld [vmem:[%s0 + $0x1b8] sm:$0x3]
  %v82 = vld [vmem:[%s0 + $0x1c0] sm:$0xff]
  %v83 = vld [vmem:[%s0 + $0x1c8] sm:$0x3]
  %v84 = vld [vmem:[%s0 + $0x1d0] sm:$0xff]
  %v85 = vld [vmem:[%s0 + $0x1d8] sm:$0x3]
  %v86 = vld [vmem:[%s0 + $0x1e0] sm:$0xff]
  %v87 = vld [vmem:[%s0 + $0x1e8] sm:$0x3]
  %v88 = vld [vmem:[%s0 + $0x1f0] sm:$0xff]
  %v89 = vld [vmem:[%s0 + $0x1f8] sm:$0x3]
  %v90 = vld [vmem:[%s0 + $0x200] sm:$0xff]
  %v91 = vld [vmem:[%s0 + $0x208] sm:$0x3]
  %v92 = vld [vmem:[%s0 + $0x210] sm:$0xff]
  %v93 = vld [vmem:[%s0 + $0x218] sm:$0x3]
  %v94 = vld [vmem:[%s0 + $0x220] sm:$0xff]
  %v95 = vld [vmem:[%s0 + $0x228] sm:$0x3]
  %v96 = vld [vmem:[%s0 + $0x230] sm:$0xff]
  %v97 = vld [vmem:[%s0 + $0x238] sm:$0x3]
  %v98 = vld [vmem:[%s0 + $0x240] sm:$0xff]
  %v99 = vld [vmem:[%s0 + $0x248] sm:$0x3]
  %v100 = vld [vmem:[%s0 + $0x250] sm:$0xff]
  %v101 = vld [vmem:[%s0 + $0x258] sm:$0x3]
  %v102 = vld [vmem:[%s0 + $0x260] sm:$0xff]
  %v103 = vld [vmem:[%s0 + $0x268] sm:$0x3]
  %v104 = vld [vmem:[%s0 + $0x270] sm:$0xff]
  %v105 = vld [vmem:[%s0 + $0x278] sm:$0x3]
  %186 = vrot.lane.b32.xlu0 %v26, 124
  %v187 = vpop.permute.xlu0 %186
  %188 = vrot.lane.b32.xlu0 %v27, 124
  %v189 = vpop.permute.xlu0 %188
  %190 = vrot.lane.b32.xlu0 %v28, 124
  %v191 = vpop.permute.xlu0 %190
  %192 = vrot.lane.b32.xlu0 %v29, 124
  %v193 = vpop.permute.xlu0 %192
  %194 = vrot.lane.b32.xlu0 %v30, 124
  %v195 = vpop.permute.xlu0 %194
  %196 = vrot.lane.b32.xlu0 %v31, 124
  %v197 = vpop.permute.xlu0 %196
  %198 = vrot.lane.b32.xlu0 %v32, 124
  %v199 = vpop.permute.xlu0 %198
  %200 = vrot.lane.b32.xlu0 %v33, 124
  %v201 = vpop.permute.xlu0 %200
  %202 = vrot.lane.b32.xlu0 %v34, 124
  %v203 = vpop.permute.xlu0 %202
  %204 = vrot.lane.b32.xlu0 %v35, 124
  %v205 = vpop.permute.xlu0 %204
  %206 = vrot.lane.b32.xlu0 %v36, 124
  %v207 = vpop.permute.xlu0 %206
  %208 = vrot.lane.b32.xlu0 %v37, 124
  %v209 = vpop.permute.xlu0 %208
  %210 = vrot.lane.b32.xlu0 %v38, 124
  %v211 = vpop.permute.xlu0 %210
  %212 = vrot.lane.b32.xlu0 %v39, 124
  %v213 = vpop.permute.xlu0 %212
  %214 = vrot.lane.b32.xlu0 %v40, 124
  %v215 = vpop.permute.xlu0 %214
  %216 = vrot.lane.b32.xlu0 %v41, 124
  %v217 = vpop.permute.xlu0 %216
  %218 = vrot.lane.b32.xlu0 %v42, 124
  %v219 = vpop.permute.xlu0 %218
  %220 = vrot.lane.b32.xlu0 %v43, 124
  %v221 = vpop.permute.xlu0 %220
  %222 = vrot.lane.b32.xlu0 %v44, 124
  %v223 = vpop.permute.xlu0 %222
  %224 = vrot.lane.b32.xlu0 %v45, 124
  %v225 = vpop.permute.xlu0 %224
  %226 = vrot.lane.b32.xlu0 %v46, 124
  %v227 = vpop.permute.xlu0 %226
  %228 = vrot.lane.b32.xlu0 %v47, 124
  %v229 = vpop.permute.xlu0 %228
  %230 = vrot.lane.b32.xlu0 %v48, 124
  %v231 = vpop.permute.xlu0 %230
  %232 = vrot.lane.b32.xlu0 %v49, 124
  %v233 = vpop.permute.xlu0 %232
  %234 = vrot.lane.b32.xlu0 %v50, 124
  %v235 = vpop.permute.xlu0 %234
  %236 = vrot.lane.b32.xlu0 %v51, 124
  %v237 = vpop.permute.xlu0 %236
  %238 = vrot.lane.b32.xlu0 %v52, 124
  %v239 = vpop.permute.xlu0 %238
  %240 = vrot.lane.b32.xlu0 %v53, 124
  %v241 = vpop.permute.xlu0 %240
  %242 = vrot.lane.b32.xlu0 %v54, 124
  %v243 = vpop.permute.xlu0 %242
  %244 = vrot.lane.b32.xlu0 %v55, 124
  %v245 = vpop.permute.xlu0 %244
  %246 = vrot.lane.b32.xlu0 %v56, 124
  %v247 = vpop.permute.xlu0 %246
  %248 = vrot.lane.b32.xlu0 %v57, 124
  %v249 = vpop.permute.xlu0 %248
  %250 = vrot.lane.b32.xlu0 %v58, 124
  %v251 = vpop.permute.xlu0 %250
  %252 = vrot.lane.b32.xlu0 %v59, 124
  %v253 = vpop.permute.xlu0 %252
  %254 = vrot.lane.b32.xlu0 %v60, 124
  %v255 = vpop.permute.xlu0 %254
  %256 = vrot.lane.b32.xlu0 %v61, 124
  %v257 = vpop.permute.xlu0 %256
  %258 = vrot.lane.b32.xlu0 %v62, 124
  %v259 = vpop.permute.xlu0 %258
  %260 = vrot.lane.b32.xlu0 %v63, 124
  %v261 = vpop.permute.xlu0 %260
  %262 = vrot.lane.b32.xlu0 %v64, 124
  %v263 = vpop.permute.xlu0 %262
  %264 = vrot.lane.b32.xlu0 %v65, 124
  %v265 = vpop.permute.xlu0 %264
  %266 = vrot.lane.b32.xlu0 %v66, 124
  %v267 = vpop.permute.xlu0 %266
  %268 = vrot.lane.b32.xlu0 %v67, 124
  %v269 = vpop.permute.xlu0 %268
  %270 = vrot.lane.b32.xlu0 %v68, 124
  %v271 = vpop.permute.xlu0 %270
  %272 = vrot.lane.b32.xlu0 %v69, 124
  %v273 = vpop.permute.xlu0 %272
  %274 = vrot.lane.b32.xlu0 %v70, 124
  %v275 = vpop.permute.xlu0 %274
  %276 = vrot.lane.b32.xlu0 %v71, 124
  %v277 = vpop.permute.xlu0 %276
  %278 = vrot.lane.b32.xlu0 %v72, 124
  %v279 = vpop.permute.xlu0 %278
  %280 = vrot.lane.b32.xlu0 %v73, 124
  %v281 = vpop.permute.xlu0 %280
  %282 = vrot.lane.b32.xlu0 %v74, 124
  %v283 = vpop.permute.xlu0 %282
  %284 = vrot.lane.b32.xlu0 %v75, 124
  %v285 = vpop.permute.xlu0 %284
  %286 = vrot.lane.b32.xlu0 %v76, 124
  %v287 = vpop.permute.xlu0 %286
  %288 = vrot.lane.b32.xlu0 %v77, 124
  %v289 = vpop.permute.xlu0 %288
  %290 = vrot.lane.b32.xlu0 %v78, 124
  %v291 = vpop.permute.xlu0 %290
  %292 = vrot.lane.b32.xlu0 %v79, 124
  %v293 = vpop.permute.xlu0 %292
  %294 = vrot.lane.b32.xlu0 %v80, 124
  %v295 = vpop.permute.xlu0 %294
  %296 = vrot.lane.b32.xlu0 %v81, 124
  %v297 = vpop.permute.xlu0 %296
  %298 = vrot.lane.b32.xlu0 %v82, 124
  %v299 = vpop.permute.xlu0 %298
  %300 = vrot.lane.b32.xlu0 %v83, 124
  %v301 = vpop.permute.xlu0 %300
  %302 = vrot.lane.b32.xlu0 %v84, 124
  %v303 = vpop.permute.xlu0 %302
  %304 = vrot.lane.b32.xlu0 %v85, 124
  %v305 = vpop.permute.xlu0 %304
  %306 = vrot.lane.b32.xlu0 %v86, 124
  %v307 = vpop.permute.xlu0 %306
  %308 = vrot.lane.b32.xlu0 %v87, 124
  %v309 = vpop.permute.xlu0 %308
  %310 = vrot.lane.b32.xlu0 %v88, 124
  %v311 = vpop.permute.xlu0 %310
  %312 = vrot.lane.b32.xlu0 %v89, 124
  %v313 = vpop.permute.xlu0 %312
  %314 = vrot.lane.b32.xlu0 %v90, 124
  %v315 = vpop.permute.xlu0 %314
  %316 = vrot.lane.b32.xlu0 %v91, 124
  %v317 = vpop.permute.xlu0 %316
  %318 = vrot.lane.b32.xlu0 %v92, 124
  %v319 = vpop.permute.xlu0 %318
  %320 = vrot.lane.b32.xlu0 %v93, 124
  %v321 = vpop.permute.xlu0 %320
  %322 = vrot.lane.b32.xlu0 %v94, 124
  %v323 = vpop.permute.xlu0 %322
  %324 = vrot.lane.b32.xlu0 %v95, 124
  %v325 = vpop.permute.xlu0 %324
  %326 = vrot.lane.b32.xlu0 %v96, 124
  %v327 = vpop.permute.xlu0 %326
  %328 = vrot.lane.b32.xlu0 %v97, 124
  %v329 = vpop.permute.xlu0 %328
  %330 = vrot.lane.b32.xlu0 %v98, 124
  %v331 = vpop.permute.xlu0 %330
  %332 = vrot.lane.b32.xlu0 %v99, 124
  %v333 = vpop.permute.xlu0 %332
  %334 = vrot.lane.b32.xlu0 %v100, 124
  %v335 = vpop.permute.xlu0 %334
  %336 = vrot.lane.b32.xlu0 %v101, 124
  %v337 = vpop.permute.xlu0 %336
  %338 = vrot.lane.b32.xlu0 %v102, 124
  %v339 = vpop.permute.xlu0 %338
  %340 = vrot.lane.b32.xlu0 %v103, 124
  %v341 = vpop.permute.xlu0 %340
  %342 = vrot.lane.b32.xlu0 %v104, 124
  %v343 = vpop.permute.xlu0 %342
  %344 = vrot.lane.b32.xlu0 %v105, 124
  %v345 = vpop.permute.xlu0 %344
  %v426 = vmax.f32 %v26, %v187
  %v427 = vmax.f32 %v27, %v189
  %v428 = vmax.f32 %v28, %v191
  %v429 = vmax.f32 %v29, %v193
  %v430 = vmax.f32 %v30, %v195
  %v431 = vmax.f32 %v31, %v197
  %v432 = vmax.f32 %v32, %v199
  %v433 = vmax.f32 %v33, %v201
  %v434 = vmax.f32 %v34, %v203
  %v435 = vmax.f32 %v35, %v205
  %v436 = vmax.f32 %v36, %v207
  %v437 = vmax.f32 %v37, %v209
  %v438 = vmax.f32 %v38, %v211
  %v439 = vmax.f32 %v39, %v213
  %v440 = vmax.f32 %v40, %v215
  %v441 = vmax.f32 %v41, %v217
  %v442 = vmax.f32 %v42, %v219
  %v443 = vmax.f32 %v43, %v221
  %v444 = vmax.f32 %v44, %v223
  %v445 = vmax.f32 %v45, %v225
  %v446 = vmax.f32 %v46, %v227
  %v447 = vmax.f32 %v47, %v229
  %v448 = vmax.f32 %v48, %v231
  %v449 = vmax.f32 %v49, %v233
  %v450 = vmax.f32 %v50, %v235
  %v451 = vmax.f32 %v51, %v237
  %v452 = vmax.f32 %v52, %v239
  %v453 = vmax.f32 %v53, %v241
  %v454 = vmax.f32 %v54, %v243
  %v455 = vmax.f32 %v55, %v245
  %v456 = vmax.f32 %v56, %v247
  %v457 = vmax.f32 %v57, %v249
  %v458 = vmax.f32 %v58, %v251
  %v459 = vmax.f32 %v59, %v253
  %v460 = vmax.f32 %v60, %v255
  %v461 = vmax.f32 %v61, %v257
  %v462 = vmax.f32 %v62, %v259
  %v463 = vmax.f32 %v63, %v261
  %v464 = vmax.f32 %v64, %v263
  %v465 = vmax.f32 %v65, %v265
  %v466 = vmax.f32 %v66, %v267
  %v467 = vmax.f32 %v67, %v269
  %v468 = vmax.f32 %v68, %v271
  %v469 = vmax.f32 %v69, %v273
  %v470 = vmax.f32 %v70, %v275
  %v471 = vmax.f32 %v71, %v277
  %v472 = vmax.f32 %v72, %v279
  %v473 = vmax.f32 %v73, %v281
  %v474 = vmax.f32 %v74, %v283
  %v475 = vmax.f32 %v75, %v285
  %v476 = vmax.f32 %v76, %v287
  %v477 = vmax.f32 %v77, %v289
  %v478 = vmax.f32 %v78, %v291
  %v479 = vmax.f32 %v79, %v293
  %v480 = vmax.f32 %v80, %v295
  %v481 = vmax.f32 %v81, %v297
  %v482 = vmax.f32 %v82, %v299
  %v483 = vmax.f32 %v83, %v301
  %v484 = vmax.f32 %v84, %v303
  %v485 = vmax.f32 %v85, %v305
  %v486 = vmax.f32 %v86, %v307
  %v487 = vmax.f32 %v87, %v309
  %v488 = vmax.f32 %v88, %v311
  %v489 = vmax.f32 %v89, %v313
  %v490 = vmax.f32 %v90, %v315
  %v491 = vmax.f32 %v91, %v317
  %v492 = vmax.f32 %v92, %v319
  %v493 = vmax.f32 %v93, %v321
  %v494 = vmax.f32 %v94, %v323
  %v495 = vmax.f32 %v95, %v325
  %v496 = vmax.f32 %v96, %v327
  %v497 = vmax.f32 %v97, %v329
  %v498 = vmax.f32 %v98, %v331
  %v499 = vmax.f32 %v99, %v333
  %v500 = vmax.f32 %v100, %v335
  %v501 = vmax.f32 %v101, %v337
  %v502 = vmax.f32 %v102, %v339
  %v503 = vmax.f32 %v103, %v341
  %v504 = vmax.f32 %v104, %v343
  %v505 = vmax.f32 %v105, %v345
  %vm506 = vcmask 31744
  %v507 = vsel %vm506, %v426, -inf
  %v508 = vsel %vm506, %v428, -inf
  %v509 = vmax.f32 %v507, %v508
  %vm510 = vcmask 25600
  %v511 = vsel %vm510, %v427, -inf
  %v512 = vsel %vm510, %v429, -inf
  %v513 = vmax.f32 %v511, %v512
  %v514 = vsel %vm506, %v430, -inf
  %v515 = vsel %vm506, %v432, -inf
  %v516 = vmax.f32 %v514, %v515
  %v517 = vsel %vm510, %v431, -inf
  %v518 = vsel %vm510, %v433, -inf
  %v519 = vmax.f32 %v517, %v518
  %v520 = vsel %vm506, %v434, -inf
  %v521 = vsel %vm506, %v436, -inf
  %v522 = vmax.f32 %v520, %v521
  %v523 = vsel %vm510, %v435, -inf
  %v524 = vsel %vm510, %v437, -inf
  %v525 = vmax.f32 %v523, %v524
  %v526 = vsel %vm506, %v438, -inf
  %v527 = vsel %vm506, %v440, -inf
  %v528 = vmax.f32 %v526, %v527
  %v529 = vsel %vm510, %v439, -inf
  %v530 = vsel %vm510, %v441, -inf
  %v531 = vmax.f32 %v529, %v530
  %v532 = vsel %vm506, %v442, -inf
  %v533 = vsel %vm506, %v444, -inf
  %v534 = vmax.f32 %v532, %v533
  %v535 = vsel %vm510, %v443, -inf
  %v536 = vsel %vm510, %v445, -inf
  %v537 = vmax.f32 %v535, %v536
  %v538 = vsel %vm506, %v446, -inf
  %v539 = vsel %vm506, %v448, -inf
  %v540 = vmax.f32 %v538, %v539
  %v541 = vsel %vm510, %v447, -inf
  %v542 = vsel %vm510, %v449, -inf
  %v543 = vmax.f32 %v541, %v542
  %v544 = vsel %vm506, %v450, -inf
  %v545 = vsel %vm506, %v452, -inf
  %v546 = vmax.f32 %v544, %v545
  %v547 = vsel %vm510, %v451, -inf
  %v548 = vsel %vm510, %v453, -inf
  %v549 = vmax.f32 %v547, %v548
  %v550 = vsel %vm506, %v454, -inf
  %v551 = vsel %vm506, %v456, -inf
  %v552 = vmax.f32 %v550, %v551
  %v553 = vsel %vm510, %v455, -inf
  %v554 = vsel %vm510, %v457, -inf
  %v555 = vmax.f32 %v553, %v554
  %v556 = vsel %vm506, %v458, -inf
  %v557 = vsel %vm506, %v460, -inf
  %v558 = vmax.f32 %v556, %v557
  %v559 = vsel %vm510, %v459, -inf
  %v560 = vsel %vm510, %v461, -inf
  %v561 = vmax.f32 %v559, %v560
  %v562 = vsel %vm506, %v462, -inf
  %v563 = vsel %vm506, %v464, -inf
  %v564 = vmax.f32 %v562, %v563
  %v565 = vsel %vm510, %v463, -inf
  %v566 = vsel %vm510, %v465, -inf
  %v567 = vmax.f32 %v565, %v566
  %v568 = vsel %vm506, %v466, -inf
  %v569 = vsel %vm506, %v468, -inf
  %v570 = vmax.f32 %v568, %v569
  %v571 = vsel %vm510, %v467, -inf
  %v572 = vsel %vm510, %v469, -inf
  %v573 = vmax.f32 %v571, %v572
  %v574 = vsel %vm506, %v470, -inf
  %v575 = vsel %vm506, %v472, -inf
  %v576 = vmax.f32 %v574, %v575
  %v577 = vsel %vm510, %v471, -inf
  %v578 = vsel %vm510, %v473, -inf
  %v579 = vmax.f32 %v577, %v578
  %v580 = vsel %vm506, %v474, -inf
  %v581 = vsel %vm506, %v476, -inf
  %v582 = vmax.f32 %v580, %v581
  %v583 = vsel %vm510, %v475, -inf
  %v584 = vsel %vm510, %v477, -inf
  %v585 = vmax.f32 %v583, %v584
  %v586 = vsel %vm506, %v478, -inf
  %v587 = vsel %vm506, %v480, -inf
  %v588 = vmax.f32 %v586, %v587
  %v589 = vsel %vm510, %v479, -inf
  %v590 = vsel %vm510, %v481, -inf
  %v591 = vmax.f32 %v589, %v590
  %v592 = vsel %vm506, %v482, -inf
  %v593 = vsel %vm506, %v484, -inf
  %v594 = vmax.f32 %v592, %v593
  %v595 = vsel %vm510, %v483, -inf
  %v596 = vsel %vm510, %v485, -inf
  %v597 = vmax.f32 %v595, %v596
  %v598 = vsel %vm506, %v486, -inf
  %v599 = vsel %vm506, %v488, -inf
  %v600 = vmax.f32 %v598, %v599
  %v601 = vsel %vm510, %v487, -inf
  %v602 = vsel %vm510, %v489, -inf
  %v603 = vmax.f32 %v601, %v602
  %v604 = vsel %vm506, %v490, -inf
  %v605 = vsel %vm506, %v492, -inf
  %v606 = vmax.f32 %v604, %v605
  %v607 = vsel %vm510, %v491, -inf
  %v608 = vsel %vm510, %v493, -inf
  %v609 = vmax.f32 %v607, %v608
  %v610 = vsel %vm506, %v494, -inf
  %v611 = vsel %vm506, %v496, -inf
  %v612 = vmax.f32 %v610, %v611
  %v613 = vsel %vm510, %v495, -inf
  %v614 = vsel %vm510, %v497, -inf
  %v615 = vmax.f32 %v613, %v614
  %v616 = vsel %vm506, %v498, -inf
  %v617 = vsel %vm506, %v500, -inf
  %v618 = vmax.f32 %v616, %v617
  %v619 = vsel %vm510, %v499, -inf
  %v620 = vsel %vm510, %v501, -inf
  %v621 = vmax.f32 %v619, %v620
  %v622 = vsel %vm506, %v502, -inf
  %v623 = vsel %vm506, %v504, -inf
  %v624 = vmax.f32 %v622, %v623
  %v625 = vsel %vm510, %v503, -inf
  %v626 = vsel %vm510, %v505, -inf
  %v627 = vmax.f32 %v625, %v626
  %vm660 = vcmask 1046528
  %v661 = vrot.slane %v509, 1
  %v662 = vrot.slane %v513, 1
  %v663 = vsel %vm660, %v661, %v662
  %v664 = vrot.slane %v516, 1
  %v665 = vrot.slane %v519, 1
  %v666 = vsel %vm660, %v664, %v665
  %v667 = vrot.slane %v522, 1
  %v668 = vrot.slane %v525, 1
  %v669 = vsel %vm660, %v667, %v668
  %v670 = vrot.slane %v528, 1
  %v671 = vrot.slane %v531, 1
  %v672 = vsel %vm660, %v670, %v671
  %v673 = vrot.slane %v534, 1
  %v674 = vrot.slane %v537, 1
  %v675 = vsel %vm660, %v673, %v674
  %v676 = vrot.slane %v540, 1
  %v677 = vrot.slane %v543, 1
  %v678 = vsel %vm660, %v676, %v677
  %v679 = vrot.slane %v546, 1
  %v680 = vrot.slane %v549, 1
  %v681 = vsel %vm660, %v679, %v680
  %v682 = vrot.slane %v552, 1
  %v683 = vrot.slane %v555, 1
  %v684 = vsel %vm660, %v682, %v683
  %v685 = vrot.slane %v570, 1
  %v686 = vrot.slane %v573, 1
  %v687 = vsel %vm660, %v685, %v686
  %v688 = vrot.slane %v576, 1
  %v689 = vrot.slane %v579, 1
  %v690 = vsel %vm660, %v688, %v689
  %v691 = vrot.slane %v582, 1
  %v692 = vrot.slane %v585, 1
  %v693 = vsel %vm660, %v691, %v692
  %v694 = vrot.slane %v588, 1
  %v695 = vrot.slane %v591, 1
  %v696 = vsel %vm660, %v694, %v695
  %v697 = vrot.slane %v594, 1
  %v698 = vrot.slane %v597, 1
  %v699 = vsel %vm660, %v697, %v698
  %v700 = vrot.slane %v600, 1
  %v701 = vrot.slane %v603, 1
  %v702 = vsel %vm660, %v700, %v701
  %v703 = vrot.slane %v606, 1
  %v704 = vrot.slane %v609, 1
  %v705 = vsel %vm660, %v703, %v704
  %v706 = vrot.slane %v612, 1
  %v707 = vrot.slane %v615, 1
  %v708 = vsel %vm660, %v706, %v707
  %709 = vrot.lane.b32.xlu0 %v663, 4
  %v710 = vpop.permute.xlu0 %709
  %711 = vrot.lane.b32.xlu0 %v666, 4
  %v712 = vpop.permute.xlu0 %711
  %713 = vrot.lane.b32.xlu0 %v669, 4
  %v714 = vpop.permute.xlu0 %713
  %715 = vrot.lane.b32.xlu0 %v672, 4
  %v716 = vpop.permute.xlu0 %715
  %717 = vrot.lane.b32.xlu0 %v675, 4
  %v718 = vpop.permute.xlu0 %717
  %719 = vrot.lane.b32.xlu0 %v678, 4
  %v720 = vpop.permute.xlu0 %719
  %721 = vrot.lane.b32.xlu0 %v681, 4
  %v722 = vpop.permute.xlu0 %721
  %723 = vrot.lane.b32.xlu0 %v684, 4
  %v724 = vpop.permute.xlu0 %723
  %725 = vrot.lane.b32.xlu0 %v687, 4
  %v726 = vpop.permute.xlu0 %725
  %727 = vrot.lane.b32.xlu0 %v690, 4
  %v728 = vpop.permute.xlu0 %727
  %729 = vrot.lane.b32.xlu0 %v693, 4
  %v730 = vpop.permute.xlu0 %729
  %731 = vrot.lane.b32.xlu0 %v696, 4
  %v732 = vpop.permute.xlu0 %731
  %733 = vrot.lane.b32.xlu0 %v699, 4
  %v734 = vpop.permute.xlu0 %733
  %735 = vrot.lane.b32.xlu0 %v702, 4
  %v736 = vpop.permute.xlu0 %735
  %737 = vrot.lane.b32.xlu0 %v705, 4
  %v738 = vpop.permute.xlu0 %737
  %739 = vrot.lane.b32.xlu0 %v708, 4
  %v740 = vpop.permute.xlu0 %739
  %vm757 = vcmask 1045504
  %v758 = vrot.slane %v509, 2
  %v759 = vrot.slane %v513, 2
  %v760 = vsel %vm757, %v758, %v759
  %v761 = vrot.slane %v516, 2
  %v762 = vrot.slane %v519, 2
  %v763 = vsel %vm757, %v761, %v762
  %v764 = vrot.slane %v522, 2
  %v765 = vrot.slane %v525, 2
  %v766 = vsel %vm757, %v764, %v765
  %v767 = vrot.slane %v528, 2
  %v768 = vrot.slane %v531, 2
  %v769 = vsel %vm757, %v767, %v768
  %v770 = vrot.slane %v534, 2
  %v771 = vrot.slane %v537, 2
  %v772 = vsel %vm757, %v770, %v771
  %v773 = vrot.slane %v540, 2
  %v774 = vrot.slane %v543, 2
  %v775 = vsel %vm757, %v773, %v774
  %v776 = vrot.slane %v546, 2
  %v777 = vrot.slane %v549, 2
  %v778 = vsel %vm757, %v776, %v777
  %v779 = vrot.slane %v552, 2
  %v780 = vrot.slane %v555, 2
  %v781 = vsel %vm757, %v779, %v780
  %v782 = vrot.slane %v570, 2
  %v783 = vrot.slane %v573, 2
  %v784 = vsel %vm757, %v782, %v783
  %v785 = vrot.slane %v576, 2
  %v786 = vrot.slane %v579, 2
  %v787 = vsel %vm757, %v785, %v786
  %v788 = vrot.slane %v582, 2
  %v789 = vrot.slane %v585, 2
  %v790 = vsel %vm757, %v788, %v789
  %v791 = vrot.slane %v588, 2
  %v792 = vrot.slane %v591, 2
  %v793 = vsel %vm757, %v791, %v792
  %v794 = vrot.slane %v594, 2
  %v795 = vrot.slane %v597, 2
  %v796 = vsel %vm757, %v794, %v795
  %v797 = vrot.slane %v600, 2
  %v798 = vrot.slane %v603, 2
  %v799 = vsel %vm757, %v797, %v798
  %v800 = vrot.slane %v606, 2
  %v801 = vrot.slane %v609, 2
  %v802 = vsel %vm757, %v800, %v801
  %v803 = vrot.slane %v612, 2
  %v804 = vrot.slane %v615, 2
  %v805 = vsel %vm757, %v803, %v804
  %806 = vrot.lane.b32.xlu0 %v760, 8
  %v807 = vpop.permute.xlu0 %806
  %808 = vrot.lane.b32.xlu0 %v763, 8
  %v809 = vpop.permute.xlu0 %808
  %810 = vrot.lane.b32.xlu0 %v766, 8
  %v811 = vpop.permute.xlu0 %810
  %812 = vrot.lane.b32.xlu0 %v769, 8
  %v813 = vpop.permute.xlu0 %812
  %814 = vrot.lane.b32.xlu0 %v772, 8
  %v815 = vpop.permute.xlu0 %814
  %816 = vrot.lane.b32.xlu0 %v775, 8
  %v817 = vpop.permute.xlu0 %816
  %818 = vrot.lane.b32.xlu0 %v778, 8
  %v819 = vpop.permute.xlu0 %818
  %820 = vrot.lane.b32.xlu0 %v781, 8
  %v821 = vpop.permute.xlu0 %820
  %822 = vrot.lane.b32.xlu0 %v784, 8
  %v823 = vpop.permute.xlu0 %822
  %824 = vrot.lane.b32.xlu0 %v787, 8
  %v825 = vpop.permute.xlu0 %824
  %826 = vrot.lane.b32.xlu0 %v790, 8
  %v827 = vpop.permute.xlu0 %826
  %828 = vrot.lane.b32.xlu0 %v793, 8
  %v829 = vpop.permute.xlu0 %828
  %830 = vrot.lane.b32.xlu0 %v796, 8
  %v831 = vpop.permute.xlu0 %830
  %832 = vrot.lane.b32.xlu0 %v799, 8
  %v833 = vpop.permute.xlu0 %832
  %834 = vrot.lane.b32.xlu0 %v802, 8
  %v835 = vpop.permute.xlu0 %834
  %836 = vrot.lane.b32.xlu0 %v805, 8
  %v837 = vpop.permute.xlu0 %836
  %856 = vrot.lane.b32.xlu0 %v516, 12
  %v857 = vpop.permute.xlu0 %856
  %858 = vrot.lane.b32.xlu0 %v522, 12
  %v859 = vpop.permute.xlu0 %858
  %860 = vrot.lane.b32.xlu0 %v528, 12
  %v861 = vpop.permute.xlu0 %860
  %862 = vrot.lane.b32.xlu0 %v534, 12
  %v863 = vpop.permute.xlu0 %862
  %864 = vrot.lane.b32.xlu0 %v540, 12
  %v865 = vpop.permute.xlu0 %864
  %866 = vrot.lane.b32.xlu0 %v546, 12
  %v867 = vpop.permute.xlu0 %866
  %868 = vrot.lane.b32.xlu0 %v552, 12
  %v869 = vpop.permute.xlu0 %868
  %870 = vrot.lane.b32.xlu0 %v558, 12
  %v871 = vpop.permute.xlu0 %870
  %872 = vrot.lane.b32.xlu0 %v576, 12
  %v873 = vpop.permute.xlu0 %872
  %874 = vrot.lane.b32.xlu0 %v582, 12
  %v875 = vpop.permute.xlu0 %874
  %876 = vrot.lane.b32.xlu0 %v588, 12
  %v877 = vpop.permute.xlu0 %876
  %878 = vrot.lane.b32.xlu0 %v594, 12
  %v879 = vpop.permute.xlu0 %878
  %880 = vrot.lane.b32.xlu0 %v600, 12
  %v881 = vpop.permute.xlu0 %880
  %882 = vrot.lane.b32.xlu0 %v606, 12
  %v883 = vpop.permute.xlu0 %882
  %884 = vrot.lane.b32.xlu0 %v612, 12
  %v885 = vpop.permute.xlu0 %884
  %886 = vrot.lane.b32.xlu0 %v618, 12
  %v887 = vpop.permute.xlu0 %886
  %v906 = vrot.slane %v558, 1
  %v907 = vrot.slane %v561, 1
  %v908 = vsel %vm660, %v906, %v907
  %v909 = vrot.slane %v618, 1
  %v910 = vrot.slane %v621, 1
  %v911 = vsel %vm660, %v909, %v910
  %912 = vrot.lane.b32.xlu0 %v666, 16
  %v913 = vpop.permute.xlu0 %912
  %914 = vrot.lane.b32.xlu0 %v669, 16
  %v915 = vpop.permute.xlu0 %914
  %916 = vrot.lane.b32.xlu0 %v672, 16
  %v917 = vpop.permute.xlu0 %916
  %918 = vrot.lane.b32.xlu0 %v675, 16
  %v919 = vpop.permute.xlu0 %918
  %920 = vrot.lane.b32.xlu0 %v678, 16
  %v921 = vpop.permute.xlu0 %920
  %922 = vrot.lane.b32.xlu0 %v681, 16
  %v923 = vpop.permute.xlu0 %922
  %924 = vrot.lane.b32.xlu0 %v684, 16
  %v925 = vpop.permute.xlu0 %924
  %926 = vrot.lane.b32.xlu0 %v908, 16
  %v927 = vpop.permute.xlu0 %926
  %928 = vrot.lane.b32.xlu0 %v690, 16
  %v929 = vpop.permute.xlu0 %928
  %930 = vrot.lane.b32.xlu0 %v693, 16
  %v931 = vpop.permute.xlu0 %930
  %932 = vrot.lane.b32.xlu0 %v696, 16
  %v933 = vpop.permute.xlu0 %932
  %934 = vrot.lane.b32.xlu0 %v699, 16
  %v935 = vpop.permute.xlu0 %934
  %936 = vrot.lane.b32.xlu0 %v702, 16
  %v937 = vpop.permute.xlu0 %936
  %938 = vrot.lane.b32.xlu0 %v705, 16
  %v939 = vpop.permute.xlu0 %938
  %940 = vrot.lane.b32.xlu0 %v708, 16
  %v941 = vpop.permute.xlu0 %940
  %942 = vrot.lane.b32.xlu0 %v911, 16
  %v943 = vpop.permute.xlu0 %942
  %v960 = vrot.slane %v558, 2
  %v961 = vrot.slane %v561, 2
  %v962 = vsel %vm757, %v960, %v961
  %v963 = vrot.slane %v618, 2
  %v964 = vrot.slane %v621, 2
  %v965 = vsel %vm757, %v963, %v964
  %966 = vrot.lane.b32.xlu0 %v763, 20
  %v967 = vpop.permute.xlu0 %966
  %968 = vrot.lane.b32.xlu0 %v766, 20
  %v969 = vpop.permute.xlu0 %968
  %970 = vrot.lane.b32.xlu0 %v769, 20
  %v971 = vpop.permute.xlu0 %970
  %972 = vrot.lane.b32.xlu0 %v772, 20
  %v973 = vpop.permute.xlu0 %972
  %974 = vrot.lane.b32.xlu0 %v775, 20
  %v975 = vpop.permute.xlu0 %974
  %976 = vrot.lane.b32.xlu0 %v778, 20
  %v977 = vpop.permute.xlu0 %976
  %978 = vrot.lane.b32.xlu0 %v781, 20
  %v979 = vpop.permute.xlu0 %978
  %980 = vrot.lane.b32.xlu0 %v962, 20
  %v981 = vpop.permute.xlu0 %980
  %982 = vrot.lane.b32.xlu0 %v787, 20
  %v983 = vpop.permute.xlu0 %982
  %984 = vrot.lane.b32.xlu0 %v790, 20
  %v985 = vpop.permute.xlu0 %984
  %986 = vrot.lane.b32.xlu0 %v793, 20
  %v987 = vpop.permute.xlu0 %986
  %988 = vrot.lane.b32.xlu0 %v796, 20
  %v989 = vpop.permute.xlu0 %988
  %990 = vrot.lane.b32.xlu0 %v799, 20
  %v991 = vpop.permute.xlu0 %990
  %992 = vrot.lane.b32.xlu0 %v802, 20
  %v993 = vpop.permute.xlu0 %992
  %994 = vrot.lane.b32.xlu0 %v805, 20
  %v995 = vpop.permute.xlu0 %994
  %996 = vrot.lane.b32.xlu0 %v965, 20
  %v997 = vpop.permute.xlu0 %996
  %1016 = vrot.lane.b32.xlu0 %v522, 24
  %v1017 = vpop.permute.xlu0 %1016
  %1018 = vrot.lane.b32.xlu0 %v528, 24
  %v1019 = vpop.permute.xlu0 %1018
  %1020 = vrot.lane.b32.xlu0 %v534, 24
  %v1021 = vpop.permute.xlu0 %1020
  %1022 = vrot.lane.b32.xlu0 %v540, 24
  %v1023 = vpop.permute.xlu0 %1022
  %1024 = vrot.lane.b32.xlu0 %v546, 24
  %v1025 = vpop.permute.xlu0 %1024
  %1026 = vrot.lane.b32.xlu0 %v552, 24
  %v1027 = vpop.permute.xlu0 %1026
  %1028 = vrot.lane.b32.xlu0 %v558, 24
  %v1029 = vpop.permute.xlu0 %1028
  %1030 = vrot.lane.b32.xlu0 %v564, 24
  %v1031 = vpop.permute.xlu0 %1030
  %1032 = vrot.lane.b32.xlu0 %v582, 24
  %v1033 = vpop.permute.xlu0 %1032
  %1034 = vrot.lane.b32.xlu0 %v588, 24
  %v1035 = vpop.permute.xlu0 %1034
  %1036 = vrot.lane.b32.xlu0 %v594, 24
  %v1037 = vpop.permute.xlu0 %1036
  %1038 = vrot.lane.b32.xlu0 %v600, 24
  %v1039 = vpop.permute.xlu0 %1038
  %1040 = vrot.lane.b32.xlu0 %v606, 24
  %v1041 = vpop.permute.xlu0 %1040
  %1042 = vrot.lane.b32.xlu0 %v612, 24
  %v1043 = vpop.permute.xlu0 %1042
  %1044 = vrot.lane.b32.xlu0 %v618, 24
  %v1045 = vpop.permute.xlu0 %1044
  %1046 = vrot.lane.b32.xlu0 %v624, 24
  %v1047 = vpop.permute.xlu0 %1046
  %v1066 = vrot.slane %v564, 1
  %v1067 = vrot.slane %v567, 1
  %v1068 = vsel %vm660, %v1066, %v1067
  %v1069 = vrot.slane %v624, 1
  %v1070 = vrot.slane %v627, 1
  %v1071 = vsel %vm660, %v1069, %v1070
  %1072 = vrot.lane.b32.xlu0 %v669, 28
  %v1073 = vpop.permute.xlu0 %1072
  %1074 = vrot.lane.b32.xlu0 %v672, 28
  %v1075 = vpop.permute.xlu0 %1074
  %1076 = vrot.lane.b32.xlu0 %v675, 28
  %v1077 = vpop.permute.xlu0 %1076
  %1078 = vrot.lane.b32.xlu0 %v678, 28
  %v1079 = vpop.permute.xlu0 %1078
  %1080 = vrot.lane.b32.xlu0 %v681, 28
  %v1081 = vpop.permute.xlu0 %1080
  %1082 = vrot.lane.b32.xlu0 %v684, 28
  %v1083 = vpop.permute.xlu0 %1082
  %1084 = vrot.lane.b32.xlu0 %v908, 28
  %v1085 = vpop.permute.xlu0 %1084
  %1086 = vrot.lane.b32.xlu0 %v1068, 28
  %v1087 = vpop.permute.xlu0 %1086
  %1088 = vrot.lane.b32.xlu0 %v693, 28
  %v1089 = vpop.permute.xlu0 %1088
  %1090 = vrot.lane.b32.xlu0 %v696, 28
  %v1091 = vpop.permute.xlu0 %1090
  %1092 = vrot.lane.b32.xlu0 %v699, 28
  %v1093 = vpop.permute.xlu0 %1092
  %1094 = vrot.lane.b32.xlu0 %v702, 28
  %v1095 = vpop.permute.xlu0 %1094
  %1096 = vrot.lane.b32.xlu0 %v705, 28
  %v1097 = vpop.permute.xlu0 %1096
  %1098 = vrot.lane.b32.xlu0 %v708, 28
  %v1099 = vpop.permute.xlu0 %1098
  %1100 = vrot.lane.b32.xlu0 %v911, 28
  %v1101 = vpop.permute.xlu0 %1100
  %1102 = vrot.lane.b32.xlu0 %v1071, 28
  %v1103 = vpop.permute.xlu0 %1102
  %v1120 = vrot.slane %v564, 2
  %v1121 = vrot.slane %v567, 2
  %v1122 = vsel %vm757, %v1120, %v1121
  %v1123 = vrot.slane %v624, 2
  %v1124 = vrot.slane %v627, 2
  %v1125 = vsel %vm757, %v1123, %v1124
  %1126 = vrot.lane.b32.xlu0 %v766, 32
  %v1127 = vpop.permute.xlu0 %1126
  %1128 = vrot.lane.b32.xlu0 %v769, 32
  %v1129 = vpop.permute.xlu0 %1128
  %1130 = vrot.lane.b32.xlu0 %v772, 32
  %v1131 = vpop.permute.xlu0 %1130
  %1132 = vrot.lane.b32.xlu0 %v775, 32
  %v1133 = vpop.permute.xlu0 %1132
  %1134 = vrot.lane.b32.xlu0 %v778, 32
  %v1135 = vpop.permute.xlu0 %1134
  %1136 = vrot.lane.b32.xlu0 %v781, 32
  %v1137 = vpop.permute.xlu0 %1136
  %1138 = vrot.lane.b32.xlu0 %v962, 32
  %v1139 = vpop.permute.xlu0 %1138
  %1140 = vrot.lane.b32.xlu0 %v1122, 32
  %v1141 = vpop.permute.xlu0 %1140
  %1142 = vrot.lane.b32.xlu0 %v790, 32
  %v1143 = vpop.permute.xlu0 %1142
  %1144 = vrot.lane.b32.xlu0 %v793, 32
  %v1145 = vpop.permute.xlu0 %1144
  %1146 = vrot.lane.b32.xlu0 %v796, 32
  %v1147 = vpop.permute.xlu0 %1146
  %1148 = vrot.lane.b32.xlu0 %v799, 32
  %v1149 = vpop.permute.xlu0 %1148
  %1150 = vrot.lane.b32.xlu0 %v802, 32
  %v1151 = vpop.permute.xlu0 %1150
  %1152 = vrot.lane.b32.xlu0 %v805, 32
  %v1153 = vpop.permute.xlu0 %1152
  %1154 = vrot.lane.b32.xlu0 %v965, 32
  %v1155 = vpop.permute.xlu0 %1154
  %1156 = vrot.lane.b32.xlu0 %v1125, 32
  %v1157 = vpop.permute.xlu0 %1156
  %v1174 = vsel %vm506, %v509, %v710
  %v1175 = vsel %vm506, %v516, %v712
  %v1176 = vsel %vm506, %v522, %v714
  %v1177 = vsel %vm506, %v528, %v716
  %v1178 = vsel %vm506, %v534, %v718
  %v1179 = vsel %vm506, %v540, %v720
  %v1180 = vsel %vm506, %v546, %v722
  %v1181 = vsel %vm506, %v552, %v724
  %v1182 = vsel %vm506, %v570, %v726
  %v1183 = vsel %vm506, %v576, %v728
  %v1184 = vsel %vm506, %v582, %v730
  %v1185 = vsel %vm506, %v588, %v732
  %v1186 = vsel %vm506, %v594, %v734
  %v1187 = vsel %vm506, %v600, %v736
  %v1188 = vsel %vm506, %v606, %v738
  %v1189 = vsel %vm506, %v612, %v740
  %vm1190 = vcmask 64512
  %v1191 = vsel %vm1190, %v1174, %v807
  %v1192 = vsel %vm1190, %v1175, %v809
  %v1193 = vsel %vm1190, %v1176, %v811
  %v1194 = vsel %vm1190, %v1177, %v813
  %v1195 = vsel %vm1190, %v1178, %v815
  %v1196 = vsel %vm1190, %v1179, %v817
  %v1197 = vsel %vm1190, %v1180, %v819
  %v1198 = vsel %vm1190, %v1181, %v821
  %v1199 = vsel %vm1190, %v1182, %v823
  %v1200 = vsel %vm1190, %v1183, %v825
  %v1201 = vsel %vm1190, %v1184, %v827
  %v1202 = vsel %vm1190, %v1185, %v829
  %v1203 = vsel %vm1190, %v1186, %v831
  %v1204 = vsel %vm1190, %v1187, %v833
  %v1205 = vsel %vm1190, %v1188, %v835
  %v1206 = vsel %vm1190, %v1189, %v837
  %vm1207 = vcmask 97280
  %v1208 = vsel %vm1207, %v1191, %v857
  %v1209 = vsel %vm1207, %v1192, %v859
  %v1210 = vsel %vm1207, %v1193, %v861
  %v1211 = vsel %vm1207, %v1194, %v863
  %v1212 = vsel %vm1207, %v1195, %v865
  %v1213 = vsel %vm1207, %v1196, %v867
  %v1214 = vsel %vm1207, %v1197, %v869
  %v1215 = vsel %vm1207, %v1198, %v871
  %v1216 = vsel %vm1207, %v1199, %v873
  %v1217 = vsel %vm1207, %v1200, %v875
  %v1218 = vsel %vm1207, %v1201, %v877
  %v1219 = vsel %vm1207, %v1202, %v879
  %v1220 = vsel %vm1207, %v1203, %v881
  %v1221 = vsel %vm1207, %v1204, %v883
  %v1222 = vsel %vm1207, %v1205, %v885
  %v1223 = vsel %vm1207, %v1206, %v887
  %vm1224 = vcmask 130048
  %v1225 = vsel %vm1224, %v1208, %v913
  %v1226 = vsel %vm1224, %v1209, %v915
  %v1227 = vsel %vm1224, %v1210, %v917
  %v1228 = vsel %vm1224, %v1211, %v919
  %v1229 = vsel %vm1224, %v1212, %v921
  %v1230 = vsel %vm1224, %v1213, %v923
  %v1231 = vsel %vm1224, %v1214, %v925
  %v1232 = vsel %vm1224, %v1215, %v927
  %v1233 = vsel %vm1224, %v1216, %v929
  %v1234 = vsel %vm1224, %v1217, %v931
  %v1235 = vsel %vm1224, %v1218, %v933
  %v1236 = vsel %vm1224, %v1219, %v935
  %v1237 = vsel %vm1224, %v1220, %v937
  %v1238 = vsel %vm1224, %v1221, %v939
  %v1239 = vsel %vm1224, %v1222, %v941
  %v1240 = vsel %vm1224, %v1223, %v943
  %vm1241 = vcmask 162816
  %v1242 = vsel %vm1241, %v1225, %v967
  %v1243 = vsel %vm1241, %v1226, %v969
  %v1244 = vsel %vm1241, %v1227, %v971
  %v1245 = vsel %vm1241, %v1228, %v973
  %v1246 = vsel %vm1241, %v1229, %v975
  %v1247 = vsel %vm1241, %v1230, %v977
  %v1248 = vsel %vm1241, %v1231, %v979
  %v1249 = vsel %vm1241, %v1232, %v981
  %v1250 = vsel %vm1241, %v1233, %v983
  %v1251 = vsel %vm1241, %v1234, %v985
  %v1252 = vsel %vm1241, %v1235, %v987
  %v1253 = vsel %vm1241, %v1236, %v989
  %v1254 = vsel %vm1241, %v1237, %v991
  %v1255 = vsel %vm1241, %v1238, %v993
  %v1256 = vsel %vm1241, %v1239, %v995
  %v1257 = vsel %vm1241, %v1240, %v997
  %vm1258 = vcmask 195584
  %v1259 = vsel %vm1258, %v1242, %v1017
  %v1260 = vsel %vm1258, %v1243, %v1019
  %v1261 = vsel %vm1258, %v1244, %v1021
  %v1262 = vsel %vm1258, %v1245, %v1023
  %v1263 = vsel %vm1258, %v1246, %v1025
  %v1264 = vsel %vm1258, %v1247, %v1027
  %v1265 = vsel %vm1258, %v1248, %v1029
  %v1266 = vsel %vm1258, %v1249, %v1031
  %v1267 = vsel %vm1258, %v1250, %v1033
  %v1268 = vsel %vm1258, %v1251, %v1035
  %v1269 = vsel %vm1258, %v1252, %v1037
  %v1270 = vsel %vm1258, %v1253, %v1039
  %v1271 = vsel %vm1258, %v1254, %v1041
  %v1272 = vsel %vm1258, %v1255, %v1043
  %v1273 = vsel %vm1258, %v1256, %v1045
  %v1274 = vsel %vm1258, %v1257, %v1047
  %vm1275 = vcmask 228352
  %v1276 = vsel %vm1275, %v1259, %v1073
  %v1277 = vsel %vm1275, %v1260, %v1075
  %v1278 = vsel %vm1275, %v1261, %v1077
  %v1279 = vsel %vm1275, %v1262, %v1079
  %v1280 = vsel %vm1275, %v1263, %v1081
  %v1281 = vsel %vm1275, %v1264, %v1083
  %v1282 = vsel %vm1275, %v1265, %v1085
  %v1283 = vsel %vm1275, %v1266, %v1087
  %v1284 = vsel %vm1275, %v1267, %v1089
  %v1285 = vsel %vm1275, %v1268, %v1091
  %v1286 = vsel %vm1275, %v1269, %v1093
  %v1287 = vsel %vm1275, %v1270, %v1095
  %v1288 = vsel %vm1275, %v1271, %v1097
  %v1289 = vsel %vm1275, %v1272, %v1099
  %v1290 = vsel %vm1275, %v1273, %v1101
  %v1291 = vsel %vm1275, %v1274, %v1103
  %vm1292 = vcmask 261120
  %v1293 = vsel %vm1292, %v1276, %v1127
  %v1294 = vsel %vm1292, %v1277, %v1129
  %v1295 = vsel %vm1292, %v1278, %v1131
  %v1296 = vsel %vm1292, %v1279, %v1133
  %v1297 = vsel %vm1292, %v1280, %v1135
  %v1298 = vsel %vm1292, %v1281, %v1137
  %v1299 = vsel %vm1292, %v1282, %v1139
  %v1300 = vsel %vm1292, %v1283, %v1141
  %v1301 = vsel %vm1292, %v1284, %v1143
  %v1302 = vsel %vm1292, %v1285, %v1145
  %v1303 = vsel %vm1292, %v1286, %v1147
  %v1304 = vsel %vm1292, %v1287, %v1149
  %v1305 = vsel %vm1292, %v1288, %v1151
  %v1306 = vsel %vm1292, %v1289, %v1153
  %v1307 = vsel %vm1292, %v1290, %v1155
  %v1308 = vsel %vm1292, %v1291, %v1157
  %v1309 = vld [vmem:[%s1] sm:$0xff]
  %v1310 = vld [vmem:[%s1 + $0x8] sm:$0xff]
  %v1311 = vld [vmem:[%s1 + $0x10] sm:$0xff]
  %v1312 = vld [vmem:[%s1 + $0x18] sm:$0xff]
  %v1313 = vld [vmem:[%s1 + $0x20] sm:$0xf]
  %vm1314 = vcmask 293888
  %v1316 = vsel %vm1314, %v1293, 0
  %v1319 = vsel %vm1314, %v1294, 0
  %v1322 = vsel %vm1314, %v1295, 0
  %v1325 = vsel %vm1314, %v1296, 0
  %v1328 = vsel %vm1314, %v1297, 0
  %v1331 = vsel %vm1314, %v1298, 0
  %v1334 = vsel %vm1314, %v1299, 0
  %v1337 = vsel %vm1314, %v1300, 0
  %v1340 = vsel %vm1314, %v1301, 0
  %v1343 = vsel %vm1314, %v1302, 0
  %v1346 = vsel %vm1314, %v1303, 0
  %v1349 = vsel %vm1314, %v1304, 0
  %v1352 = vsel %vm1314, %v1305, 0
  %v1355 = vsel %vm1314, %v1306, 0
  %v1358 = vsel %vm1314, %v1307, 0
  %v1361 = vsel %vm1314, %v1308, 0
  %vm1363 = vcmask 1043456
  %v1365 = vsel %vm1363, %v1313, 0
  %1367 = vmatprep.subr.mxu0 0.0
  %v1368 = vand.u32 %v1309, 4294901760
  %1369 = vmatpush1.msra.mxu0 %v1368
  %1370 = vmatprep.subr.mxu0 0.0
  %v1371 = vand.u32 %v1310, 4294901760
  %1372 = vmatpush1.msra.mxu0 %v1371
  %1373 = vmatprep.subr.mxu0 0.0
  %v1374 = vand.u32 %v1311, 4294901760
  %1375 = vmatpush1.msra.mxu0 %v1374
  %1376 = vmatprep.subr.mxu0 0.0
  %v1377 = vand.u32 %v1312, 4294901760
  %1378 = vmatpush1.msra.mxu0 %v1377
  %1379 = vmatprep.subr.mxu0 0.0
  %v1380 = vand.u32 %v1365, 4294901760
  %1381 = vmatpush1.msra.mxu0 %v1380
  %1382 = vmatprep.subr.mxu0 0.0
  %1383 = vmatpush1.msra.mxu0 0.0
  %1384 = vmatprep.subr.mxu0 0.0
  %1385 = vmatpush1.msra.mxu0 0.0
  %1386 = vmatprep.subr.mxu0 0.0
  %1387 = vmatpush1.msra.mxu0 0.0
  %1388 = vmatprep.subr.mxu0 0.0
  %1389 = vmatpush1.msra.mxu0 0.0
  %1390 = vmatprep.subr.mxu0 0.0
  %1391 = vmatpush1.msra.mxu0 0.0
  %1392 = vmatprep.subr.mxu0 0.0
  %1393 = vmatpush1.msra.mxu0 0.0
  %1394 = vmatprep.subr.mxu0 0.0
  %1395 = vmatpush1.msra.mxu0 0.0
  %1396 = vmatprep.subr.mxu0 0.0
  %1397 = vmatpush1.msra.mxu0 0.0
  %1398 = vmatprep.subr.mxu0 0.0
  %1399 = vmatpush1.msra.mxu0 0.0
  %1400 = vmatprep.subr.mxu0 0.0
  %1401 = vmatpush1.msra.mxu0 0.0
  %1402 = vmatprep.subr.mxu0 0.0
  %1403 = vmatpush1.msra.mxu0 0.0
  %1404 = vmatprep.subr.mxu0 0.0
  %1405 = vmatpush1.msra.mxu0 0.0
  %1406 = vmatprep.subr.mxu0 0.0
  %1407 = vmatpush1.msra.mxu0 0.0
  %1408 = vmatprep.subr.mxu0 0.0
  %1409 = vmatpush1.msra.mxu0 0.0
  %1410 = vmatprep.subr.mxu0 0.0
  %1411 = vmatpush1.msra.mxu0 0.0
  %1412 = vmatprep.subr.mxu0 0.0
  %1413 = vmatpush1.msra.mxu0 0.0
  %1414 = vmatprep.subr.mxu0 0.0
  %1415 = vmatpush1.msra.mxu0 0.0
  %1416 = vmatprep.subr.mxu0 0.0
  %1417 = vmatpush1.msra.mxu0 0.0
  %1418 = vmatprep.subr.mxu0 0.0
  %1419 = vmatpush1.msra.mxu0 0.0
  %1420 = vmatprep.subr.mxu0 0.0
  %1421 = vmatpush1.msra.mxu0 0.0
  %1422 = vmatprep.subr.mxu0 0.0
  %1423 = vmatpush1.msra.mxu0 0.0
  %1424 = vmatprep.subr.mxu0 0.0
  %1425 = vmatpush1.msra.mxu0 0.0
  %1426 = vmatprep.subr.mxu0 0.0
  %1427 = vmatpush1.msra.mxu0 0.0
  %1428 = vmatprep.subr.mxu0 0.0
  %1429 = vmatpush1.msra.mxu0 0.0
  %1430 = vmatprep.subr.mxu0 0.0
  %1431 = vmatpush1.msra.mxu0 0.0
  %1432 = vmatprep.subr.mxu0 0.0
  %1433 = vmatpush1.msra.mxu0 0.0
  %1434 = vmatprep.subr.mxu0 0.0
  %1435 = vmatpush1.msra.mxu0 0.0
  %1436 = vmatprep.mubr.f32.mxu0 0.0
  %v1437 = vand.u32 %v1316, 4294901760
  %v1438 = vsub.f32 %v1316, %v1437
  %v1439 = vand.u32 %v1438, 4294901760
  %v1440 = vsub.f32 %v1438, %v1439
  %v1441 = vand.u32 %v1440, 4294901760
  %1442 = vmatmul.mubr.f32.gmra.mrb[0].mxu0 %v1441
  %v1443 = vpop.f32.mrb[0].mxu0
  %v1444 = vadd.f32 0.0, %v1443
  %v1445 = vpop.f32.mrb[0].mxu0
  %1446 = vmatprep.mubr.f32.mxu0 0.0
  %v1447 = vand.u32 %v1319, 4294901760
  %v1448 = vsub.f32 %v1319, %v1447
  %v1449 = vand.u32 %v1448, 4294901760
  %v1450 = vsub.f32 %v1448, %v1449
  %v1451 = vand.u32 %v1450, 4294901760
  %1452 = vmatmul.mubr.f32.gmra.mrb[0].mxu0 %v1451
  %v1453 = vpop.f32.mrb[0].mxu0
  %v1454 = vadd.f32 0.0, %v1453
  %v1455 = vpop.f32.mrb[0].mxu0
  %1456 = vmatprep.mubr.f32.mxu0 0.0
  %v1457 = vand.u32 %v1322, 4294901760
  %v1458 = vsub.f32 %v1322, %v1457
  %v1459 = vand.u32 %v1458, 4294901760
  %v1460 = vsub.f32 %v1458, %v1459
  %v1461 = vand.u32 %v1460, 4294901760
  %1462 = vmatmul.mubr.f32.gmra.mrb[0].mxu0 %v1461
  %v1463 = vpop.f32.mrb[0].mxu0
  %v1464 = vadd.f32 0.0, %v1463
  %v1465 = vpop.f32.mrb[0].mxu0
  %1466 = vmatprep.mubr.f32.mxu0 0.0
  %v1467 = vand.u32 %v1325, 4294901760
  %v1468 = vsub.f32 %v1325, %v1467
  %v1469 = vand.u32 %v1468, 4294901760
  %v1470 = vsub.f32 %v1468, %v1469
  %v1471 = vand.u32 %v1470, 4294901760
  %1472 = vmatmul.mubr.f32.gmra.mrb[0].mxu0 %v1471
  %v1473 = vpop.f32.mrb[0].mxu0
  %v1474 = vadd.f32 0.0, %v1473
  %v1475 = vpop.f32.mrb[0].mxu0
  %1476 = vmatprep.mubr.f32.mxu0 0.0
  %v1477 = vand.u32 %v1328, 4294901760
  %v1478 = vsub.f32 %v1328, %v1477
  %v1479 = vand.u32 %v1478, 4294901760
  %v1480 = vsub.f32 %v1478, %v1479
  %v1481 = vand.u32 %v1480, 4294901760
  %1482 = vmatmul.mubr.f32.gmra.mrb[0].mxu0 %v1481
  %v1483 = vpop.f32.mrb[0].mxu0
  %v1484 = vadd.f32 0.0, %v1483
  %v1485 = vpop.f32.mrb[0].mxu0
  %1486 = vmatprep.mubr.f32.mxu0 0.0
  %v1487 = vand.u32 %v1331, 4294901760
  %v1488 = vsub.f32 %v1331, %v1487
  %v1489 = vand.u32 %v1488, 4294901760
  %v1490 = vsub.f32 %v1488, %v1489
  %v1491 = vand.u32 %v1490, 4294901760
  %1492 = vmatmul.mubr.f32.gmra.mrb[0].mxu0 %v1491
  %v1493 = vpop.f32.mrb[0].mxu0
  %v1494 = vadd.f32 0.0, %v1493
  %v1495 = vpop.f32.mrb[0].mxu0
  %1496 = vmatprep.mubr.f32.mxu0 0.0
  %v1497 = vand.u32 %v1334, 4294901760
  %v1498 = vsub.f32 %v1334, %v1497
  %v1499 = vand.u32 %v1498, 4294901760
  %v1500 = vsub.f32 %v1498, %v1499
  %v1501 = vand.u32 %v1500, 4294901760
  %1502 = vmatmul.mubr.f32.gmra.mrb[0].mxu0 %v1501
  %v1503 = vpop.f32.mrb[0].mxu0
  %v1504 = vadd.f32 0.0, %v1503
  %v1505 = vpop.f32.mrb[0].mxu0
  %1506 = vmatprep.mubr.f32.mxu0 0.0
  %v1507 = vand.u32 %v1337, 4294901760
  %v1508 = vsub.f32 %v1337, %v1507
  %v1509 = vand.u32 %v1508, 4294901760
  %v1510 = vsub.f32 %v1508, %v1509
  %v1511 = vand.u32 %v1510, 4294901760
  %1512 = vmatmul.mubr.f32.gmra.mrb[0].mxu0 %v1511
  %v1513 = vpop.f32.mrb[0].mxu0
  %v1514 = vadd.f32 0.0, %v1513
  %v1515 = vpop.f32.mrb[0].mxu0
  %1516 = vmatprep.mubr.f32.mxu0 0.0
  %v1517 = vand.u32 %v1340, 4294901760
  %v1518 = vsub.f32 %v1340, %v1517
  %v1519 = vand.u32 %v1518, 4294901760
  %v1520 = vsub.f32 %v1518, %v1519
  %v1521 = vand.u32 %v1520, 4294901760
  %1522 = vmatmul.mubr.f32.gmra.mrb[0].mxu0 %v1521
  %v1523 = vpop.f32.mrb[0].mxu0
  %v1524 = vadd.f32 0.0, %v1523
  %v1525 = vpop.f32.mrb[0].mxu0
  %1526 = vmatprep.mubr.f32.mxu0 0.0
  %v1527 = vand.u32 %v1343, 4294901760
  %v1528 = vsub.f32 %v1343, %v1527
  %v1529 = vand.u32 %v1528, 4294901760
  %v1530 = vsub.f32 %v1528, %v1529
  %v1531 = vand.u32 %v1530, 4294901760
  %1532 = vmatmul.mubr.f32.gmra.mrb[0].mxu0 %v1531
  %v1533 = vpop.f32.mrb[0].mxu0
  %v1534 = vadd.f32 0.0, %v1533
  %v1535 = vpop.f32.mrb[0].mxu0
  %1536 = vmatprep.mubr.f32.mxu0 0.0
  %v1537 = vand.u32 %v1346, 4294901760
  %v1538 = vsub.f32 %v1346, %v1537
  %v1539 = vand.u32 %v1538, 4294901760
  %v1540 = vsub.f32 %v1538, %v1539
  %v1541 = vand.u32 %v1540, 4294901760
  %1542 = vmatmul.mubr.f32.gmra.mrb[0].mxu0 %v1541
  %v1543 = vpop.f32.mrb[0].mxu0
  %v1544 = vadd.f32 0.0, %v1543
  %v1545 = vpop.f32.mrb[0].mxu0
  %1546 = vmatprep.mubr.f32.mxu0 0.0
  %v1547 = vand.u32 %v1349, 4294901760
  %v1548 = vsub.f32 %v1349, %v1547
  %v1549 = vand.u32 %v1548, 4294901760
  %v1550 = vsub.f32 %v1548, %v1549
  %v1551 = vand.u32 %v1550, 4294901760
  %1552 = vmatmul.mubr.f32.gmra.mrb[0].mxu0 %v1551
  %v1553 = vpop.f32.mrb[0].mxu0
  %v1554 = vadd.f32 0.0, %v1553
  %v1555 = vpop.f32.mrb[0].mxu0
  %1556 = vmatprep.mubr.f32.mxu0 0.0
  %v1557 = vand.u32 %v1352, 4294901760
  %v1558 = vsub.f32 %v1352, %v1557
  %v1559 = vand.u32 %v1558, 4294901760
  %v1560 = vsub.f32 %v1558, %v1559
  %v1561 = vand.u32 %v1560, 4294901760
  %1562 = vmatmul.mubr.f32.gmra.mrb[0].mxu0 %v1561
  %v1563 = vpop.f32.mrb[0].mxu0
  %v1564 = vadd.f32 0.0, %v1563
  %v1565 = vpop.f32.mrb[0].mxu0
  %1566 = vmatprep.mubr.f32.mxu0 0.0
  %v1567 = vand.u32 %v1355, 4294901760
  %v1568 = vsub.f32 %v1355, %v1567
  %v1569 = vand.u32 %v1568, 4294901760
  %v1570 = vsub.f32 %v1568, %v1569
  %v1571 = vand.u32 %v1570, 4294901760
  %1572 = vmatmul.mubr.f32.gmra.mrb[0].mxu0 %v1571
  %v1573 = vpop.f32.mrb[0].mxu0
  %v1574 = vadd.f32 0.0, %v1573
  %v1575 = vpop.f32.mrb[0].mxu0
  %1576 = vmatprep.mubr.f32.mxu0 0.0
  %v1577 = vand.u32 %v1358, 4294901760
  %v1578 = vsub.f32 %v1358, %v1577
  %v1579 = vand.u32 %v1578, 4294901760
  %v1580 = vsub.f32 %v1578, %v1579
  %v1581 = vand.u32 %v1580, 4294901760
  %1582 = vmatmul.mubr.f32.gmra.mrb[0].mxu0 %v1581
  %v1583 = vpop.f32.mrb[0].mxu0
  %v1584 = vadd.f32 0.0, %v1583
  %v1585 = vpop.f32.mrb[0].mxu0
  %1586 = vmatprep.mubr.f32.mxu0 0.0
  %v1587 = vand.u32 %v1361, 4294901760
  %v1588 = vsub.f32 %v1361, %v1587
  %v1589 = vand.u32 %v1588, 4294901760
  %v1590 = vsub.f32 %v1588, %v1589
  %v1591 = vand.u32 %v1590, 4294901760
  %1592 = vmatmul.mubr.f32.gmra.mrb[0].mxu0 %v1591
  %v1593 = vpop.f32.mrb[0].mxu0
  %v1594 = vadd.f32 0.0, %v1593
  %v1595 = vpop.f32.mrb[0].mxu0
  %1596 = vdwg.mxu0
  %1597 = vmatprep.subr.mxu0 0.0
  %v1598 = vand.u32 %v1309, 4294901760
  %v1599 = vsub.f32 %v1309, %v1598
  %v1600 = vand.u32 %v1599, 4294901760
  %v1601 = vsub.f32 %v1599, %v1600
  %v1602 = vand.u32 %v1601, 4294901760
  %1603 = vmatpush1.msra.mxu0 %v1602
  %1604 = vmatprep.subr.mxu0 0.0
  %v1605 = vand.u32 %v1310, 4294901760
  %v1606 = vsub.f32 %v1310, %v1605
  %v1607 = vand.u32 %v1606, 4294901760
  %v1608 = vsub.f32 %v1606, %v1607
  %v1609 = vand.u32 %v1608, 4294901760
  %1610 = vmatpush1.msra.mxu0 %v1609
  %1611 = vmatprep.subr.mxu0 0.0
  %v1612 = vand.u32 %v1311, 4294901760
  %v1613 = vsub.f32 %v1311, %v1612
  %v1614 = vand.u32 %v1613, 4294901760
  %v1615 = vsub.f32 %v1613, %v1614
  %v1616 = vand.u32 %v1615, 4294901760
  %1617 = vmatpush1.msra.mxu0 %v1616
  %1618 = vmatprep.subr.mxu0 0.0
  %v1619 = vand.u32 %v1312, 4294901760
  %v1620 = vsub.f32 %v1312, %v1619
  %v1621 = vand.u32 %v1620, 4294901760
  %v1622 = vsub.f32 %v1620, %v1621
  %v1623 = vand.u32 %v1622, 4294901760
  %1624 = vmatpush1.msra.mxu0 %v1623
  %1625 = vmatprep.subr.mxu0 0.0
  %v1626 = vand.u32 %v1365, 4294901760
  %v1627 = vsub.f32 %v1365, %v1626
  %v1628 = vand.u32 %v1627, 4294901760
  %v1629 = vsub.f32 %v1627, %v1628
  %v1630 = vand.u32 %v1629, 4294901760
  %1631 = vmatpush1.msra.mxu0 %v1630
  %1632 = vmatprep.subr.mxu0 0.0
  %1633 = vmatpush1.msra.mxu0 0.0
  %1634 = vmatprep.subr.mxu0 0.0
  %1635 = vmatpush1.msra.mxu0 0.0
  %1636 = vmatprep.subr.mxu0 0.0
  %1637 = vmatpush1.msra.mxu0 0.0
  %1638 = vmatprep.subr.mxu0 0.0
  %1639 = vmatpush1.msra.mxu0 0.0
  %1640 = vmatprep.subr.mxu0 0.0
  %1641 = vmatpush1.msra.mxu0 0.0
  %1642 = vmatprep.subr.mxu0 0.0
  %1643 = vmatpush1.msra.mxu0 0.0
  %1644 = vmatprep.subr.mxu0 0.0
  %1645 = vmatpush1.msra.mxu0 0.0
  %1646 = vmatprep.subr.mxu0 0.0
  %1647 = vmatpush1.msra.mxu0 0.0
  %1648 = vmatprep.subr.mxu0 0.0
  %1649 = vmatpush1.msra.mxu0 0.0
  %1650 = vmatprep.subr.mxu0 0.0
  %1651 = vmatpush1.msra.mxu0 0.0
  %1652 = vmatprep.subr.mxu0 0.0
  %1653 = vmatpush1.msra.mxu0 0.0
  %1654 = vmatprep.subr.mxu0 0.0
  %1655 = vmatpush1.msra.mxu0 0.0
  %1656 = vmatprep.subr.mxu0 0.0
  %1657 = vmatpush1.msra.mxu0 0.0
  %1658 = vmatprep.subr.mxu0 0.0
  %1659 = vmatpush1.msra.mxu0 0.0
  %1660 = vmatprep.subr.mxu0 0.0
  %1661 = vmatpush1.msra.mxu0 0.0
  %1662 = vmatprep.subr.mxu0 0.0
  %1663 = vmatpush1.msra.mxu0 0.0
  %1664 = vmatprep.subr.mxu0 0.0
  %1665 = vmatpush1.msra.mxu0 0.0
  %1666 = vmatprep.subr.mxu0 0.0
  %1667 = vmatpush1.msra.mxu0 0.0
  %1668 = vmatprep.subr.mxu0 0.0
  %1669 = vmatpush1.msra.mxu0 0.0
  %1670 = vmatprep.subr.mxu0 0.0
  %1671 = vmatpush1.msra.mxu0 0.0
  %1672 = vmatprep.subr.mxu0 0.0
  %1673 = vmatpush1.msra.mxu0 0.0
  %1674 = vmatprep.subr.mxu0 0.0
  %1675 = vmatpush1.msra.mxu0 0.0
  %1676 = vmatprep.subr.mxu0 0.0
  %1677 = vmatpush1.msra.mxu0 0.0
  %1678 = vmatprep.subr.mxu0 0.0
  %1679 = vmatpush1.msra.mxu0 0.0
  %1680 = vmatprep.subr.mxu0 0.0
  %1681 = vmatpush1.msra.mxu0 0.0
  %1682 = vmatprep.subr.mxu0 0.0
  %1683 = vmatpush1.msra.mxu0 0.0
  %1684 = vmatprep.subr.mxu0 0.0
  %1685 = vmatpush1.msra.mxu0 0.0
  %1686 = vmatprep.mubr.f32.mxu0 0.0
  %v1687 = vand.u32 %v1316, 4294901760
  %1688 = vmatmul.mubr.f32.gmra.mrb[0].mxu0 %v1687
  %v1689 = vpop.f32.mrb[0].mxu0
  %v1690 = vadd.f32 %v1444, %v1689
  %v1691 = vpop.f32.mrb[0].mxu0
  %1692 = vmatprep.mubr.f32.mxu0 0.0
  %v1693 = vand.u32 %v1319, 4294901760
  %1694 = vmatmul.mubr.f32.gmra.mrb[0].mxu0 %v1693
  %v1695 = vpop.f32.mrb[0].mxu0
  %v1696 = vadd.f32 %v1454, %v1695
  %v1697 = vpop.f32.mrb[0].mxu0
  %1698 = vmatprep.mubr.f32.mxu0 0.0
  %v1699 = vand.u32 %v1322, 4294901760
  %1700 = vmatmul.mubr.f32.gmra.mrb[0].mxu0 %v1699
  %v1701 = vpop.f32.mrb[0].mxu0
  %v1702 = vadd.f32 %v1464, %v1701
  %v1703 = vpop.f32.mrb[0].mxu0
  %1704 = vmatprep.mubr.f32.mxu0 0.0
  %v1705 = vand.u32 %v1325, 4294901760
  %1706 = vmatmul.mubr.f32.gmra.mrb[0].mxu0 %v1705
  %v1707 = vpop.f32.mrb[0].mxu0
  %v1708 = vadd.f32 %v1474, %v1707
  %v1709 = vpop.f32.mrb[0].mxu0
  %1710 = vmatprep.mubr.f32.mxu0 0.0
  %v1711 = vand.u32 %v1328, 4294901760
  %1712 = vmatmul.mubr.f32.gmra.mrb[0].mxu0 %v1711
  %v1713 = vpop.f32.mrb[0].mxu0
  %v1714 = vadd.f32 %v1484, %v1713
  %v1715 = vpop.f32.mrb[0].mxu0
  %1716 = vmatprep.mubr.f32.mxu0 0.0
  %v1717 = vand.u32 %v1331, 4294901760
  %1718 = vmatmul.mubr.f32.gmra.mrb[0].mxu0 %v1717
  %v1719 = vpop.f32.mrb[0].mxu0
  %v1720 = vadd.f32 %v1494, %v1719
  %v1721 = vpop.f32.mrb[0].mxu0
  %1722 = vmatprep.mubr.f32.mxu0 0.0
  %v1723 = vand.u32 %v1334, 4294901760
  %1724 = vmatmul.mubr.f32.gmra.mrb[0].mxu0 %v1723
  %v1725 = vpop.f32.mrb[0].mxu0
  %v1726 = vadd.f32 %v1504, %v1725
  %v1727 = vpop.f32.mrb[0].mxu0
  %1728 = vmatprep.mubr.f32.mxu0 0.0
  %v1729 = vand.u32 %v1337, 4294901760
  %1730 = vmatmul.mubr.f32.gmra.mrb[0].mxu0 %v1729
  %v1731 = vpop.f32.mrb[0].mxu0
  %v1732 = vadd.f32 %v1514, %v1731
  %v1733 = vpop.f32.mrb[0].mxu0
  %1734 = vmatprep.mubr.f32.mxu0 0.0
  %v1735 = vand.u32 %v1340, 4294901760
  %1736 = vmatmul.mubr.f32.gmra.mrb[0].mxu0 %v1735
  %v1737 = vpop.f32.mrb[0].mxu0
  %v1738 = vadd.f32 %v1524, %v1737
  %v1739 = vpop.f32.mrb[0].mxu0
  %1740 = vmatprep.mubr.f32.mxu0 0.0
  %v1741 = vand.u32 %v1343, 4294901760
  %1742 = vmatmul.mubr.f32.gmra.mrb[0].mxu0 %v1741
  %v1743 = vpop.f32.mrb[0].mxu0
  %v1744 = vadd.f32 %v1534, %v1743
  %v1745 = vpop.f32.mrb[0].mxu0
  %1746 = vmatprep.mubr.f32.mxu0 0.0
  %v1747 = vand.u32 %v1346, 4294901760
  %1748 = vmatmul.mubr.f32.gmra.mrb[0].mxu0 %v1747
  %v1749 = vpop.f32.mrb[0].mxu0
  %v1750 = vadd.f32 %v1544, %v1749
  %v1751 = vpop.f32.mrb[0].mxu0
  %1752 = vmatprep.mubr.f32.mxu0 0.0
  %v1753 = vand.u32 %v1349, 4294901760
  %1754 = vmatmul.mubr.f32.gmra.mrb[0].mxu0 %v1753
  %v1755 = vpop.f32.mrb[0].mxu0
  %v1756 = vadd.f32 %v1554, %v1755
  %v1757 = vpop.f32.mrb[0].mxu0
  %1758 = vmatprep.mubr.f32.mxu0 0.0
  %v1759 = vand.u32 %v1352, 4294901760
  %1760 = vmatmul.mubr.f32.gmra.mrb[0].mxu0 %v1759
  %v1761 = vpop.f32.mrb[0].mxu0
  %v1762 = vadd.f32 %v1564, %v1761
  %v1763 = vpop.f32.mrb[0].mxu0
  %1764 = vmatprep.mubr.f32.mxu0 0.0
  %v1765 = vand.u32 %v1355, 4294901760
  %1766 = vmatmul.mubr.f32.gmra.mrb[0].mxu0 %v1765
  %v1767 = vpop.f32.mrb[0].mxu0
  %v1768 = vadd.f32 %v1574, %v1767
  %v1769 = vpop.f32.mrb[0].mxu0
  %1770 = vmatprep.mubr.f32.mxu0 0.0
  %v1771 = vand.u32 %v1358, 4294901760
  %1772 = vmatmul.mubr.f32.gmra.mrb[0].mxu0 %v1771
  %v1773 = vpop.f32.mrb[0].mxu0
  %v1774 = vadd.f32 %v1584, %v1773
  %v1775 = vpop.f32.mrb[0].mxu0
  %1776 = vmatprep.mubr.f32.mxu0 0.0
  %v1777 = vand.u32 %v1361, 4294901760
  %1778 = vmatmul.mubr.f32.gmra.mrb[0].mxu0 %v1777
  %v1779 = vpop.f32.mrb[0].mxu0
  %v1780 = vadd.f32 %v1594, %v1779
  %v1781 = vpop.f32.mrb[0].mxu0
  %1782 = vdwg.mxu0
  %1783 = vmatprep.subr.mxu0 0.0
  %v1784 = vand.u32 %v1309, 4294901760
  %v1785 = vsub.f32 %v1309, %v1784
  %1786 = vmatpush1.msra.mxu0 %v1785
  %1787 = vmatprep.subr.mxu0 0.0
  %v1788 = vand.u32 %v1310, 4294901760
  %v1789 = vsub.f32 %v1310, %v1788
  %1790 = vmatpush1.msra.mxu0 %v1789
  %1791 = vmatprep.subr.mxu0 0.0
  %v1792 = vand.u32 %v1311, 4294901760
  %v1793 = vsub.f32 %v1311, %v1792
  %1794 = vmatpush1.msra.mxu0 %v1793
  %1795 = vmatprep.subr.mxu0 0.0
  %v1796 = vand.u32 %v1312, 4294901760
  %v1797 = vsub.f32 %v1312, %v1796
  %1798 = vmatpush1.msra.mxu0 %v1797
  %1799 = vmatprep.subr.mxu0 0.0
  %v1800 = vand.u32 %v1365, 4294901760
  %v1801 = vsub.f32 %v1365, %v1800
  %1802 = vmatpush1.msra.mxu0 %v1801
  %1803 = vmatprep.subr.mxu0 0.0
  %1804 = vmatpush1.msra.mxu0 0.0
  %1805 = vmatprep.subr.mxu0 0.0
  %1806 = vmatpush1.msra.mxu0 0.0
  %1807 = vmatprep.subr.mxu0 0.0
  %1808 = vmatpush1.msra.mxu0 0.0
  %1809 = vmatprep.subr.mxu0 0.0
  %1810 = vmatpush1.msra.mxu0 0.0
  %1811 = vmatprep.subr.mxu0 0.0
  %1812 = vmatpush1.msra.mxu0 0.0
  %1813 = vmatprep.subr.mxu0 0.0
  %1814 = vmatpush1.msra.mxu0 0.0
  %1815 = vmatprep.subr.mxu0 0.0
  %1816 = vmatpush1.msra.mxu0 0.0
  %1817 = vmatprep.subr.mxu0 0.0
  %1818 = vmatpush1.msra.mxu0 0.0
  %1819 = vmatprep.subr.mxu0 0.0
  %1820 = vmatpush1.msra.mxu0 0.0
  %1821 = vmatprep.subr.mxu0 0.0
  %1822 = vmatpush1.msra.mxu0 0.0
  %1823 = vmatprep.subr.mxu0 0.0
  %1824 = vmatpush1.msra.mxu0 0.0
  %1825 = vmatprep.subr.mxu0 0.0
  %1826 = vmatpush1.msra.mxu0 0.0
  %1827 = vmatprep.subr.mxu0 0.0
  %1828 = vmatpush1.msra.mxu0 0.0
  %1829 = vmatprep.subr.mxu0 0.0
  %1830 = vmatpush1.msra.mxu0 0.0
  %1831 = vmatprep.subr.mxu0 0.0
  %1832 = vmatpush1.msra.mxu0 0.0
  %1833 = vmatprep.subr.mxu0 0.0
  %1834 = vmatpush1.msra.mxu0 0.0
  %1835 = vmatprep.subr.mxu0 0.0
  %1836 = vmatpush1.msra.mxu0 0.0
  %1837 = vmatprep.subr.mxu0 0.0
  %1838 = vmatpush1.msra.mxu0 0.0
  %1839 = vmatprep.subr.mxu0 0.0
  %1840 = vmatpush1.msra.mxu0 0.0
  %1841 = vmatprep.subr.mxu0 0.0
  %1842 = vmatpush1.msra.mxu0 0.0
  %1843 = vmatprep.subr.mxu0 0.0
  %1844 = vmatpush1.msra.mxu0 0.0
  %1845 = vmatprep.subr.mxu0 0.0
  %1846 = vmatpush1.msra.mxu0 0.0
  %1847 = vmatprep.subr.mxu0 0.0
  %1848 = vmatpush1.msra.mxu0 0.0
  %1849 = vmatprep.subr.mxu0 0.0
  %1850 = vmatpush1.msra.mxu0 0.0
  %1851 = vmatprep.subr.mxu0 0.0
  %1852 = vmatpush1.msra.mxu0 0.0
  %1853 = vmatprep.subr.mxu0 0.0
  %1854 = vmatpush1.msra.mxu0 0.0
  %1855 = vmatprep.subr.mxu0 0.0
  %1856 = vmatpush1.msra.mxu0 0.0
  %1857 = vmatprep.mubr.f32.mxu0 0.0
  %v1858 = vand.u32 %v1316, 4294901760
  %v1859 = vsub.f32 %v1316, %v1858
  %1860 = vmatmul.mubr.f32.gmra.mrb[0].mxu0 %v1859
  %v1861 = vpop.f32.mrb[0].mxu0
  %v1862 = vadd.f32 %v1690, %v1861
  %v1863 = vpop.f32.mrb[0].mxu0
  %1864 = vmatprep.mubr.f32.mxu0 0.0
  %v1865 = vand.u32 %v1319, 4294901760
  %v1866 = vsub.f32 %v1319, %v1865
  %1867 = vmatmul.mubr.f32.gmra.mrb[0].mxu0 %v1866
  %v1868 = vpop.f32.mrb[0].mxu0
  %v1869 = vadd.f32 %v1696, %v1868
  %v1870 = vpop.f32.mrb[0].mxu0
  %1871 = vmatprep.mubr.f32.mxu0 0.0
  %v1872 = vand.u32 %v1322, 4294901760
  %v1873 = vsub.f32 %v1322, %v1872
  %1874 = vmatmul.mubr.f32.gmra.mrb[0].mxu0 %v1873
  %v1875 = vpop.f32.mrb[0].mxu0
  %v1876 = vadd.f32 %v1702, %v1875
  %v1877 = vpop.f32.mrb[0].mxu0
  %1878 = vmatprep.mubr.f32.mxu0 0.0
  %v1879 = vand.u32 %v1325, 4294901760
  %v1880 = vsub.f32 %v1325, %v1879
  %1881 = vmatmul.mubr.f32.gmra.mrb[0].mxu0 %v1880
  %v1882 = vpop.f32.mrb[0].mxu0
  %v1883 = vadd.f32 %v1708, %v1882
  %v1884 = vpop.f32.mrb[0].mxu0
  %1885 = vmatprep.mubr.f32.mxu0 0.0
  %v1886 = vand.u32 %v1328, 4294901760
  %v1887 = vsub.f32 %v1328, %v1886
  %1888 = vmatmul.mubr.f32.gmra.mrb[0].mxu0 %v1887
  %v1889 = vpop.f32.mrb[0].mxu0
  %v1890 = vadd.f32 %v1714, %v1889
  %v1891 = vpop.f32.mrb[0].mxu0
  %1892 = vmatprep.mubr.f32.mxu0 0.0
  %v1893 = vand.u32 %v1331, 4294901760
  %v1894 = vsub.f32 %v1331, %v1893
  %1895 = vmatmul.mubr.f32.gmra.mrb[0].mxu0 %v1894
  %v1896 = vpop.f32.mrb[0].mxu0
  %v1897 = vadd.f32 %v1720, %v1896
  %v1898 = vpop.f32.mrb[0].mxu0
  %1899 = vmatprep.mubr.f32.mxu0 0.0
  %v1900 = vand.u32 %v1334, 4294901760
  %v1901 = vsub.f32 %v1334, %v1900
  %1902 = vmatmul.mubr.f32.gmra.mrb[0].mxu0 %v1901
  %v1903 = vpop.f32.mrb[0].mxu0
  %v1904 = vadd.f32 %v1726, %v1903
  %v1905 = vpop.f32.mrb[0].mxu0
  %1906 = vmatprep.mubr.f32.mxu0 0.0
  %v1907 = vand.u32 %v1337, 4294901760
  %v1908 = vsub.f32 %v1337, %v1907
  %1909 = vmatmul.mubr.f32.gmra.mrb[0].mxu0 %v1908
  %v1910 = vpop.f32.mrb[0].mxu0
  %v1911 = vadd.f32 %v1732, %v1910
  %v1912 = vpop.f32.mrb[0].mxu0
  %1913 = vmatprep.mubr.f32.mxu0 0.0
  %v1914 = vand.u32 %v1340, 4294901760
  %v1915 = vsub.f32 %v1340, %v1914
  %1916 = vmatmul.mubr.f32.gmra.mrb[0].mxu0 %v1915
  %v1917 = vpop.f32.mrb[0].mxu0
  %v1918 = vadd.f32 %v1738, %v1917
  %v1919 = vpop.f32.mrb[0].mxu0
  %1920 = vmatprep.mubr.f32.mxu0 0.0
  %v1921 = vand.u32 %v1343, 4294901760
  %v1922 = vsub.f32 %v1343, %v1921
  %1923 = vmatmul.mubr.f32.gmra.mrb[0].mxu0 %v1922
  %v1924 = vpop.f32.mrb[0].mxu0
  %v1925 = vadd.f32 %v1744, %v1924
  %v1926 = vpop.f32.mrb[0].mxu0
  %1927 = vmatprep.mubr.f32.mxu0 0.0
  %v1928 = vand.u32 %v1346, 4294901760
  %v1929 = vsub.f32 %v1346, %v1928
  %1930 = vmatmul.mubr.f32.gmra.mrb[0].mxu0 %v1929
  %v1931 = vpop.f32.mrb[0].mxu0
  %v1932 = vadd.f32 %v1750, %v1931
  %v1933 = vpop.f32.mrb[0].mxu0
  %1934 = vmatprep.mubr.f32.mxu0 0.0
  %v1935 = vand.u32 %v1349, 4294901760
  %v1936 = vsub.f32 %v1349, %v1935
  %1937 = vmatmul.mubr.f32.gmra.mrb[0].mxu0 %v1936
  %v1938 = vpop.f32.mrb[0].mxu0
  %v1939 = vadd.f32 %v1756, %v1938
  %v1940 = vpop.f32.mrb[0].mxu0
  %1941 = vmatprep.mubr.f32.mxu0 0.0
  %v1942 = vand.u32 %v1352, 4294901760
  %v1943 = vsub.f32 %v1352, %v1942
  %1944 = vmatmul.mubr.f32.gmra.mrb[0].mxu0 %v1943
  %v1945 = vpop.f32.mrb[0].mxu0
  %v1946 = vadd.f32 %v1762, %v1945
  %v1947 = vpop.f32.mrb[0].mxu0
  %1948 = vmatprep.mubr.f32.mxu0 0.0
  %v1949 = vand.u32 %v1355, 4294901760
  %v1950 = vsub.f32 %v1355, %v1949
  %1951 = vmatmul.mubr.f32.gmra.mrb[0].mxu0 %v1950
  %v1952 = vpop.f32.mrb[0].mxu0
  %v1953 = vadd.f32 %v1768, %v1952
  %v1954 = vpop.f32.mrb[0].mxu0
  %1955 = vmatprep.mubr.f32.mxu0 0.0
  %v1956 = vand.u32 %v1358, 4294901760
  %v1957 = vsub.f32 %v1358, %v1956
  %1958 = vmatmul.mubr.f32.gmra.mrb[0].mxu0 %v1957
  %v1959 = vpop.f32.mrb[0].mxu0
  %v1960 = vadd.f32 %v1774, %v1959
  %v1961 = vpop.f32.mrb[0].mxu0
  %1962 = vmatprep.mubr.f32.mxu0 0.0
  %v1963 = vand.u32 %v1361, 4294901760
  %v1964 = vsub.f32 %v1361, %v1963
  %1965 = vmatmul.mubr.f32.gmra.mrb[0].mxu0 %v1964
  %v1966 = vpop.f32.mrb[0].mxu0
  %v1967 = vadd.f32 %v1780, %v1966
  %v1968 = vpop.f32.mrb[0].mxu0
  %1969 = vdwg.mxu0
  %1970 = vmatprep.subr.mxu0 0.0
  %v1971 = vand.u32 %v1309, 4294901760
  %1972 = vmatpush1.msra.mxu0 %v1971
  %1973 = vmatprep.subr.mxu0 0.0
  %v1974 = vand.u32 %v1310, 4294901760
  %1975 = vmatpush1.msra.mxu0 %v1974
  %1976 = vmatprep.subr.mxu0 0.0
  %v1977 = vand.u32 %v1311, 4294901760
  %1978 = vmatpush1.msra.mxu0 %v1977
  %1979 = vmatprep.subr.mxu0 0.0
  %v1980 = vand.u32 %v1312, 4294901760
  %1981 = vmatpush1.msra.mxu0 %v1980
  %1982 = vmatprep.subr.mxu0 0.0
  %v1983 = vand.u32 %v1365, 4294901760
  %1984 = vmatpush1.msra.mxu0 %v1983
  %1985 = vmatprep.subr.mxu0 0.0
  %1986 = vmatpush1.msra.mxu0 0.0
  %1987 = vmatprep.subr.mxu0 0.0
  %1988 = vmatpush1.msra.mxu0 0.0
  %1989 = vmatprep.subr.mxu0 0.0
  %1990 = vmatpush1.msra.mxu0 0.0
  %1991 = vmatprep.subr.mxu0 0.0
  %1992 = vmatpush1.msra.mxu0 0.0
  %1993 = vmatprep.subr.mxu0 0.0
  %1994 = vmatpush1.msra.mxu0 0.0
  %1995 = vmatprep.subr.mxu0 0.0
  %1996 = vmatpush1.msra.mxu0 0.0
  %1997 = vmatprep.subr.mxu0 0.0
  %1998 = vmatpush1.msra.mxu0 0.0
  %1999 = vmatprep.subr.mxu0 0.0
  %2000 = vmatpush1.msra.mxu0 0.0
  %2001 = vmatprep.subr.mxu0 0.0
  %2002 = vmatpush1.msra.mxu0 0.0
  %2003 = vmatprep.subr.mxu0 0.0
  %2004 = vmatpush1.msra.mxu0 0.0
  %2005 = vmatprep.subr.mxu0 0.0
  %2006 = vmatpush1.msra.mxu0 0.0
  %2007 = vmatprep.subr.mxu0 0.0
  %2008 = vmatpush1.msra.mxu0 0.0
  %2009 = vmatprep.subr.mxu0 0.0
  %2010 = vmatpush1.msra.mxu0 0.0
  %2011 = vmatprep.subr.mxu0 0.0
  %2012 = vmatpush1.msra.mxu0 0.0
  %2013 = vmatprep.subr.mxu0 0.0
  %2014 = vmatpush1.msra.mxu0 0.0
  %2015 = vmatprep.subr.mxu0 0.0
  %2016 = vmatpush1.msra.mxu0 0.0
  %2017 = vmatprep.subr.mxu0 0.0
  %2018 = vmatpush1.msra.mxu0 0.0
  %2019 = vmatprep.subr.mxu0 0.0
  %2020 = vmatpush1.msra.mxu0 0.0
  %2021 = vmatprep.subr.mxu0 0.0
  %2022 = vmatpush1.msra.mxu0 0.0
  %2023 = vmatprep.subr.mxu0 0.0
  %2024 = vmatpush1.msra.mxu0 0.0
  %2025 = vmatprep.subr.mxu0 0.0
  %2026 = vmatpush1.msra.mxu0 0.0
  %2027 = vmatprep.subr.mxu0 0.0
  %2028 = vmatpush1.msra.mxu0 0.0
  %2029 = vmatprep.subr.mxu0 0.0
  %2030 = vmatpush1.msra.mxu0 0.0
  %2031 = vmatprep.subr.mxu0 0.0
  %2032 = vmatpush1.msra.mxu0 0.0
  %2033 = vmatprep.subr.mxu0 0.0
  %2034 = vmatpush1.msra.mxu0 0.0
  %2035 = vmatprep.subr.mxu0 0.0
  %2036 = vmatpush1.msra.mxu0 0.0
  %2037 = vmatprep.subr.mxu0 0.0
  %2038 = vmatpush1.msra.mxu0 0.0
  %2039 = vmatprep.mubr.f32.mxu0 0.0
  %v2040 = vand.u32 %v1316, 4294901760
  %v2041 = vsub.f32 %v1316, %v2040
  %v2042 = vand.u32 %v2041, 4294901760
  %2043 = vmatmul.mubr.f32.gmra.mrb[0].mxu0 %v2042
  %v2044 = vpop.f32.mrb[0].mxu0
  %v2045 = vadd.f32 %v1862, %v2044
  %v2046 = vpop.f32.mrb[0].mxu0
  %2047 = vmatprep.mubr.f32.mxu0 0.0
  %v2048 = vand.u32 %v1319, 4294901760
  %v2049 = vsub.f32 %v1319, %v2048
  %v2050 = vand.u32 %v2049, 4294901760
  %2051 = vmatmul.mubr.f32.gmra.mrb[0].mxu0 %v2050
  %v2052 = vpop.f32.mrb[0].mxu0
  %v2053 = vadd.f32 %v1869, %v2052
  %v2054 = vpop.f32.mrb[0].mxu0
  %2055 = vmatprep.mubr.f32.mxu0 0.0
  %v2056 = vand.u32 %v1322, 4294901760
  %v2057 = vsub.f32 %v1322, %v2056
  %v2058 = vand.u32 %v2057, 4294901760
  %2059 = vmatmul.mubr.f32.gmra.mrb[0].mxu0 %v2058
  %v2060 = vpop.f32.mrb[0].mxu0
  %v2061 = vadd.f32 %v1876, %v2060
  %v2062 = vpop.f32.mrb[0].mxu0
  %2063 = vmatprep.mubr.f32.mxu0 0.0
  %v2064 = vand.u32 %v1325, 4294901760
  %v2065 = vsub.f32 %v1325, %v2064
  %v2066 = vand.u32 %v2065, 4294901760
  %2067 = vmatmul.mubr.f32.gmra.mrb[0].mxu0 %v2066
  %v2068 = vpop.f32.mrb[0].mxu0
  %v2069 = vadd.f32 %v1883, %v2068
  %v2070 = vpop.f32.mrb[0].mxu0
  %2071 = vmatprep.mubr.f32.mxu0 0.0
  %v2072 = vand.u32 %v1328, 4294901760
  %v2073 = vsub.f32 %v1328, %v2072
  %v2074 = vand.u32 %v2073, 4294901760
  %2075 = vmatmul.mubr.f32.gmra.mrb[0].mxu0 %v2074
  %v2076 = vpop.f32.mrb[0].mxu0
  %v2077 = vadd.f32 %v1890, %v2076
  %v2078 = vpop.f32.mrb[0].mxu0
  %2079 = vmatprep.mubr.f32.mxu0 0.0
  %v2080 = vand.u32 %v1331, 4294901760
  %v2081 = vsub.f32 %v1331, %v2080
  %v2082 = vand.u32 %v2081, 4294901760
  %2083 = vmatmul.mubr.f32.gmra.mrb[0].mxu0 %v2082
  %v2084 = vpop.f32.mrb[0].mxu0
  %v2085 = vadd.f32 %v1897, %v2084
  %v2086 = vpop.f32.mrb[0].mxu0
  %2087 = vmatprep.mubr.f32.mxu0 0.0
  %v2088 = vand.u32 %v1334, 4294901760
  %v2089 = vsub.f32 %v1334, %v2088
  %v2090 = vand.u32 %v2089, 4294901760
  %2091 = vmatmul.mubr.f32.gmra.mrb[0].mxu0 %v2090
  %v2092 = vpop.f32.mrb[0].mxu0
  %v2093 = vadd.f32 %v1904, %v2092
  %v2094 = vpop.f32.mrb[0].mxu0
  %2095 = vmatprep.mubr.f32.mxu0 0.0
  %v2096 = vand.u32 %v1337, 4294901760
  %v2097 = vsub.f32 %v1337, %v2096
  %v2098 = vand.u32 %v2097, 4294901760
  %2099 = vmatmul.mubr.f32.gmra.mrb[0].mxu0 %v2098
  %v2100 = vpop.f32.mrb[0].mxu0
  %v2101 = vadd.f32 %v1911, %v2100
  %v2102 = vpop.f32.mrb[0].mxu0
  %2103 = vmatprep.mubr.f32.mxu0 0.0
  %v2104 = vand.u32 %v1340, 4294901760
  %v2105 = vsub.f32 %v1340, %v2104
  %v2106 = vand.u32 %v2105, 4294901760
  %2107 = vmatmul.mubr.f32.gmra.mrb[0].mxu0 %v2106
  %v2108 = vpop.f32.mrb[0].mxu0
  %v2109 = vadd.f32 %v1918, %v2108
  %v2110 = vpop.f32.mrb[0].mxu0
  %2111 = vmatprep.mubr.f32.mxu0 0.0
  %v2112 = vand.u32 %v1343, 4294901760
  %v2113 = vsub.f32 %v1343, %v2112
  %v2114 = vand.u32 %v2113, 4294901760
  %2115 = vmatmul.mubr.f32.gmra.mrb[0].mxu0 %v2114
  %v2116 = vpop.f32.mrb[0].mxu0
  %v2117 = vadd.f32 %v1925, %v2116
  %v2118 = vpop.f32.mrb[0].mxu0
  %2119 = vmatprep.mubr.f32.mxu0 0.0
  %v2120 = vand.u32 %v1346, 4294901760
  %v2121 = vsub.f32 %v1346, %v2120
  %v2122 = vand.u32 %v2121, 4294901760
  %2123 = vmatmul.mubr.f32.gmra.mrb[0].mxu0 %v2122
  %v2124 = vpop.f32.mrb[0].mxu0
  %v2125 = vadd.f32 %v1932, %v2124
  %v2126 = vpop.f32.mrb[0].mxu0
  %2127 = vmatprep.mubr.f32.mxu0 0.0
  %v2128 = vand.u32 %v1349, 4294901760
  %v2129 = vsub.f32 %v1349, %v2128
  %v2130 = vand.u32 %v2129, 4294901760
  %2131 = vmatmul.mubr.f32.gmra.mrb[0].mxu0 %v2130
  %v2132 = vpop.f32.mrb[0].mxu0
  %v2133 = vadd.f32 %v1939, %v2132
  %v2134 = vpop.f32.mrb[0].mxu0
  %2135 = vmatprep.mubr.f32.mxu0 0.0
  %v2136 = vand.u32 %v1352, 4294901760
  %v2137 = vsub.f32 %v1352, %v2136
  %v2138 = vand.u32 %v2137, 4294901760
  %2139 = vmatmul.mubr.f32.gmra.mrb[0].mxu0 %v2138
  %v2140 = vpop.f32.mrb[0].mxu0
  %v2141 = vadd.f32 %v1946, %v2140
  %v2142 = vpop.f32.mrb[0].mxu0
  %2143 = vmatprep.mubr.f32.mxu0 0.0
  %v2144 = vand.u32 %v1355, 4294901760
  %v2145 = vsub.f32 %v1355, %v2144
  %v2146 = vand.u32 %v2145, 4294901760
  %2147 = vmatmul.mubr.f32.gmra.mrb[0].mxu0 %v2146
  %v2148 = vpop.f32.mrb[0].mxu0
  %v2149 = vadd.f32 %v1953, %v2148
  %v2150 = vpop.f32.mrb[0].mxu0
  %2151 = vmatprep.mubr.f32.mxu0 0.0
  %v2152 = vand.u32 %v1358, 4294901760
  %v2153 = vsub.f32 %v1358, %v2152
  %v2154 = vand.u32 %v2153, 4294901760
  %2155 = vmatmul.mubr.f32.gmra.mrb[0].mxu0 %v2154
  %v2156 = vpop.f32.mrb[0].mxu0
  %v2157 = vadd.f32 %v1960, %v2156
  %v2158 = vpop.f32.mrb[0].mxu0
  %2159 = vmatprep.mubr.f32.mxu0 0.0
  %v2160 = vand.u32 %v1361, 4294901760
  %v2161 = vsub.f32 %v1361, %v2160
  %v2162 = vand.u32 %v2161, 4294901760
  %2163 = vmatmul.mubr.f32.gmra.mrb[0].mxu0 %v2162
  %v2164 = vpop.f32.mrb[0].mxu0
  %v2165 = vadd.f32 %v1967, %v2164
  %v2166 = vpop.f32.mrb[0].mxu0
  %2167 = vdwg.mxu0
  %2168 = vmatprep.subr.mxu0 0.0
  %v2169 = vand.u32 %v1309, 4294901760
  %v2170 = vsub.f32 %v1309, %v2169
  %v2171 = vand.u32 %v2170, 4294901760
  %2172 = vmatpush1.msra.mxu0 %v2171
  %2173 = vmatprep.subr.mxu0 0.0
  %v2174 = vand.u32 %v1310, 4294901760
  %v2175 = vsub.f32 %v1310, %v2174
  %v2176 = vand.u32 %v2175, 4294901760
  %2177 = vmatpush1.msra.mxu0 %v2176
  %2178 = vmatprep.subr.mxu0 0.0
  %v2179 = vand.u32 %v1311, 4294901760
  %v2180 = vsub.f32 %v1311, %v2179
  %v2181 = vand.u32 %v2180, 4294901760
  %2182 = vmatpush1.msra.mxu0 %v2181
  %2183 = vmatprep.subr.mxu0 0.0
  %v2184 = vand.u32 %v1312, 4294901760
  %v2185 = vsub.f32 %v1312, %v2184
  %v2186 = vand.u32 %v2185, 4294901760
  %2187 = vmatpush1.msra.mxu0 %v2186
  %2188 = vmatprep.subr.mxu0 0.0
  %v2189 = vand.u32 %v1365, 4294901760
  %v2190 = vsub.f32 %v1365, %v2189
  %v2191 = vand.u32 %v2190, 4294901760
  %2192 = vmatpush1.msra.mxu0 %v2191
  %2193 = vmatprep.subr.mxu0 0.0
  %2194 = vmatpush1.msra.mxu0 0.0
  %2195 = vmatprep.subr.mxu0 0.0
  %2196 = vmatpush1.msra.mxu0 0.0
  %2197 = vmatprep.subr.mxu0 0.0
  %2198 = vmatpush1.msra.mxu0 0.0
  %2199 = vmatprep.subr.mxu0 0.0
  %2200 = vmatpush1.msra.mxu0 0.0
  %2201 = vmatprep.subr.mxu0 0.0
  %2202 = vmatpush1.msra.mxu0 0.0
  %2203 = vmatprep.subr.mxu0 0.0
  %2204 = vmatpush1.msra.mxu0 0.0
  %2205 = vmatprep.subr.mxu0 0.0
  %2206 = vmatpush1.msra.mxu0 0.0
  %2207 = vmatprep.subr.mxu0 0.0
  %2208 = vmatpush1.msra.mxu0 0.0
  %2209 = vmatprep.subr.mxu0 0.0
  %2210 = vmatpush1.msra.mxu0 0.0
  %2211 = vmatprep.subr.mxu0 0.0
  %2212 = vmatpush1.msra.mxu0 0.0
  %2213 = vmatprep.subr.mxu0 0.0
  %2214 = vmatpush1.msra.mxu0 0.0
  %2215 = vmatprep.subr.mxu0 0.0
  %2216 = vmatpush1.msra.mxu0 0.0
  %2217 = vmatprep.subr.mxu0 0.0
  %2218 = vmatpush1.msra.mxu0 0.0
  %2219 = vmatprep.subr.mxu0 0.0
  %2220 = vmatpush1.msra.mxu0 0.0
  %2221 = vmatprep.subr.mxu0 0.0
  %2222 = vmatpush1.msra.mxu0 0.0
  %2223 = vmatprep.subr.mxu0 0.0
  %2224 = vmatpush1.msra.mxu0 0.0
  %2225 = vmatprep.subr.mxu0 0.0
  %2226 = vmatpush1.msra.mxu0 0.0
  %2227 = vmatprep.subr.mxu0 0.0
  %2228 = vmatpush1.msra.mxu0 0.0
  %2229 = vmatprep.subr.mxu0 0.0
  %2230 = vmatpush1.msra.mxu0 0.0
  %2231 = vmatprep.subr.mxu0 0.0
  %2232 = vmatpush1.msra.mxu0 0.0
  %2233 = vmatprep.subr.mxu0 0.0
  %2234 = vmatpush1.msra.mxu0 0.0
  %2235 = vmatprep.subr.mxu0 0.0
  %2236 = vmatpush1.msra.mxu0 0.0
  %2237 = vmatprep.subr.mxu0 0.0
  %2238 = vmatpush1.msra.mxu0 0.0
  %2239 = vmatprep.subr.mxu0 0.0
  %2240 = vmatpush1.msra.mxu0 0.0
  %2241 = vmatprep.subr.mxu0 0.0
  %2242 = vmatpush1.msra.mxu0 0.0
  %2243 = vmatprep.subr.mxu0 0.0
  %2244 = vmatpush1.msra.mxu0 0.0
  %2245 = vmatprep.subr.mxu0 0.0
  %2246 = vmatpush1.msra.mxu0 0.0
  %2247 = vmatprep.mubr.f32.mxu0 0.0
  %v2248 = vand.u32 %v1316, 4294901760
  %2249 = vmatmul.mubr.f32.gmra.mrb[0].mxu0 %v2248
  %v2250 = vpop.f32.mrb[0].mxu0
  %v2251 = vadd.f32 %v2045, %v2250
  %v2252 = vpop.f32.mrb[0].mxu0
  %2253 = vmatprep.mubr.f32.mxu0 0.0
  %v2254 = vand.u32 %v1319, 4294901760
  %2255 = vmatmul.mubr.f32.gmra.mrb[0].mxu0 %v2254
  %v2256 = vpop.f32.mrb[0].mxu0
  %v2257 = vadd.f32 %v2053, %v2256
  %v2258 = vpop.f32.mrb[0].mxu0
  %2259 = vmatprep.mubr.f32.mxu0 0.0
  %v2260 = vand.u32 %v1322, 4294901760
  %2261 = vmatmul.mubr.f32.gmra.mrb[0].mxu0 %v2260
  %v2262 = vpop.f32.mrb[0].mxu0
  %v2263 = vadd.f32 %v2061, %v2262
  %v2264 = vpop.f32.mrb[0].mxu0
  %2265 = vmatprep.mubr.f32.mxu0 0.0
  %v2266 = vand.u32 %v1325, 4294901760
  %2267 = vmatmul.mubr.f32.gmra.mrb[0].mxu0 %v2266
  %v2268 = vpop.f32.mrb[0].mxu0
  %v2269 = vadd.f32 %v2069, %v2268
  %v2270 = vpop.f32.mrb[0].mxu0
  %2271 = vmatprep.mubr.f32.mxu0 0.0
  %v2272 = vand.u32 %v1328, 4294901760
  %2273 = vmatmul.mubr.f32.gmra.mrb[0].mxu0 %v2272
  %v2274 = vpop.f32.mrb[0].mxu0
  %v2275 = vadd.f32 %v2077, %v2274
  %v2276 = vpop.f32.mrb[0].mxu0
  %2277 = vmatprep.mubr.f32.mxu0 0.0
  %v2278 = vand.u32 %v1331, 4294901760
  %2279 = vmatmul.mubr.f32.gmra.mrb[0].mxu0 %v2278
  %v2280 = vpop.f32.mrb[0].mxu0
  %v2281 = vadd.f32 %v2085, %v2280
  %v2282 = vpop.f32.mrb[0].mxu0
  %2283 = vmatprep.mubr.f32.mxu0 0.0
  %v2284 = vand.u32 %v1334, 4294901760
  %2285 = vmatmul.mubr.f32.gmra.mrb[0].mxu0 %v2284
  %v2286 = vpop.f32.mrb[0].mxu0
  %v2287 = vadd.f32 %v2093, %v2286
  %v2288 = vpop.f32.mrb[0].mxu0
  %2289 = vmatprep.mubr.f32.mxu0 0.0
  %v2290 = vand.u32 %v1337, 4294901760
  %2291 = vmatmul.mubr.f32.gmra.mrb[0].mxu0 %v2290
  %v2292 = vpop.f32.mrb[0].mxu0
  %v2293 = vadd.f32 %v2101, %v2292
  %v2294 = vpop.f32.mrb[0].mxu0
  %2295 = vmatprep.mubr.f32.mxu0 0.0
  %v2296 = vand.u32 %v1340, 4294901760
  %2297 = vmatmul.mubr.f32.gmra.mrb[0].mxu0 %v2296
  %v2298 = vpop.f32.mrb[0].mxu0
  %v2299 = vadd.f32 %v2109, %v2298
  %v2300 = vpop.f32.mrb[0].mxu0
  %2301 = vmatprep.mubr.f32.mxu0 0.0
  %v2302 = vand.u32 %v1343, 4294901760
  %2303 = vmatmul.mubr.f32.gmra.mrb[0].mxu0 %v2302
  %v2304 = vpop.f32.mrb[0].mxu0
  %v2305 = vadd.f32 %v2117, %v2304
  %v2306 = vpop.f32.mrb[0].mxu0
  %2307 = vmatprep.mubr.f32.mxu0 0.0
  %v2308 = vand.u32 %v1346, 4294901760
  %2309 = vmatmul.mubr.f32.gmra.mrb[0].mxu0 %v2308
  %v2310 = vpop.f32.mrb[0].mxu0
  %v2311 = vadd.f32 %v2125, %v2310
  %v2312 = vpop.f32.mrb[0].mxu0
  %2313 = vmatprep.mubr.f32.mxu0 0.0
  %v2314 = vand.u32 %v1349, 4294901760
  %2315 = vmatmul.mubr.f32.gmra.mrb[0].mxu0 %v2314
  %v2316 = vpop.f32.mrb[0].mxu0
  %v2317 = vadd.f32 %v2133, %v2316
  %v2318 = vpop.f32.mrb[0].mxu0
  %2319 = vmatprep.mubr.f32.mxu0 0.0
  %v2320 = vand.u32 %v1352, 4294901760
  %2321 = vmatmul.mubr.f32.gmra.mrb[0].mxu0 %v2320
  %v2322 = vpop.f32.mrb[0].mxu0
  %v2323 = vadd.f32 %v2141, %v2322
  %v2324 = vpop.f32.mrb[0].mxu0
  %2325 = vmatprep.mubr.f32.mxu0 0.0
  %v2326 = vand.u32 %v1355, 4294901760
  %2327 = vmatmul.mubr.f32.gmra.mrb[0].mxu0 %v2326
  %v2328 = vpop.f32.mrb[0].mxu0
  %v2329 = vadd.f32 %v2149, %v2328
  %v2330 = vpop.f32.mrb[0].mxu0
  %2331 = vmatprep.mubr.f32.mxu0 0.0
  %v2332 = vand.u32 %v1358, 4294901760
  %2333 = vmatmul.mubr.f32.gmra.mrb[0].mxu0 %v2332
  %v2334 = vpop.f32.mrb[0].mxu0
  %v2335 = vadd.f32 %v2157, %v2334
  %v2336 = vpop.f32.mrb[0].mxu0
  %2337 = vmatprep.mubr.f32.mxu0 0.0
  %v2338 = vand.u32 %v1361, 4294901760
  %2339 = vmatmul.mubr.f32.gmra.mrb[0].mxu0 %v2338
  %v2340 = vpop.f32.mrb[0].mxu0
  %v2341 = vadd.f32 %v2165, %v2340
  %v2342 = vpop.f32.mrb[0].mxu0
  %2343 = vdwg.mxu0
  %2344 = vmatprep.subr.mxu0 0.0
  %v2345 = vand.u32 %v1309, 4294901760
  %2346 = vmatpush1.msra.mxu0 %v2345
  %2347 = vmatprep.subr.mxu0 0.0
  %v2348 = vand.u32 %v1310, 4294901760
  %2349 = vmatpush1.msra.mxu0 %v2348
  %2350 = vmatprep.subr.mxu0 0.0
  %v2351 = vand.u32 %v1311, 4294901760
  %2352 = vmatpush1.msra.mxu0 %v2351
  %2353 = vmatprep.subr.mxu0 0.0
  %v2354 = vand.u32 %v1312, 4294901760
  %2355 = vmatpush1.msra.mxu0 %v2354
  %2356 = vmatprep.subr.mxu0 0.0
  %v2357 = vand.u32 %v1365, 4294901760
  %2358 = vmatpush1.msra.mxu0 %v2357
  %2359 = vmatprep.subr.mxu0 0.0
  %2360 = vmatpush1.msra.mxu0 0.0
  %2361 = vmatprep.subr.mxu0 0.0
  %2362 = vmatpush1.msra.mxu0 0.0
  %2363 = vmatprep.subr.mxu0 0.0
  %2364 = vmatpush1.msra.mxu0 0.0
  %2365 = vmatprep.subr.mxu0 0.0
  %2366 = vmatpush1.msra.mxu0 0.0
  %2367 = vmatprep.subr.mxu0 0.0
  %2368 = vmatpush1.msra.mxu0 0.0
  %2369 = vmatprep.subr.mxu0 0.0
  %2370 = vmatpush1.msra.mxu0 0.0
  %2371 = vmatprep.subr.mxu0 0.0
  %2372 = vmatpush1.msra.mxu0 0.0
  %2373 = vmatprep.subr.mxu0 0.0
  %2374 = vmatpush1.msra.mxu0 0.0
  %2375 = vmatprep.subr.mxu0 0.0
  %2376 = vmatpush1.msra.mxu0 0.0
  %2377 = vmatprep.subr.mxu0 0.0
  %2378 = vmatpush1.msra.mxu0 0.0
  %2379 = vmatprep.subr.mxu0 0.0
  %2380 = vmatpush1.msra.mxu0 0.0
  %2381 = vmatprep.subr.mxu0 0.0
  %2382 = vmatpush1.msra.mxu0 0.0
  %2383 = vmatprep.subr.mxu0 0.0
  %2384 = vmatpush1.msra.mxu0 0.0
  %2385 = vmatprep.subr.mxu0 0.0
  %2386 = vmatpush1.msra.mxu0 0.0
  %2387 = vmatprep.subr.mxu0 0.0
  %2388 = vmatpush1.msra.mxu0 0.0
  %2389 = vmatprep.subr.mxu0 0.0
  %2390 = vmatpush1.msra.mxu0 0.0
  %2391 = vmatprep.subr.mxu0 0.0
  %2392 = vmatpush1.msra.mxu0 0.0
  %2393 = vmatprep.subr.mxu0 0.0
  %2394 = vmatpush1.msra.mxu0 0.0
  %2395 = vmatprep.subr.mxu0 0.0
  %2396 = vmatpush1.msra.mxu0 0.0
  %2397 = vmatprep.subr.mxu0 0.0
  %2398 = vmatpush1.msra.mxu0 0.0
  %2399 = vmatprep.subr.mxu0 0.0
  %2400 = vmatpush1.msra.mxu0 0.0
  %2401 = vmatprep.subr.mxu0 0.0
  %2402 = vmatpush1.msra.mxu0 0.0
  %2403 = vmatprep.subr.mxu0 0.0
  %2404 = vmatpush1.msra.mxu0 0.0
  %2405 = vmatprep.subr.mxu0 0.0
  %2406 = vmatpush1.msra.mxu0 0.0
  %2407 = vmatprep.subr.mxu0 0.0
  %2408 = vmatpush1.msra.mxu0 0.0
  %2409 = vmatprep.subr.mxu0 0.0
  %2410 = vmatpush1.msra.mxu0 0.0
  %2411 = vmatprep.subr.mxu0 0.0
  %2412 = vmatpush1.msra.mxu0 0.0
  %2413 = vmatprep.mubr.f32.mxu0 0.0
  %v2414 = vand.u32 %v1316, 4294901760
  %2415 = vmatmul.mubr.f32.gmra.mrb[0].mxu0 %v2414
  %v2416 = vpop.f32.mrb[0].mxu0
  %v2417 = vadd.f32 %v2251, %v2416
  %v2418 = vpop.f32.mrb[0].mxu0
  %2419 = vmatprep.mubr.f32.mxu0 0.0
  %v2420 = vand.u32 %v1319, 4294901760
  %2421 = vmatmul.mubr.f32.gmra.mrb[0].mxu0 %v2420
  %v2422 = vpop.f32.mrb[0].mxu0
  %v2423 = vadd.f32 %v2257, %v2422
  %v2424 = vpop.f32.mrb[0].mxu0
  %2425 = vmatprep.mubr.f32.mxu0 0.0
  %v2426 = vand.u32 %v1322, 4294901760
  %2427 = vmatmul.mubr.f32.gmra.mrb[0].mxu0 %v2426
  %v2428 = vpop.f32.mrb[0].mxu0
  %v2429 = vadd.f32 %v2263, %v2428
  %v2430 = vpop.f32.mrb[0].mxu0
  %2431 = vmatprep.mubr.f32.mxu0 0.0
  %v2432 = vand.u32 %v1325, 4294901760
  %2433 = vmatmul.mubr.f32.gmra.mrb[0].mxu0 %v2432
  %v2434 = vpop.f32.mrb[0].mxu0
  %v2435 = vadd.f32 %v2269, %v2434
  %v2436 = vpop.f32.mrb[0].mxu0
  %2437 = vmatprep.mubr.f32.mxu0 0.0
  %v2438 = vand.u32 %v1328, 4294901760
  %2439 = vmatmul.mubr.f32.gmra.mrb[0].mxu0 %v2438
  %v2440 = vpop.f32.mrb[0].mxu0
  %v2441 = vadd.f32 %v2275, %v2440
  %v2442 = vpop.f32.mrb[0].mxu0
  %2443 = vmatprep.mubr.f32.mxu0 0.0
  %v2444 = vand.u32 %v1331, 4294901760
  %2445 = vmatmul.mubr.f32.gmra.mrb[0].mxu0 %v2444
  %v2446 = vpop.f32.mrb[0].mxu0
  %v2447 = vadd.f32 %v2281, %v2446
  %v2448 = vpop.f32.mrb[0].mxu0
  %2449 = vmatprep.mubr.f32.mxu0 0.0
  %v2450 = vand.u32 %v1334, 4294901760
  %2451 = vmatmul.mubr.f32.gmra.mrb[0].mxu0 %v2450
  %v2452 = vpop.f32.mrb[0].mxu0
  %v2453 = vadd.f32 %v2287, %v2452
  %v2454 = vpop.f32.mrb[0].mxu0
  %2455 = vmatprep.mubr.f32.mxu0 0.0
  %v2456 = vand.u32 %v1337, 4294901760
  %2457 = vmatmul.mubr.f32.gmra.mrb[0].mxu0 %v2456
  %v2458 = vpop.f32.mrb[0].mxu0
  %v2459 = vadd.f32 %v2293, %v2458
  %v2460 = vpop.f32.mrb[0].mxu0
  %2461 = vmatprep.mubr.f32.mxu0 0.0
  %v2462 = vand.u32 %v1340, 4294901760
  %2463 = vmatmul.mubr.f32.gmra.mrb[0].mxu0 %v2462
  %v2464 = vpop.f32.mrb[0].mxu0
  %v2465 = vadd.f32 %v2299, %v2464
  %v2466 = vpop.f32.mrb[0].mxu0
  %2467 = vmatprep.mubr.f32.mxu0 0.0
  %v2468 = vand.u32 %v1343, 4294901760
  %2469 = vmatmul.mubr.f32.gmra.mrb[0].mxu0 %v2468
  %v2470 = vpop.f32.mrb[0].mxu0
  %v2471 = vadd.f32 %v2305, %v2470
  %v2472 = vpop.f32.mrb[0].mxu0
  %2473 = vmatprep.mubr.f32.mxu0 0.0
  %v2474 = vand.u32 %v1346, 4294901760
  %2475 = vmatmul.mubr.f32.gmra.mrb[0].mxu0 %v2474
  %v2476 = vpop.f32.mrb[0].mxu0
  %v2477 = vadd.f32 %v2311, %v2476
  %v2478 = vpop.f32.mrb[0].mxu0
  %2479 = vmatprep.mubr.f32.mxu0 0.0
  %v2480 = vand.u32 %v1349, 4294901760
  %2481 = vmatmul.mubr.f32.gmra.mrb[0].mxu0 %v2480
  %v2482 = vpop.f32.mrb[0].mxu0
  %v2483 = vadd.f32 %v2317, %v2482
  %v2484 = vpop.f32.mrb[0].mxu0
  %2485 = vmatprep.mubr.f32.mxu0 0.0
  %v2486 = vand.u32 %v1352, 4294901760
  %2487 = vmatmul.mubr.f32.gmra.mrb[0].mxu0 %v2486
  %v2488 = vpop.f32.mrb[0].mxu0
  %v2489 = vadd.f32 %v2323, %v2488
  %v2490 = vpop.f32.mrb[0].mxu0
  %2491 = vmatprep.mubr.f32.mxu0 0.0
  %v2492 = vand.u32 %v1355, 4294901760
  %2493 = vmatmul.mubr.f32.gmra.mrb[0].mxu0 %v2492
  %v2494 = vpop.f32.mrb[0].mxu0
  %v2495 = vadd.f32 %v2329, %v2494
  %v2496 = vpop.f32.mrb[0].mxu0
  %2497 = vmatprep.mubr.f32.mxu0 0.0
  %v2498 = vand.u32 %v1358, 4294901760
  %2499 = vmatmul.mubr.f32.gmra.mrb[0].mxu0 %v2498
  %v2500 = vpop.f32.mrb[0].mxu0
  %v2501 = vadd.f32 %v2335, %v2500
  %v2502 = vpop.f32.mrb[0].mxu0
  %2503 = vmatprep.mubr.f32.mxu0 0.0
  %v2504 = vand.u32 %v1361, 4294901760
  %2505 = vmatmul.mubr.f32.gmra.mrb[0].mxu0 %v2504
  %v2506 = vpop.f32.mrb[0].mxu0
  %v2507 = vadd.f32 %v2341, %v2506
  %v2508 = vpop.f32.mrb[0].mxu0
  %2509 = vdwg.mxu0
  %v2510 = vsel %vm1190, %v2417, 0.0
  %v2511 = vsel %vm1190, %v2423, 0.0
  %v2512 = vadd.f32 %v2510, %v2511
  %v2513 = vsel %vm1190, %v2429, 0.0
  %v2514 = vadd.f32 %v2512, %v2513
  %v2515 = vsel %vm1190, %v2435, 0.0
  %v2516 = vadd.f32 %v2514, %v2515
  %v2517 = vsel %vm1190, %v2441, 0.0
  %v2518 = vadd.f32 %v2516, %v2517
  %v2519 = vsel %vm1190, %v2447, 0.0
  %v2520 = vadd.f32 %v2518, %v2519
  %v2521 = vsel %vm1190, %v2453, 0.0
  %v2522 = vadd.f32 %v2520, %v2521
  %v2523 = vsel %vm1190, %v2459, 0.0
  %v2524 = vadd.f32 %v2522, %v2523
  %v2525 = vsel %vm1190, %v2465, 0.0
  %v2526 = vadd.f32 %v2524, %v2525
  %v2527 = vsel %vm1190, %v2471, 0.0
  %v2528 = vadd.f32 %v2526, %v2527
  %v2529 = vsel %vm1190, %v2477, 0.0
  %v2530 = vadd.f32 %v2528, %v2529
  %v2531 = vsel %vm1190, %v2483, 0.0
  %v2532 = vadd.f32 %v2530, %v2531
  %v2533 = vsel %vm1190, %v2489, 0.0
  %v2534 = vadd.f32 %v2532, %v2533
  %v2535 = vsel %vm1190, %v2495, 0.0
  %v2536 = vadd.f32 %v2534, %v2535
  %v2537 = vsel %vm1190, %v2501, 0.0
  %v2538 = vadd.f32 %v2536, %v2537
  %v2539 = vsel %vm1190, %v2507, 0.0
  %v2540 = vadd.f32 %v2538, %v2539
  %v2541 = vrot.slane %v2540, 4
  %v2542 = vadd.f32 %v2540, %v2541
  %v2543 = vrot.slane %v2542, 2
  %v2544 = vadd.f32 %v2542, %v2543
  %v2545 = vrot.slane %v2544, 1
  %v2546 = vadd.f32 %v2544, %v2545
  %v2547 = vrcp.pop 128.0
  %v2548 = vmul.f32 %v2546, %v2547
  %v2549 = vsub.f32 %v2417, %v2548
  %v2550 = vsub.f32 %v2423, %v2548
  %v2551 = vsub.f32 %v2429, %v2548
  %v2552 = vsub.f32 %v2435, %v2548
  %v2553 = vsub.f32 %v2441, %v2548
  %v2554 = vsub.f32 %v2447, %v2548
  %v2555 = vsub.f32 %v2453, %v2548
  %v2556 = vsub.f32 %v2459, %v2548
  %v2557 = vsub.f32 %v2465, %v2548
  %v2558 = vsub.f32 %v2471, %v2548
  %v2559 = vsub.f32 %v2477, %v2548
  %v2560 = vsub.f32 %v2483, %v2548
  %v2561 = vsub.f32 %v2489, %v2548
  %v2562 = vsub.f32 %v2495, %v2548
  %v2563 = vsub.f32 %v2501, %v2548
  %v2564 = vsub.f32 %v2507, %v2548
  %v2565 = vmul.f32 %v2549, %v2549
  %v2566 = vmul.f32 %v2550, %v2550
  %v2567 = vmul.f32 %v2551, %v2551
  %v2568 = vmul.f32 %v2552, %v2552
  %v2569 = vmul.f32 %v2553, %v2553
  %v2570 = vmul.f32 %v2554, %v2554
  %v2571 = vmul.f32 %v2555, %v2555
  %v2572 = vmul.f32 %v2556, %v2556
  %v2573 = vmul.f32 %v2557, %v2557
  %v2574 = vmul.f32 %v2558, %v2558
  %v2575 = vmul.f32 %v2559, %v2559
  %v2576 = vmul.f32 %v2560, %v2560
  %v2577 = vmul.f32 %v2561, %v2561
  %v2578 = vmul.f32 %v2562, %v2562
  %v2579 = vmul.f32 %v2563, %v2563
  %v2580 = vmul.f32 %v2564, %v2564
  %v2581 = vsel %vm1190, %v2565, 0.0
  %v2582 = vsel %vm1190, %v2566, 0.0
  %v2583 = vadd.f32 %v2581, %v2582
  %v2584 = vsel %vm1190, %v2567, 0.0
  %v2585 = vadd.f32 %v2583, %v2584
  %v2586 = vsel %vm1190, %v2568, 0.0
  %v2587 = vadd.f32 %v2585, %v2586
  %v2588 = vsel %vm1190, %v2569, 0.0
  %v2589 = vadd.f32 %v2587, %v2588
  %v2590 = vsel %vm1190, %v2570, 0.0
  %v2591 = vadd.f32 %v2589, %v2590
  %v2592 = vsel %vm1190, %v2571, 0.0
  %v2593 = vadd.f32 %v2591, %v2592
  %v2594 = vsel %vm1190, %v2572, 0.0
  %v2595 = vadd.f32 %v2593, %v2594
  %v2596 = vsel %vm1190, %v2573, 0.0
  %v2597 = vadd.f32 %v2595, %v2596
  %v2598 = vsel %vm1190, %v2574, 0.0
  %v2599 = vadd.f32 %v2597, %v2598
  %v2600 = vsel %vm1190, %v2575, 0.0
  %v2601 = vadd.f32 %v2599, %v2600
  %v2602 = vsel %vm1190, %v2576, 0.0
  %v2603 = vadd.f32 %v2601, %v2602
  %v2604 = vsel %vm1190, %v2577, 0.0
  %v2605 = vadd.f32 %v2603, %v2604
  %v2606 = vsel %vm1190, %v2578, 0.0
  %v2607 = vadd.f32 %v2605, %v2606
  %v2608 = vsel %vm1190, %v2579, 0.0
  %v2609 = vadd.f32 %v2607, %v2608
  %v2610 = vsel %vm1190, %v2580, 0.0
  %v2611 = vadd.f32 %v2609, %v2610
  %v2612 = vrot.slane %v2611, 4
  %v2613 = vadd.f32 %v2611, %v2612
  %v2614 = vrot.slane %v2613, 2
  %v2615 = vadd.f32 %v2613, %v2614
  %v2616 = vrot.slane %v2615, 1
  %v2617 = vadd.f32 %v2615, %v2616
  %v2618 = vmul.f32 %v2617, %v2547
  %v2619 = vadd.f32 %v2618, 1e-05
  %v2620 = vrsqrt.pop %v2619
  %v2621 = vmul.f32 %v2549, %v2620
  %v2622 = vmul.f32 %v2550, %v2620
  %v2623 = vmul.f32 %v2551, %v2620
  %v2624 = vmul.f32 %v2552, %v2620
  %v2625 = vmul.f32 %v2553, %v2620
  %v2626 = vmul.f32 %v2554, %v2620
  %v2627 = vmul.f32 %v2555, %v2620
  %v2628 = vmul.f32 %v2556, %v2620
  %v2629 = vmul.f32 %v2557, %v2620
  %v2630 = vmul.f32 %v2558, %v2620
  %v2631 = vmul.f32 %v2559, %v2620
  %v2632 = vmul.f32 %v2560, %v2620
  %v2633 = vmul.f32 %v2561, %v2620
  %v2634 = vmul.f32 %v2562, %v2620
  %v2635 = vmul.f32 %v2563, %v2620
  %v2636 = vmul.f32 %v2564, %v2620
  %v2637 = vld [vmem:[%s3] sm:$0x1]
  %v2639 = vlaneseq
  %v2640 = vshrl.u32 %v2639, 7
  %v2641 = vsub.s32 0, %v2640
  %v2642 = vrot.slane %v2637, %v2641
  %v2644 = vmul.f32 %v2621, %v2642
  %v2645 = vmul.f32 %v2622, %v2642
  %v2646 = vmul.f32 %v2623, %v2642
  %v2647 = vmul.f32 %v2624, %v2642
  %v2648 = vmul.f32 %v2625, %v2642
  %v2649 = vmul.f32 %v2626, %v2642
  %v2650 = vmul.f32 %v2627, %v2642
  %v2651 = vmul.f32 %v2628, %v2642
  %v2652 = vmul.f32 %v2629, %v2642
  %v2653 = vmul.f32 %v2630, %v2642
  %v2654 = vmul.f32 %v2631, %v2642
  %v2655 = vmul.f32 %v2632, %v2642
  %v2656 = vmul.f32 %v2633, %v2642
  %v2657 = vmul.f32 %v2634, %v2642
  %v2658 = vmul.f32 %v2635, %v2642
  %v2659 = vmul.f32 %v2636, %v2642
  %v2660 = vld [vmem:[%s4] sm:$0x1]
  %v2662 = vlaneseq
  %v2663 = vshrl.u32 %v2662, 7
  %v2664 = vsub.s32 0, %v2663
  %v2665 = vrot.slane %v2660, %v2664
  %v2667 = vadd.f32 %v2644, %v2665
  %v2668 = vadd.f32 %v2645, %v2665
  %v2669 = vadd.f32 %v2646, %v2665
  %v2670 = vadd.f32 %v2647, %v2665
  %v2671 = vadd.f32 %v2648, %v2665
  %v2672 = vadd.f32 %v2649, %v2665
  %v2673 = vadd.f32 %v2650, %v2665
  %v2674 = vadd.f32 %v2651, %v2665
  %v2675 = vadd.f32 %v2652, %v2665
  %v2676 = vadd.f32 %v2653, %v2665
  %v2677 = vadd.f32 %v2654, %v2665
  %v2678 = vadd.f32 %v2655, %v2665
  %v2679 = vadd.f32 %v2656, %v2665
  %v2680 = vadd.f32 %v2657, %v2665
  %v2681 = vadd.f32 %v2658, %v2665
  %v2682 = vadd.f32 %v2659, %v2665
  %v2683 = vmax.f32 %v2667, 0.0
  %v2684 = vmax.f32 %v2668, 0.0
  %v2685 = vmax.f32 %v2669, 0.0
  %v2686 = vmax.f32 %v2670, 0.0
  %v2687 = vmax.f32 %v2671, 0.0
  %v2688 = vmax.f32 %v2672, 0.0
  %v2689 = vmax.f32 %v2673, 0.0
  %v2690 = vmax.f32 %v2674, 0.0
  %v2691 = vmax.f32 %v2675, 0.0
  %v2692 = vmax.f32 %v2676, 0.0
  %v2693 = vmax.f32 %v2677, 0.0
  %v2694 = vmax.f32 %v2678, 0.0
  %v2695 = vmax.f32 %v2679, 0.0
  %v2696 = vmax.f32 %v2680, 0.0
  %v2697 = vmax.f32 %v2681, 0.0
  %v2698 = vmax.f32 %v2682, 0.0
  %v2716 = vrot.slane 0.0, 7
  %v2717 = vrot.slane %v2683, 7
  %v2718 = vrot.slane %v2684, 7
  %v2719 = vrot.slane %v2685, 7
  %v2720 = vrot.slane %v2686, 7
  %v2721 = vrot.slane %v2687, 7
  %v2722 = vrot.slane %v2688, 7
  %v2723 = vrot.slane %v2689, 7
  %v2724 = vrot.slane %v2690, 7
  %v2725 = vrot.slane %v2691, 7
  %v2726 = vrot.slane %v2692, 7
  %v2727 = vrot.slane %v2693, 7
  %v2728 = vrot.slane %v2694, 7
  %v2729 = vrot.slane %v2695, 7
  %v2730 = vrot.slane %v2696, 7
  %v2731 = vrot.slane %v2697, 7
  %v2732 = vrot.slane %v2698, 7
  %vm2750 = vcmask 1040384
  %v2751 = vsel %vm2750, 0.0, %v2716
  %v2752 = vsel %vm2750, 0.0, %v2717
  %v2753 = vsel %vm2750, 0.0, %v2718
  %v2754 = vsel %vm2750, 0.0, %v2719
  %v2755 = vsel %vm2750, 0.0, %v2720
  %v2756 = vsel %vm2750, 0.0, %v2721
  %v2757 = vsel %vm2750, 0.0, %v2722
  %v2758 = vsel %vm2750, 0.0, %v2723
  %v2759 = vsel %vm2750, 0.0, %v2724
  %v2760 = vsel %vm2750, 0.0, %v2725
  %v2761 = vsel %vm2750, 0.0, %v2726
  %v2762 = vsel %vm2750, 0.0, %v2727
  %v2763 = vsel %vm2750, 0.0, %v2728
  %v2764 = vsel %vm2750, 0.0, %v2729
  %v2765 = vsel %vm2750, 0.0, %v2730
  %v2766 = vsel %vm2750, 0.0, %v2731
  %v2767 = vsel %vm2750, 0.0, %v2732
  %v2768 = vsel %vm2750, %v2716, 0.0
  %v2769 = vsel %vm2750, %v2717, 0.0
  %v2770 = vsel %vm2750, %v2718, 0.0
  %v2771 = vsel %vm2750, %v2719, 0.0
  %v2772 = vsel %vm2750, %v2720, 0.0
  %v2773 = vsel %vm2750, %v2721, 0.0
  %v2774 = vsel %vm2750, %v2722, 0.0
  %v2775 = vsel %vm2750, %v2723, 0.0
  %v2776 = vsel %vm2750, %v2724, 0.0
  %v2777 = vsel %vm2750, %v2725, 0.0
  %v2778 = vsel %vm2750, %v2726, 0.0
  %v2779 = vsel %vm2750, %v2727, 0.0
  %v2780 = vsel %vm2750, %v2728, 0.0
  %v2781 = vsel %vm2750, %v2729, 0.0
  %v2782 = vsel %vm2750, %v2730, 0.0
  %v2783 = vsel %vm2750, %v2731, 0.0
  %v2784 = vsel %vm2750, %v2732, 0.0
  %v2785 = vld [vmem:[%s2] sm:$0xff]
  %v2786 = vld [vmem:[%s2 + $0x8] sm:$0xff]
  %v2787 = vld [vmem:[%s2 + $0x10] sm:$0xff]
  %v2788 = vld [vmem:[%s2 + $0x18] sm:$0xff]
  %v2789 = vld [vmem:[%s2 + $0x20] sm:$0xff]
  %v2790 = vld [vmem:[%s2 + $0x28] sm:$0xff]
  %v2791 = vld [vmem:[%s2 + $0x30] sm:$0xff]
  %v2792 = vld [vmem:[%s2 + $0x38] sm:$0xff]
  %v2793 = vld [vmem:[%s2 + $0x40] sm:$0xff]
  %v2824 = vrot.slane %v2751, 1
  %v2825 = vrot.slane %v2768, 1
  %v2826 = vsel %vm660, %v2824, %v2825
  %v2827 = vrot.slane %v2752, 1
  %v2828 = vrot.slane %v2769, 1
  %v2829 = vsel %vm660, %v2827, %v2828
  %v2830 = vrot.slane %v2753, 1
  %v2831 = vrot.slane %v2770, 1
  %v2832 = vsel %vm660, %v2830, %v2831
  %v2833 = vrot.slane %v2754, 1
  %v2834 = vrot.slane %v2771, 1
  %v2835 = vsel %vm660, %v2833, %v2834
  %v2836 = vrot.slane %v2755, 1
  %v2837 = vrot.slane %v2772, 1
  %v2838 = vsel %vm660, %v2836, %v2837
  %v2839 = vrot.slane %v2756, 1
  %v2840 = vrot.slane %v2773, 1
  %v2841 = vsel %vm660, %v2839, %v2840
  %v2842 = vrot.slane %v2757, 1
  %v2843 = vrot.slane %v2774, 1
  %v2844 = vsel %vm660, %v2842, %v2843
  %v2845 = vrot.slane %v2758, 1
  %v2846 = vrot.slane %v2775, 1
  %v2847 = vsel %vm660, %v2845, %v2846
  %v2848 = vrot.slane %v2760, 1
  %v2849 = vrot.slane %v2777, 1
  %v2850 = vsel %vm660, %v2848, %v2849
  %v2851 = vrot.slane %v2761, 1
  %v2852 = vrot.slane %v2778, 1
  %v2853 = vsel %vm660, %v2851, %v2852
  %v2854 = vrot.slane %v2762, 1
  %v2855 = vrot.slane %v2779, 1
  %v2856 = vsel %vm660, %v2854, %v2855
  %v2857 = vrot.slane %v2763, 1
  %v2858 = vrot.slane %v2780, 1
  %v2859 = vsel %vm660, %v2857, %v2858
  %v2860 = vrot.slane %v2764, 1
  %v2861 = vrot.slane %v2781, 1
  %v2862 = vsel %vm660, %v2860, %v2861
  %v2863 = vrot.slane %v2765, 1
  %v2864 = vrot.slane %v2782, 1
  %v2865 = vsel %vm660, %v2863, %v2864
  %v2866 = vrot.slane %v2766, 1
  %v2867 = vrot.slane %v2783, 1
  %v2868 = vsel %vm660, %v2866, %v2867
  %2869 = vrot.lane.b32.xlu0 %v2826, 8
  %v2870 = vpop.permute.xlu0 %2869
  %2871 = vrot.lane.b32.xlu0 %v2829, 8
  %v2872 = vpop.permute.xlu0 %2871
  %2873 = vrot.lane.b32.xlu0 %v2832, 8
  %v2874 = vpop.permute.xlu0 %2873
  %2875 = vrot.lane.b32.xlu0 %v2835, 8
  %v2876 = vpop.permute.xlu0 %2875
  %2877 = vrot.lane.b32.xlu0 %v2838, 8
  %v2878 = vpop.permute.xlu0 %2877
  %2879 = vrot.lane.b32.xlu0 %v2841, 8
  %v2880 = vpop.permute.xlu0 %2879
  %2881 = vrot.lane.b32.xlu0 %v2844, 8
  %v2882 = vpop.permute.xlu0 %2881
  %2883 = vrot.lane.b32.xlu0 %v2847, 8
  %v2884 = vpop.permute.xlu0 %2883
  %2885 = vrot.lane.b32.xlu0 %v2850, 8
  %v2886 = vpop.permute.xlu0 %2885
  %2887 = vrot.lane.b32.xlu0 %v2853, 8
  %v2888 = vpop.permute.xlu0 %2887
  %2889 = vrot.lane.b32.xlu0 %v2856, 8
  %v2890 = vpop.permute.xlu0 %2889
  %2891 = vrot.lane.b32.xlu0 %v2859, 8
  %v2892 = vpop.permute.xlu0 %2891
  %2893 = vrot.lane.b32.xlu0 %v2862, 8
  %v2894 = vpop.permute.xlu0 %2893
  %2895 = vrot.lane.b32.xlu0 %v2865, 8
  %v2896 = vpop.permute.xlu0 %2895
  %2897 = vrot.lane.b32.xlu0 %v2868, 8
  %v2898 = vpop.permute.xlu0 %2897
  %v2914 = vrot.slane %v2751, 2
  %v2915 = vrot.slane %v2768, 2
  %v2916 = vsel %vm757, %v2914, %v2915
  %v2917 = vrot.slane %v2752, 2
  %v2918 = vrot.slane %v2769, 2
  %v2919 = vsel %vm757, %v2917, %v2918
  %v2920 = vrot.slane %v2753, 2
  %v2921 = vrot.slane %v2770, 2
  %v2922 = vsel %vm757, %v2920, %v2921
  %v2923 = vrot.slane %v2754, 2
  %v2924 = vrot.slane %v2771, 2
  %v2925 = vsel %vm757, %v2923, %v2924
  %v2926 = vrot.slane %v2755, 2
  %v2927 = vrot.slane %v2772, 2
  %v2928 = vsel %vm757, %v2926, %v2927
  %v2929 = vrot.slane %v2756, 2
  %v2930 = vrot.slane %v2773, 2
  %v2931 = vsel %vm757, %v2929, %v2930
  %v2932 = vrot.slane %v2757, 2
  %v2933 = vrot.slane %v2774, 2
  %v2934 = vsel %vm757, %v2932, %v2933
  %v2935 = vrot.slane %v2758, 2
  %v2936 = vrot.slane %v2775, 2
  %v2937 = vsel %vm757, %v2935, %v2936
  %v2938 = vrot.slane %v2760, 2
  %v2939 = vrot.slane %v2777, 2
  %v2940 = vsel %vm757, %v2938, %v2939
  %v2941 = vrot.slane %v2761, 2
  %v2942 = vrot.slane %v2778, 2
  %v2943 = vsel %vm757, %v2941, %v2942
  %v2944 = vrot.slane %v2762, 2
  %v2945 = vrot.slane %v2779, 2
  %v2946 = vsel %vm757, %v2944, %v2945
  %v2947 = vrot.slane %v2763, 2
  %v2948 = vrot.slane %v2780, 2
  %v2949 = vsel %vm757, %v2947, %v2948
  %v2950 = vrot.slane %v2764, 2
  %v2951 = vrot.slane %v2781, 2
  %v2952 = vsel %vm757, %v2950, %v2951
  %v2953 = vrot.slane %v2765, 2
  %v2954 = vrot.slane %v2782, 2
  %v2955 = vsel %vm757, %v2953, %v2954
  %v2956 = vrot.slane %v2766, 2
  %v2957 = vrot.slane %v2783, 2
  %v2958 = vsel %vm757, %v2956, %v2957
  %2959 = vrot.lane.b32.xlu0 %v2916, 16
  %v2960 = vpop.permute.xlu0 %2959
  %2961 = vrot.lane.b32.xlu0 %v2919, 16
  %v2962 = vpop.permute.xlu0 %2961
  %2963 = vrot.lane.b32.xlu0 %v2922, 16
  %v2964 = vpop.permute.xlu0 %2963
  %2965 = vrot.lane.b32.xlu0 %v2925, 16
  %v2966 = vpop.permute.xlu0 %2965
  %2967 = vrot.lane.b32.xlu0 %v2928, 16
  %v2968 = vpop.permute.xlu0 %2967
  %2969 = vrot.lane.b32.xlu0 %v2931, 16
  %v2970 = vpop.permute.xlu0 %2969
  %2971 = vrot.lane.b32.xlu0 %v2934, 16
  %v2972 = vpop.permute.xlu0 %2971
  %2973 = vrot.lane.b32.xlu0 %v2937, 16
  %v2974 = vpop.permute.xlu0 %2973
  %2975 = vrot.lane.b32.xlu0 %v2940, 16
  %v2976 = vpop.permute.xlu0 %2975
  %2977 = vrot.lane.b32.xlu0 %v2943, 16
  %v2978 = vpop.permute.xlu0 %2977
  %2979 = vrot.lane.b32.xlu0 %v2946, 16
  %v2980 = vpop.permute.xlu0 %2979
  %2981 = vrot.lane.b32.xlu0 %v2949, 16
  %v2982 = vpop.permute.xlu0 %2981
  %2983 = vrot.lane.b32.xlu0 %v2952, 16
  %v2984 = vpop.permute.xlu0 %2983
  %2985 = vrot.lane.b32.xlu0 %v2955, 16
  %v2986 = vpop.permute.xlu0 %2985
  %2987 = vrot.lane.b32.xlu0 %v2958, 16
  %v2988 = vpop.permute.xlu0 %2987
  %3006 = vrot.lane.b32.xlu0 %v2752, 24
  %v3007 = vpop.permute.xlu0 %3006
  %3008 = vrot.lane.b32.xlu0 %v2753, 24
  %v3009 = vpop.permute.xlu0 %3008
  %3010 = vrot.lane.b32.xlu0 %v2754, 24
  %v3011 = vpop.permute.xlu0 %3010
  %3012 = vrot.lane.b32.xlu0 %v2755, 24
  %v3013 = vpop.permute.xlu0 %3012
  %3014 = vrot.lane.b32.xlu0 %v2756, 24
  %v3015 = vpop.permute.xlu0 %3014
  %3016 = vrot.lane.b32.xlu0 %v2757, 24
  %v3017 = vpop.permute.xlu0 %3016
  %3018 = vrot.lane.b32.xlu0 %v2758, 24
  %v3019 = vpop.permute.xlu0 %3018
  %3020 = vrot.lane.b32.xlu0 %v2759, 24
  %v3021 = vpop.permute.xlu0 %3020
  %3022 = vrot.lane.b32.xlu0 %v2760, 24
  %v3023 = vpop.permute.xlu0 %3022
  %3024 = vrot.lane.b32.xlu0 %v2761, 24
  %v3025 = vpop.permute.xlu0 %3024
  %3026 = vrot.lane.b32.xlu0 %v2762, 24
  %v3027 = vpop.permute.xlu0 %3026
  %3028 = vrot.lane.b32.xlu0 %v2763, 24
  %v3029 = vpop.permute.xlu0 %3028
  %3030 = vrot.lane.b32.xlu0 %v2764, 24
  %v3031 = vpop.permute.xlu0 %3030
  %3032 = vrot.lane.b32.xlu0 %v2765, 24
  %v3033 = vpop.permute.xlu0 %3032
  %3034 = vrot.lane.b32.xlu0 %v2766, 24
  %v3035 = vpop.permute.xlu0 %3034
  %3036 = vrot.lane.b32.xlu0 %v2767, 24
  %v3037 = vpop.permute.xlu0 %3036
  %v3056 = vrot.slane %v2759, 1
  %v3057 = vrot.slane %v2776, 1
  %v3058 = vsel %vm660, %v3056, %v3057
  %v3059 = vrot.slane %v2767, 1
  %v3060 = vrot.slane %v2784, 1
  %v3061 = vsel %vm660, %v3059, %v3060
  %3062 = vrot.lane.b32.xlu0 %v2829, 32
  %v3063 = vpop.permute.xlu0 %3062
  %3064 = vrot.lane.b32.xlu0 %v2832, 32
  %v3065 = vpop.permute.xlu0 %3064
  %3066 = vrot.lane.b32.xlu0 %v2835, 32
  %v3067 = vpop.permute.xlu0 %3066
  %3068 = vrot.lane.b32.xlu0 %v2838, 32
  %v3069 = vpop.permute.xlu0 %3068
  %3070 = vrot.lane.b32.xlu0 %v2841, 32
  %v3071 = vpop.permute.xlu0 %3070
  %3072 = vrot.lane.b32.xlu0 %v2844, 32
  %v3073 = vpop.permute.xlu0 %3072
  %3074 = vrot.lane.b32.xlu0 %v2847, 32
  %v3075 = vpop.permute.xlu0 %3074
  %3076 = vrot.lane.b32.xlu0 %v3058, 32
  %v3077 = vpop.permute.xlu0 %3076
  %3078 = vrot.lane.b32.xlu0 %v2850, 32
  %v3079 = vpop.permute.xlu0 %3078
  %3080 = vrot.lane.b32.xlu0 %v2853, 32
  %v3081 = vpop.permute.xlu0 %3080
  %3082 = vrot.lane.b32.xlu0 %v2856, 32
  %v3083 = vpop.permute.xlu0 %3082
  %3084 = vrot.lane.b32.xlu0 %v2859, 32
  %v3085 = vpop.permute.xlu0 %3084
  %3086 = vrot.lane.b32.xlu0 %v2862, 32
  %v3087 = vpop.permute.xlu0 %3086
  %3088 = vrot.lane.b32.xlu0 %v2865, 32
  %v3089 = vpop.permute.xlu0 %3088
  %3090 = vrot.lane.b32.xlu0 %v2868, 32
  %v3091 = vpop.permute.xlu0 %3090
  %3092 = vrot.lane.b32.xlu0 %v3061, 32
  %v3093 = vpop.permute.xlu0 %3092
  %v3110 = vrot.slane %v2759, 2
  %v3111 = vrot.slane %v2776, 2
  %v3112 = vsel %vm757, %v3110, %v3111
  %v3113 = vrot.slane %v2767, 2
  %v3114 = vrot.slane %v2784, 2
  %v3115 = vsel %vm757, %v3113, %v3114
  %3116 = vrot.lane.b32.xlu0 %v2919, 40
  %v3117 = vpop.permute.xlu0 %3116
  %3118 = vrot.lane.b32.xlu0 %v2922, 40
  %v3119 = vpop.permute.xlu0 %3118
  %3120 = vrot.lane.b32.xlu0 %v2925, 40
  %v3121 = vpop.permute.xlu0 %3120
  %3122 = vrot.lane.b32.xlu0 %v2928, 40
  %v3123 = vpop.permute.xlu0 %3122
  %3124 = vrot.lane.b32.xlu0 %v2931, 40
  %v3125 = vpop.permute.xlu0 %3124
  %3126 = vrot.lane.b32.xlu0 %v2934, 40
  %v3127 = vpop.permute.xlu0 %3126
  %3128 = vrot.lane.b32.xlu0 %v2937, 40
  %v3129 = vpop.permute.xlu0 %3128
  %3130 = vrot.lane.b32.xlu0 %v3112, 40
  %v3131 = vpop.permute.xlu0 %3130
  %3132 = vrot.lane.b32.xlu0 %v2940, 40
  %v3133 = vpop.permute.xlu0 %3132
  %3134 = vrot.lane.b32.xlu0 %v2943, 40
  %v3135 = vpop.permute.xlu0 %3134
  %3136 = vrot.lane.b32.xlu0 %v2946, 40
  %v3137 = vpop.permute.xlu0 %3136
  %3138 = vrot.lane.b32.xlu0 %v2949, 40
  %v3139 = vpop.permute.xlu0 %3138
  %3140 = vrot.lane.b32.xlu0 %v2952, 40
  %v3141 = vpop.permute.xlu0 %3140
  %3142 = vrot.lane.b32.xlu0 %v2955, 40
  %v3143 = vpop.permute.xlu0 %3142
  %3144 = vrot.lane.b32.xlu0 %v2958, 40
  %v3145 = vpop.permute.xlu0 %3144
  %3146 = vrot.lane.b32.xlu0 %v3115, 40
  %v3147 = vpop.permute.xlu0 %3146
  %3164 = vrot.lane.b32.xlu0 %v2753, 48
  %v3165 = vpop.permute.xlu0 %3164
  %3166 = vrot.lane.b32.xlu0 %v2754, 48
  %v3167 = vpop.permute.xlu0 %3166
  %3168 = vrot.lane.b32.xlu0 %v2755, 48
  %v3169 = vpop.permute.xlu0 %3168
  %3170 = vrot.lane.b32.xlu0 %v2756, 48
  %v3171 = vpop.permute.xlu0 %3170
  %3172 = vrot.lane.b32.xlu0 %v2757, 48
  %v3173 = vpop.permute.xlu0 %3172
  %3174 = vrot.lane.b32.xlu0 %v2758, 48
  %v3175 = vpop.permute.xlu0 %3174
  %3176 = vrot.lane.b32.xlu0 %v2759, 48
  %v3177 = vpop.permute.xlu0 %3176
  %3178 = vrot.lane.b32.xlu0 %v2751, 48
  %v3179 = vpop.permute.xlu0 %3178
  %3180 = vrot.lane.b32.xlu0 %v2761, 48
  %v3181 = vpop.permute.xlu0 %3180
  %3182 = vrot.lane.b32.xlu0 %v2762, 48
  %v3183 = vpop.permute.xlu0 %3182
  %3184 = vrot.lane.b32.xlu0 %v2763, 48
  %v3185 = vpop.permute.xlu0 %3184
  %3186 = vrot.lane.b32.xlu0 %v2764, 48
  %v3187 = vpop.permute.xlu0 %3186
  %3188 = vrot.lane.b32.xlu0 %v2765, 48
  %v3189 = vpop.permute.xlu0 %3188
  %3190 = vrot.lane.b32.xlu0 %v2766, 48
  %v3191 = vpop.permute.xlu0 %3190
  %3192 = vrot.lane.b32.xlu0 %v2767, 48
  %v3193 = vpop.permute.xlu0 %3192
  %3209 = vrot.lane.b32.xlu0 %v2832, 56
  %v3210 = vpop.permute.xlu0 %3209
  %3211 = vrot.lane.b32.xlu0 %v2835, 56
  %v3212 = vpop.permute.xlu0 %3211
  %3213 = vrot.lane.b32.xlu0 %v2838, 56
  %v3214 = vpop.permute.xlu0 %3213
  %3215 = vrot.lane.b32.xlu0 %v2841, 56
  %v3216 = vpop.permute.xlu0 %3215
  %3217 = vrot.lane.b32.xlu0 %v2844, 56
  %v3218 = vpop.permute.xlu0 %3217
  %3219 = vrot.lane.b32.xlu0 %v2847, 56
  %v3220 = vpop.permute.xlu0 %3219
  %3221 = vrot.lane.b32.xlu0 %v3058, 56
  %v3222 = vpop.permute.xlu0 %3221
  %3223 = vrot.lane.b32.xlu0 %v2826, 56
  %v3224 = vpop.permute.xlu0 %3223
  %3225 = vrot.lane.b32.xlu0 %v2853, 56
  %v3226 = vpop.permute.xlu0 %3225
  %3227 = vrot.lane.b32.xlu0 %v2856, 56
  %v3228 = vpop.permute.xlu0 %3227
  %3229 = vrot.lane.b32.xlu0 %v2859, 56
  %v3230 = vpop.permute.xlu0 %3229
  %3231 = vrot.lane.b32.xlu0 %v2862, 56
  %v3232 = vpop.permute.xlu0 %3231
  %3233 = vrot.lane.b32.xlu0 %v2865, 56
  %v3234 = vpop.permute.xlu0 %3233
  %3235 = vrot.lane.b32.xlu0 %v2868, 56
  %v3236 = vpop.permute.xlu0 %3235
  %3237 = vrot.lane.b32.xlu0 %v3061, 56
  %v3238 = vpop.permute.xlu0 %3237
  %3254 = vrot.lane.b32.xlu0 %v2922, 64
  %v3255 = vpop.permute.xlu0 %3254
  %3256 = vrot.lane.b32.xlu0 %v2925, 64
  %v3257 = vpop.permute.xlu0 %3256
  %3258 = vrot.lane.b32.xlu0 %v2928, 64
  %v3259 = vpop.permute.xlu0 %3258
  %3260 = vrot.lane.b32.xlu0 %v2931, 64
  %v3261 = vpop.permute.xlu0 %3260
  %3262 = vrot.lane.b32.xlu0 %v2934, 64
  %v3263 = vpop.permute.xlu0 %3262
  %3264 = vrot.lane.b32.xlu0 %v2937, 64
  %v3265 = vpop.permute.xlu0 %3264
  %3266 = vrot.lane.b32.xlu0 %v3112, 64
  %v3267 = vpop.permute.xlu0 %3266
  %3268 = vrot.lane.b32.xlu0 %v2916, 64
  %v3269 = vpop.permute.xlu0 %3268
  %3270 = vrot.lane.b32.xlu0 %v2943, 64
  %v3271 = vpop.permute.xlu0 %3270
  %3272 = vrot.lane.b32.xlu0 %v2946, 64
  %v3273 = vpop.permute.xlu0 %3272
  %3274 = vrot.lane.b32.xlu0 %v2949, 64
  %v3275 = vpop.permute.xlu0 %3274
  %3276 = vrot.lane.b32.xlu0 %v2952, 64
  %v3277 = vpop.permute.xlu0 %3276
  %3278 = vrot.lane.b32.xlu0 %v2955, 64
  %v3279 = vpop.permute.xlu0 %3278
  %3280 = vrot.lane.b32.xlu0 %v2958, 64
  %v3281 = vpop.permute.xlu0 %3280
  %3282 = vrot.lane.b32.xlu0 %v3115, 64
  %v3283 = vpop.permute.xlu0 %3282
  %v3299 = vsel %vm1190, %v2751, %v2870
  %v3300 = vsel %vm1190, %v2752, %v2872
  %v3301 = vsel %vm1190, %v2753, %v2874
  %v3302 = vsel %vm1190, %v2754, %v2876
  %v3303 = vsel %vm1190, %v2755, %v2878
  %v3304 = vsel %vm1190, %v2756, %v2880
  %v3305 = vsel %vm1190, %v2757, %v2882
  %v3306 = vsel %vm1190, %v2758, %v2884
  %v3307 = vsel %vm1190, %v2760, %v2886
  %v3308 = vsel %vm1190, %v2761, %v2888
  %v3309 = vsel %vm1190, %v2762, %v2890
  %v3310 = vsel %vm1190, %v2763, %v2892
  %v3311 = vsel %vm1190, %v2764, %v2894
  %v3312 = vsel %vm1190, %v2765, %v2896
  %v3313 = vsel %vm1190, %v2766, %v2898
  %v3314 = vsel %vm1224, %v3299, %v2960
  %v3315 = vsel %vm1224, %v3300, %v2962
  %v3316 = vsel %vm1224, %v3301, %v2964
  %v3317 = vsel %vm1224, %v3302, %v2966
  %v3318 = vsel %vm1224, %v3303, %v2968
  %v3319 = vsel %vm1224, %v3304, %v2970
  %v3320 = vsel %vm1224, %v3305, %v2972
  %v3321 = vsel %vm1224, %v3306, %v2974
  %v3322 = vsel %vm1224, %v3307, %v2976
  %v3323 = vsel %vm1224, %v3308, %v2978
  %v3324 = vsel %vm1224, %v3309, %v2980
  %v3325 = vsel %vm1224, %v3310, %v2982
  %v3326 = vsel %vm1224, %v3311, %v2984
  %v3327 = vsel %vm1224, %v3312, %v2986
  %v3328 = vsel %vm1224, %v3313, %v2988
  %v3329 = vsel %vm1258, %v3314, %v3007
  %v3330 = vsel %vm1258, %v3315, %v3009
  %v3331 = vsel %vm1258, %v3316, %v3011
  %v3332 = vsel %vm1258, %v3317, %v3013
  %v3333 = vsel %vm1258, %v3318, %v3015
  %v3334 = vsel %vm1258, %v3319, %v3017
  %v3335 = vsel %vm1258, %v3320, %v3019
  %v3336 = vsel %vm1258, %v3321, %v3021
  %v3337 = vsel %vm1258, %v3314, %v3023
  %v3338 = vsel %vm1258, %v3322, %v3025
  %v3339 = vsel %vm1258, %v3323, %v3027
  %v3340 = vsel %vm1258, %v3324, %v3029
  %v3341 = vsel %vm1258, %v3325, %v3031
  %v3342 = vsel %vm1258, %v3326, %v3033
  %v3343 = vsel %vm1258, %v3327, %v3035
  %v3344 = vsel %vm1258, %v3328, %v3037
  %v3345 = vsel %vm1292, %v3329, %v3063
  %v3346 = vsel %vm1292, %v3330, %v3065
  %v3347 = vsel %vm1292, %v3331, %v3067
  %v3348 = vsel %vm1292, %v3332, %v3069
  %v3349 = vsel %vm1292, %v3333, %v3071
  %v3350 = vsel %vm1292, %v3334, %v3073
  %v3351 = vsel %vm1292, %v3335, %v3075
  %v3352 = vsel %vm1292, %v3336, %v3077
  %v3353 = vsel %vm1292, %v3337, %v3079
  %v3354 = vsel %vm1292, %v3338, %v3081
  %v3355 = vsel %vm1292, %v3339, %v3083
  %v3356 = vsel %vm1292, %v3340, %v3085
  %v3357 = vsel %vm1292, %v3341, %v3087
  %v3358 = vsel %vm1292, %v3342, %v3089
  %v3359 = vsel %vm1292, %v3343, %v3091
  %v3360 = vsel %vm1292, %v3344, %v3093
  %vm3361 = vcmask 326656
  %v3362 = vsel %vm3361, %v3345, %v3117
  %v3363 = vsel %vm3361, %v3346, %v3119
  %v3364 = vsel %vm3361, %v3347, %v3121
  %v3365 = vsel %vm3361, %v3348, %v3123
  %v3366 = vsel %vm3361, %v3349, %v3125
  %v3367 = vsel %vm3361, %v3350, %v3127
  %v3368 = vsel %vm3361, %v3351, %v3129
  %v3369 = vsel %vm3361, %v3352, %v3131
  %v3370 = vsel %vm3361, %v3353, %v3133
  %v3371 = vsel %vm3361, %v3354, %v3135
  %v3372 = vsel %vm3361, %v3355, %v3137
  %v3373 = vsel %vm3361, %v3356, %v3139
  %v3374 = vsel %vm3361, %v3357, %v3141
  %v3375 = vsel %vm3361, %v3358, %v3143
  %v3376 = vsel %vm3361, %v3359, %v3145
  %v3377 = vsel %vm3361, %v3360, %v3147
  %vm3378 = vcmask 392192
  %v3379 = vsel %vm3378, %v3362, %v3165
  %v3380 = vsel %vm3378, %v3363, %v3167
  %v3381 = vsel %vm3378, %v3364, %v3169
  %v3382 = vsel %vm3378, %v3365, %v3171
  %v3383 = vsel %vm3378, %v3366, %v3173
  %v3384 = vsel %vm3378, %v3367, %v3175
  %v3385 = vsel %vm3378, %v3368, %v3177
  %v3386 = vsel %vm3378, %v3369, %v3179
  %v3387 = vsel %vm3378, %v3370, %v3181
  %v3388 = vsel %vm3378, %v3371, %v3183
  %v3389 = vsel %vm3378, %v3372, %v3185
  %v3390 = vsel %vm3378, %v3373, %v3187
  %v3391 = vsel %vm3378, %v3374, %v3189
  %v3392 = vsel %vm3378, %v3375, %v3191
  %v3393 = vsel %vm3378, %v3376, %v3193
  %v3394 = vsel %vm3378, %v3377, %v3179
  %vm3395 = vcmask 457728
  %v3396 = vsel %vm3395, %v3379, %v3210
  %v3397 = vsel %vm3395, %v3380, %v3212
  %v3398 = vsel %vm3395, %v3381, %v3214
  %v3399 = vsel %vm3395, %v3382, %v3216
  %v3400 = vsel %vm3395, %v3383, %v3218
  %v3401 = vsel %vm3395, %v3384, %v3220
  %v3402 = vsel %vm3395, %v3385, %v3222
  %v3403 = vsel %vm3395, %v3386, %v3224
  %v3404 = vsel %vm3395, %v3387, %v3226
  %v3405 = vsel %vm3395, %v3388, %v3228
  %v3406 = vsel %vm3395, %v3389, %v3230
  %v3407 = vsel %vm3395, %v3390, %v3232
  %v3408 = vsel %vm3395, %v3391, %v3234
  %v3409 = vsel %vm3395, %v3392, %v3236
  %v3410 = vsel %vm3395, %v3393, %v3238
  %v3411 = vsel %vm3395, %v3394, %v3224
  %vm3412 = vcmask 523264
  %v3413 = vsel %vm3412, %v3396, %v3255
  %v3414 = vsel %vm3412, %v3397, %v3257
  %v3415 = vsel %vm3412, %v3398, %v3259
  %v3416 = vsel %vm3412, %v3399, %v3261
  %v3417 = vsel %vm3412, %v3400, %v3263
  %v3418 = vsel %vm3412, %v3401, %v3265
  %v3419 = vsel %vm3412, %v3402, %v3267
  %v3420 = vsel %vm3412, %v3403, %v3269
  %v3421 = vsel %vm3412, %v3404, %v3271
  %v3422 = vsel %vm3412, %v3405, %v3273
  %v3423 = vsel %vm3412, %v3406, %v3275
  %v3424 = vsel %vm3412, %v3407, %v3277
  %v3425 = vsel %vm3412, %v3408, %v3279
  %v3426 = vsel %vm3412, %v3409, %v3281
  %v3427 = vsel %vm3412, %v3410, %v3283
  %v3428 = vsel %vm3412, %v3411, %v3269
  %3429 = vxpose.xlu0.b32.start [1/16] %v2785, 128
  %3430 = vxpose.xlu0.b32.cont [2/16] %v2786, 128
  %3431 = vxpose.xlu0.b32.cont [3/16] %v2787, 128
  %3432 = vxpose.xlu0.b32.cont [4/16] %v2788, 128
  %3433 = vxpose.xlu0.b32.cont [5/16] %v2789, 128
  %3434 = vxpose.xlu0.b32.cont [6/16] %v2790, 128
  %3435 = vxpose.xlu0.b32.cont [7/16] %v2791, 128
  %3436 = vxpose.xlu0.b32.cont [8/16] %v2792, 128
  %3437 = vxpose.xlu0.b32.cont [9/16] %v2793, 128
  %3438 = vxpose.xlu0.b32.cont [10/16] 0.0, 128
  %3439 = vxpose.xlu0.b32.cont [11/16] 0.0, 128
  %3440 = vxpose.xlu0.b32.cont [12/16] 0.0, 128
  %3441 = vxpose.xlu0.b32.cont [13/16] 0.0, 128
  %3442 = vxpose.xlu0.b32.cont [14/16] 0.0, 128
  %3443 = vxpose.xlu0.b32.cont [15/16] 0.0, 128
  %3444 = vxpose.xlu0.b32.end [16/16] 0.0, 128
  %v3445 = vpop.trf.xlu0
  %v3446 = vpop.trf.xlu0
  %v3447 = vpop.trf.xlu0
  %v3448 = vpop.trf.xlu0
  %v3449 = vpop.trf.xlu0
  %v3450 = vpop.trf.xlu0
  %v3451 = vpop.trf.xlu0
  %v3452 = vpop.trf.xlu0
  %v3453 = vpop.trf.xlu0
  %v3454 = vpop.trf.xlu0
  %v3455 = vpop.trf.xlu0
  %v3456 = vpop.trf.xlu0
  %v3457 = vpop.trf.xlu0
  %v3458 = vpop.trf.xlu0
  %v3459 = vpop.trf.xlu0
  %v3460 = vpop.trf.xlu0
  %vm3461 = vcmask 588800
  %v3463 = vsel %vm3461, %v3445, 0
  %v3466 = vsel %vm3461, %v3413, 0
  %v3469 = vsel %vm3461, %v3414, 0
  %v3472 = vsel %vm3461, %v3415, 0
  %v3475 = vsel %vm3461, %v3416, 0
  %v3478 = vsel %vm3461, %v3417, 0
  %v3481 = vsel %vm3461, %v3418, 0
  %v3484 = vsel %vm3461, %v3419, 0
  %v3487 = vsel %vm3461, %v3420, 0
  %v3490 = vsel %vm3461, %v3421, 0
  %v3493 = vsel %vm3461, %v3422, 0
  %v3496 = vsel %vm3461, %v3423, 0
  %v3499 = vsel %vm3461, %v3424, 0
  %v3502 = vsel %vm3461, %v3425, 0
  %v3505 = vsel %vm3461, %v3426, 0
  %v3508 = vsel %vm3461, %v3427, 0
  %v3511 = vsel %vm3461, %v3428, 0
  %3513 = vmatprep.subr.mxu0 0.0
  %v3514 = vand.u32 %v3466, 4294901760
  %3515 = vmatpush1.xpose.msra.mxu0 %v3514
  %3516 = vmatprep.subr.mxu0 0.0
  %v3517 = vand.u32 %v3469, 4294901760
  %3518 = vmatpush1.xpose.msra.mxu0 %v3517
  %3519 = vmatprep.subr.mxu0 0.0
  %v3520 = vand.u32 %v3472, 4294901760
  %3521 = vmatpush1.xpose.msra.mxu0 %v3520
  %3522 = vmatprep.subr.mxu0 0.0
  %v3523 = vand.u32 %v3475, 4294901760
  %3524 = vmatpush1.xpose.msra.mxu0 %v3523
  %3525 = vmatprep.subr.mxu0 0.0
  %v3526 = vand.u32 %v3478, 4294901760
  %3527 = vmatpush1.xpose.msra.mxu0 %v3526
  %3528 = vmatprep.subr.mxu0 0.0
  %v3529 = vand.u32 %v3481, 4294901760
  %3530 = vmatpush1.xpose.msra.mxu0 %v3529
  %3531 = vmatprep.subr.mxu0 0.0
  %v3532 = vand.u32 %v3484, 4294901760
  %3533 = vmatpush1.xpose.msra.mxu0 %v3532
  %3534 = vmatprep.subr.mxu0 0.0
  %v3535 = vand.u32 %v3487, 4294901760
  %3536 = vmatpush1.xpose.msra.mxu0 %v3535
  %3537 = vmatprep.subr.mxu0 0.0
  %v3538 = vand.u32 %v3490, 4294901760
  %3539 = vmatpush1.xpose.msra.mxu0 %v3538
  %3540 = vmatprep.subr.mxu0 0.0
  %v3541 = vand.u32 %v3493, 4294901760
  %3542 = vmatpush1.xpose.msra.mxu0 %v3541
  %3543 = vmatprep.subr.mxu0 0.0
  %v3544 = vand.u32 %v3496, 4294901760
  %3545 = vmatpush1.xpose.msra.mxu0 %v3544
  %3546 = vmatprep.subr.mxu0 0.0
  %v3547 = vand.u32 %v3499, 4294901760
  %3548 = vmatpush1.xpose.msra.mxu0 %v3547
  %3549 = vmatprep.subr.mxu0 0.0
  %v3550 = vand.u32 %v3502, 4294901760
  %3551 = vmatpush1.xpose.msra.mxu0 %v3550
  %3552 = vmatprep.subr.mxu0 0.0
  %v3553 = vand.u32 %v3505, 4294901760
  %3554 = vmatpush1.xpose.msra.mxu0 %v3553
  %3555 = vmatprep.subr.mxu0 0.0
  %v3556 = vand.u32 %v3508, 4294901760
  %3557 = vmatpush1.xpose.msra.mxu0 %v3556
  %3558 = vmatprep.subr.mxu0 0.0
  %v3559 = vand.u32 %v3511, 4294901760
  %3560 = vmatpush1.xpose.msra.mxu0 %v3559
  %3561 = vmatprep.subr.mxu0 0.0
  %3562 = vmatpush1.xpose.msra.mxu0 0.0
  %3563 = vmatprep.subr.mxu0 0.0
  %3564 = vmatpush1.xpose.msra.mxu0 0.0
  %3565 = vmatprep.subr.mxu0 0.0
  %3566 = vmatpush1.xpose.msra.mxu0 0.0
  %3567 = vmatprep.subr.mxu0 0.0
  %3568 = vmatpush1.xpose.msra.mxu0 0.0
  %3569 = vmatprep.subr.mxu0 0.0
  %3570 = vmatpush1.xpose.msra.mxu0 0.0
  %3571 = vmatprep.subr.mxu0 0.0
  %3572 = vmatpush1.xpose.msra.mxu0 0.0
  %3573 = vmatprep.subr.mxu0 0.0
  %3574 = vmatpush1.xpose.msra.mxu0 0.0
  %3575 = vmatprep.subr.mxu0 0.0
  %3576 = vmatpush1.xpose.msra.mxu0 0.0
  %3577 = vmatprep.subr.mxu0 0.0
  %3578 = vmatpush1.xpose.msra.mxu0 0.0
  %3579 = vmatprep.subr.mxu0 0.0
  %3580 = vmatpush1.xpose.msra.mxu0 0.0
  %3581 = vmatprep.subr.mxu0 0.0
  %3582 = vmatpush1.xpose.msra.mxu0 0.0
  %3583 = vmatprep.subr.mxu0 0.0
  %3584 = vmatpush1.xpose.msra.mxu0 0.0
  %3585 = vmatprep.subr.mxu0 0.0
  %3586 = vmatpush1.xpose.msra.mxu0 0.0
  %3587 = vmatprep.subr.mxu0 0.0
  %3588 = vmatpush1.xpose.msra.mxu0 0.0
  %3589 = vmatprep.subr.mxu0 0.0
  %3590 = vmatpush1.xpose.msra.mxu0 0.0
  %3591 = vmatprep.subr.mxu0 0.0
  %3592 = vmatpush1.xpose.msra.mxu0 0.0
  %3593 = vmatprep.mubr.f32.mxu0 0.0
  %v3594 = vand.u32 %v3463, 4294901760
  %v3595 = vsub.f32 %v3463, %v3594
  %v3596 = vand.u32 %v3595, 4294901760
  %v3597 = vsub.f32 %v3595, %v3596
  %v3598 = vand.u32 %v3597, 4294901760
  %3599 = vmatmul.mubr.f32.gmra.mrb[0].mxu0 %v3598
  %v3600 = vpop.f32.mrb[0].mxu0
  %v3601 = vadd.f32 0.0, %v3600
  %v3602 = vpop.f32.mrb[0].mxu0
  %3603 = vdwg.mxu0
  %3604 = vmatprep.subr.mxu0 0.0
  %v3605 = vand.u32 %v3466, 4294901760
  %v3606 = vsub.f32 %v3466, %v3605
  %v3607 = vand.u32 %v3606, 4294901760
  %v3608 = vsub.f32 %v3606, %v3607
  %v3609 = vand.u32 %v3608, 4294901760
  %3610 = vmatpush1.xpose.msra.mxu0 %v3609
  %3611 = vmatprep.subr.mxu0 0.0
  %v3612 = vand.u32 %v3469, 4294901760
  %v3613 = vsub.f32 %v3469, %v3612
  %v3614 = vand.u32 %v3613, 4294901760
  %v3615 = vsub.f32 %v3613, %v3614
  %v3616 = vand.u32 %v3615, 4294901760
  %3617 = vmatpush1.xpose.msra.mxu0 %v3616
  %3618 = vmatprep.subr.mxu0 0.0
  %v3619 = vand.u32 %v3472, 4294901760
  %v3620 = vsub.f32 %v3472, %v3619
  %v3621 = vand.u32 %v3620, 4294901760
  %v3622 = vsub.f32 %v3620, %v3621
  %v3623 = vand.u32 %v3622, 4294901760
  %3624 = vmatpush1.xpose.msra.mxu0 %v3623
  %3625 = vmatprep.subr.mxu0 0.0
  %v3626 = vand.u32 %v3475, 4294901760
  %v3627 = vsub.f32 %v3475, %v3626
  %v3628 = vand.u32 %v3627, 4294901760
  %v3629 = vsub.f32 %v3627, %v3628
  %v3630 = vand.u32 %v3629, 4294901760
  %3631 = vmatpush1.xpose.msra.mxu0 %v3630
  %3632 = vmatprep.subr.mxu0 0.0
  %v3633 = vand.u32 %v3478, 4294901760
  %v3634 = vsub.f32 %v3478, %v3633
  %v3635 = vand.u32 %v3634, 4294901760
  %v3636 = vsub.f32 %v3634, %v3635
  %v3637 = vand.u32 %v3636, 4294901760
  %3638 = vmatpush1.xpose.msra.mxu0 %v3637
  %3639 = vmatprep.subr.mxu0 0.0
  %v3640 = vand.u32 %v3481, 4294901760
  %v3641 = vsub.f32 %v3481, %v3640
  %v3642 = vand.u32 %v3641, 4294901760
  %v3643 = vsub.f32 %v3641, %v3642
  %v3644 = vand.u32 %v3643, 4294901760
  %3645 = vmatpush1.xpose.msra.mxu0 %v3644
  %3646 = vmatprep.subr.mxu0 0.0
  %v3647 = vand.u32 %v3484, 4294901760
  %v3648 = vsub.f32 %v3484, %v3647
  %v3649 = vand.u32 %v3648, 4294901760
  %v3650 = vsub.f32 %v3648, %v3649
  %v3651 = vand.u32 %v3650, 4294901760
  %3652 = vmatpush1.xpose.msra.mxu0 %v3651
  %3653 = vmatprep.subr.mxu0 0.0
  %v3654 = vand.u32 %v3487, 4294901760
  %v3655 = vsub.f32 %v3487, %v3654
  %v3656 = vand.u32 %v3655, 4294901760
  %v3657 = vsub.f32 %v3655, %v3656
  %v3658 = vand.u32 %v3657, 4294901760
  %3659 = vmatpush1.xpose.msra.mxu0 %v3658
  %3660 = vmatprep.subr.mxu0 0.0
  %v3661 = vand.u32 %v3490, 4294901760
  %v3662 = vsub.f32 %v3490, %v3661
  %v3663 = vand.u32 %v3662, 4294901760
  %v3664 = vsub.f32 %v3662, %v3663
  %v3665 = vand.u32 %v3664, 4294901760
  %3666 = vmatpush1.xpose.msra.mxu0 %v3665
  %3667 = vmatprep.subr.mxu0 0.0
  %v3668 = vand.u32 %v3493, 4294901760
  %v3669 = vsub.f32 %v3493, %v3668
  %v3670 = vand.u32 %v3669, 4294901760
  %v3671 = vsub.f32 %v3669, %v3670
  %v3672 = vand.u32 %v3671, 4294901760
  %3673 = vmatpush1.xpose.msra.mxu0 %v3672
  %3674 = vmatprep.subr.mxu0 0.0
  %v3675 = vand.u32 %v3496, 4294901760
  %v3676 = vsub.f32 %v3496, %v3675
  %v3677 = vand.u32 %v3676, 4294901760
  %v3678 = vsub.f32 %v3676, %v3677
  %v3679 = vand.u32 %v3678, 4294901760
  %3680 = vmatpush1.xpose.msra.mxu0 %v3679
  %3681 = vmatprep.subr.mxu0 0.0
  %v3682 = vand.u32 %v3499, 4294901760
  %v3683 = vsub.f32 %v3499, %v3682
  %v3684 = vand.u32 %v3683, 4294901760
  %v3685 = vsub.f32 %v3683, %v3684
  %v3686 = vand.u32 %v3685, 4294901760
  %3687 = vmatpush1.xpose.msra.mxu0 %v3686
  %3688 = vmatprep.subr.mxu0 0.0
  %v3689 = vand.u32 %v3502, 4294901760
  %v3690 = vsub.f32 %v3502, %v3689
  %v3691 = vand.u32 %v3690, 4294901760
  %v3692 = vsub.f32 %v3690, %v3691
  %v3693 = vand.u32 %v3692, 4294901760
  %3694 = vmatpush1.xpose.msra.mxu0 %v3693
  %3695 = vmatprep.subr.mxu0 0.0
  %v3696 = vand.u32 %v3505, 4294901760
  %v3697 = vsub.f32 %v3505, %v3696
  %v3698 = vand.u32 %v3697, 4294901760
  %v3699 = vsub.f32 %v3697, %v3698
  %v3700 = vand.u32 %v3699, 4294901760
  %3701 = vmatpush1.xpose.msra.mxu0 %v3700
  %3702 = vmatprep.subr.mxu0 0.0
  %v3703 = vand.u32 %v3508, 4294901760
  %v3704 = vsub.f32 %v3508, %v3703
  %v3705 = vand.u32 %v3704, 4294901760
  %v3706 = vsub.f32 %v3704, %v3705
  %v3707 = vand.u32 %v3706, 4294901760
  %3708 = vmatpush1.xpose.msra.mxu0 %v3707
  %3709 = vmatprep.subr.mxu0 0.0
  %v3710 = vand.u32 %v3511, 4294901760
  %v3711 = vsub.f32 %v3511, %v3710
  %v3712 = vand.u32 %v3711, 4294901760
  %v3713 = vsub.f32 %v3711, %v3712
  %v3714 = vand.u32 %v3713, 4294901760
  %3715 = vmatpush1.xpose.msra.mxu0 %v3714
  %3716 = vmatprep.subr.mxu0 0.0
  %3717 = vmatpush1.xpose.msra.mxu0 0.0
  %3718 = vmatprep.subr.mxu0 0.0
  %3719 = vmatpush1.xpose.msra.mxu0 0.0
  %3720 = vmatprep.subr.mxu0 0.0
  %3721 = vmatpush1.xpose.msra.mxu0 0.0
  %3722 = vmatprep.subr.mxu0 0.0
  %3723 = vmatpush1.xpose.msra.mxu0 0.0
  %3724 = vmatprep.subr.mxu0 0.0
  %3725 = vmatpush1.xpose.msra.mxu0 0.0
  %3726 = vmatprep.subr.mxu0 0.0
  %3727 = vmatpush1.xpose.msra.mxu0 0.0
  %3728 = vmatprep.subr.mxu0 0.0
  %3729 = vmatpush1.xpose.msra.mxu0 0.0
  %3730 = vmatprep.subr.mxu0 0.0
  %3731 = vmatpush1.xpose.msra.mxu0 0.0
  %3732 = vmatprep.subr.mxu0 0.0
  %3733 = vmatpush1.xpose.msra.mxu0 0.0
  %3734 = vmatprep.subr.mxu0 0.0
  %3735 = vmatpush1.xpose.msra.mxu0 0.0
  %3736 = vmatprep.subr.mxu0 0.0
  %3737 = vmatpush1.xpose.msra.mxu0 0.0
  %3738 = vmatprep.subr.mxu0 0.0
  %3739 = vmatpush1.xpose.msra.mxu0 0.0
  %3740 = vmatprep.subr.mxu0 0.0
  %3741 = vmatpush1.xpose.msra.mxu0 0.0
  %3742 = vmatprep.subr.mxu0 0.0
  %3743 = vmatpush1.xpose.msra.mxu0 0.0
  %3744 = vmatprep.subr.mxu0 0.0
  %3745 = vmatpush1.xpose.msra.mxu0 0.0
  %3746 = vmatprep.subr.mxu0 0.0
  %3747 = vmatpush1.xpose.msra.mxu0 0.0
  %3748 = vmatprep.mubr.f32.mxu0 0.0
  %v3749 = vand.u32 %v3463, 4294901760
  %3750 = vmatmul.mubr.f32.gmra.mrb[0].mxu0 %v3749
  %v3751 = vpop.f32.mrb[0].mxu0
  %v3752 = vadd.f32 %v3601, %v3751
  %v3753 = vpop.f32.mrb[0].mxu0
  %3754 = vdwg.mxu0
  %3755 = vmatprep.subr.mxu0 0.0
  %v3756 = vand.u32 %v3466, 4294901760
  %v3757 = vsub.f32 %v3466, %v3756
  %3758 = vmatpush1.xpose.msra.mxu0 %v3757
  %3759 = vmatprep.subr.mxu0 0.0
  %v3760 = vand.u32 %v3469, 4294901760
  %v3761 = vsub.f32 %v3469, %v3760
  %3762 = vmatpush1.xpose.msra.mxu0 %v3761
  %3763 = vmatprep.subr.mxu0 0.0
  %v3764 = vand.u32 %v3472, 4294901760
  %v3765 = vsub.f32 %v3472, %v3764
  %3766 = vmatpush1.xpose.msra.mxu0 %v3765
  %3767 = vmatprep.subr.mxu0 0.0
  %v3768 = vand.u32 %v3475, 4294901760
  %v3769 = vsub.f32 %v3475, %v3768
  %3770 = vmatpush1.xpose.msra.mxu0 %v3769
  %3771 = vmatprep.subr.mxu0 0.0
  %v3772 = vand.u32 %v3478, 4294901760
  %v3773 = vsub.f32 %v3478, %v3772
  %3774 = vmatpush1.xpose.msra.mxu0 %v3773
  %3775 = vmatprep.subr.mxu0 0.0
  %v3776 = vand.u32 %v3481, 4294901760
  %v3777 = vsub.f32 %v3481, %v3776
  %3778 = vmatpush1.xpose.msra.mxu0 %v3777
  %3779 = vmatprep.subr.mxu0 0.0
  %v3780 = vand.u32 %v3484, 4294901760
  %v3781 = vsub.f32 %v3484, %v3780
  %3782 = vmatpush1.xpose.msra.mxu0 %v3781
  %3783 = vmatprep.subr.mxu0 0.0
  %v3784 = vand.u32 %v3487, 4294901760
  %v3785 = vsub.f32 %v3487, %v3784
  %3786 = vmatpush1.xpose.msra.mxu0 %v3785
  %3787 = vmatprep.subr.mxu0 0.0
  %v3788 = vand.u32 %v3490, 4294901760
  %v3789 = vsub.f32 %v3490, %v3788
  %3790 = vmatpush1.xpose.msra.mxu0 %v3789
  %3791 = vmatprep.subr.mxu0 0.0
  %v3792 = vand.u32 %v3493, 4294901760
  %v3793 = vsub.f32 %v3493, %v3792
  %3794 = vmatpush1.xpose.msra.mxu0 %v3793
  %3795 = vmatprep.subr.mxu0 0.0
  %v3796 = vand.u32 %v3496, 4294901760
  %v3797 = vsub.f32 %v3496, %v3796
  %3798 = vmatpush1.xpose.msra.mxu0 %v3797
  %3799 = vmatprep.subr.mxu0 0.0
  %v3800 = vand.u32 %v3499, 4294901760
  %v3801 = vsub.f32 %v3499, %v3800
  %3802 = vmatpush1.xpose.msra.mxu0 %v3801
  %3803 = vmatprep.subr.mxu0 0.0
  %v3804 = vand.u32 %v3502, 4294901760
  %v3805 = vsub.f32 %v3502, %v3804
  %3806 = vmatpush1.xpose.msra.mxu0 %v3805
  %3807 = vmatprep.subr.mxu0 0.0
  %v3808 = vand.u32 %v3505, 4294901760
  %v3809 = vsub.f32 %v3505, %v3808
  %3810 = vmatpush1.xpose.msra.mxu0 %v3809
  %3811 = vmatprep.subr.mxu0 0.0
  %v3812 = vand.u32 %v3508, 4294901760
  %v3813 = vsub.f32 %v3508, %v3812
  %3814 = vmatpush1.xpose.msra.mxu0 %v3813
  %3815 = vmatprep.subr.mxu0 0.0
  %v3816 = vand.u32 %v3511, 4294901760
  %v3817 = vsub.f32 %v3511, %v3816
  %3818 = vmatpush1.xpose.msra.mxu0 %v3817
  %3819 = vmatprep.subr.mxu0 0.0
  %3820 = vmatpush1.xpose.msra.mxu0 0.0
  %3821 = vmatprep.subr.mxu0 0.0
  %3822 = vmatpush1.xpose.msra.mxu0 0.0
  %3823 = vmatprep.subr.mxu0 0.0
  %3824 = vmatpush1.xpose.msra.mxu0 0.0
  %3825 = vmatprep.subr.mxu0 0.0
  %3826 = vmatpush1.xpose.msra.mxu0 0.0
  %3827 = vmatprep.subr.mxu0 0.0
  %3828 = vmatpush1.xpose.msra.mxu0 0.0
  %3829 = vmatprep.subr.mxu0 0.0
  %3830 = vmatpush1.xpose.msra.mxu0 0.0
  %3831 = vmatprep.subr.mxu0 0.0
  %3832 = vmatpush1.xpose.msra.mxu0 0.0
  %3833 = vmatprep.subr.mxu0 0.0
  %3834 = vmatpush1.xpose.msra.mxu0 0.0
  %3835 = vmatprep.subr.mxu0 0.0
  %3836 = vmatpush1.xpose.msra.mxu0 0.0
  %3837 = vmatprep.subr.mxu0 0.0
  %3838 = vmatpush1.xpose.msra.mxu0 0.0
  %3839 = vmatprep.subr.mxu0 0.0
  %3840 = vmatpush1.xpose.msra.mxu0 0.0
  %3841 = vmatprep.subr.mxu0 0.0
  %3842 = vmatpush1.xpose.msra.mxu0 0.0
  %3843 = vmatprep.subr.mxu0 0.0
  %3844 = vmatpush1.xpose.msra.mxu0 0.0
  %3845 = vmatprep.subr.mxu0 0.0
  %3846 = vmatpush1.xpose.msra.mxu0 0.0
  %3847 = vmatprep.subr.mxu0 0.0
  %3848 = vmatpush1.xpose.msra.mxu0 0.0
  %3849 = vmatprep.subr.mxu0 0.0
  %3850 = vmatpush1.xpose.msra.mxu0 0.0
  %3851 = vmatprep.mubr.f32.mxu0 0.0
  %v3852 = vand.u32 %v3463, 4294901760
  %v3853 = vsub.f32 %v3463, %v3852
  %3854 = vmatmul.mubr.f32.gmra.mrb[0].mxu0 %v3853
  %v3855 = vpop.f32.mrb[0].mxu0
  %v3856 = vadd.f32 %v3752, %v3855
  %v3857 = vpop.f32.mrb[0].mxu0
  %3858 = vdwg.mxu0
  %3859 = vmatprep.subr.mxu0 0.0
  %v3860 = vand.u32 %v3466, 4294901760
  %3861 = vmatpush1.xpose.msra.mxu0 %v3860
  %3862 = vmatprep.subr.mxu0 0.0
  %v3863 = vand.u32 %v3469, 4294901760
  %3864 = vmatpush1.xpose.msra.mxu0 %v3863
  %3865 = vmatprep.subr.mxu0 0.0
  %v3866 = vand.u32 %v3472, 4294901760
  %3867 = vmatpush1.xpose.msra.mxu0 %v3866
  %3868 = vmatprep.subr.mxu0 0.0
  %v3869 = vand.u32 %v3475, 4294901760
  %3870 = vmatpush1.xpose.msra.mxu0 %v3869
  %3871 = vmatprep.subr.mxu0 0.0
  %v3872 = vand.u32 %v3478, 4294901760
  %3873 = vmatpush1.xpose.msra.mxu0 %v3872
  %3874 = vmatprep.subr.mxu0 0.0
  %v3875 = vand.u32 %v3481, 4294901760
  %3876 = vmatpush1.xpose.msra.mxu0 %v3875
  %3877 = vmatprep.subr.mxu0 0.0
  %v3878 = vand.u32 %v3484, 4294901760
  %3879 = vmatpush1.xpose.msra.mxu0 %v3878
  %3880 = vmatprep.subr.mxu0 0.0
  %v3881 = vand.u32 %v3487, 4294901760
  %3882 = vmatpush1.xpose.msra.mxu0 %v3881
  %3883 = vmatprep.subr.mxu0 0.0
  %v3884 = vand.u32 %v3490, 4294901760
  %3885 = vmatpush1.xpose.msra.mxu0 %v3884
  %3886 = vmatprep.subr.mxu0 0.0
  %v3887 = vand.u32 %v3493, 4294901760
  %3888 = vmatpush1.xpose.msra.mxu0 %v3887
  %3889 = vmatprep.subr.mxu0 0.0
  %v3890 = vand.u32 %v3496, 4294901760
  %3891 = vmatpush1.xpose.msra.mxu0 %v3890
  %3892 = vmatprep.subr.mxu0 0.0
  %v3893 = vand.u32 %v3499, 4294901760
  %3894 = vmatpush1.xpose.msra.mxu0 %v3893
  %3895 = vmatprep.subr.mxu0 0.0
  %v3896 = vand.u32 %v3502, 4294901760
  %3897 = vmatpush1.xpose.msra.mxu0 %v3896
  %3898 = vmatprep.subr.mxu0 0.0
  %v3899 = vand.u32 %v3505, 4294901760
  %3900 = vmatpush1.xpose.msra.mxu0 %v3899
  %3901 = vmatprep.subr.mxu0 0.0
  %v3902 = vand.u32 %v3508, 4294901760
  %3903 = vmatpush1.xpose.msra.mxu0 %v3902
  %3904 = vmatprep.subr.mxu0 0.0
  %v3905 = vand.u32 %v3511, 4294901760
  %3906 = vmatpush1.xpose.msra.mxu0 %v3905
  %3907 = vmatprep.subr.mxu0 0.0
  %3908 = vmatpush1.xpose.msra.mxu0 0.0
  %3909 = vmatprep.subr.mxu0 0.0
  %3910 = vmatpush1.xpose.msra.mxu0 0.0
  %3911 = vmatprep.subr.mxu0 0.0
  %3912 = vmatpush1.xpose.msra.mxu0 0.0
  %3913 = vmatprep.subr.mxu0 0.0
  %3914 = vmatpush1.xpose.msra.mxu0 0.0
  %3915 = vmatprep.subr.mxu0 0.0
  %3916 = vmatpush1.xpose.msra.mxu0 0.0
  %3917 = vmatprep.subr.mxu0 0.0
  %3918 = vmatpush1.xpose.msra.mxu0 0.0
  %3919 = vmatprep.subr.mxu0 0.0
  %3920 = vmatpush1.xpose.msra.mxu0 0.0
  %3921 = vmatprep.subr.mxu0 0.0
  %3922 = vmatpush1.xpose.msra.mxu0 0.0
  %3923 = vmatprep.subr.mxu0 0.0
  %3924 = vmatpush1.xpose.msra.mxu0 0.0
  %3925 = vmatprep.subr.mxu0 0.0
  %3926 = vmatpush1.xpose.msra.mxu0 0.0
  %3927 = vmatprep.subr.mxu0 0.0
  %3928 = vmatpush1.xpose.msra.mxu0 0.0
  %3929 = vmatprep.subr.mxu0 0.0
  %3930 = vmatpush1.xpose.msra.mxu0 0.0
  %3931 = vmatprep.subr.mxu0 0.0
  %3932 = vmatpush1.xpose.msra.mxu0 0.0
  %3933 = vmatprep.subr.mxu0 0.0
  %3934 = vmatpush1.xpose.msra.mxu0 0.0
  %3935 = vmatprep.subr.mxu0 0.0
  %3936 = vmatpush1.xpose.msra.mxu0 0.0
  %3937 = vmatprep.subr.mxu0 0.0
  %3938 = vmatpush1.xpose.msra.mxu0 0.0
  %3939 = vmatprep.mubr.f32.mxu0 0.0
  %v3940 = vand.u32 %v3463, 4294901760
  %v3941 = vsub.f32 %v3463, %v3940
  %v3942 = vand.u32 %v3941, 4294901760
  %3943 = vmatmul.mubr.f32.gmra.mrb[0].mxu0 %v3942
  %v3944 = vpop.f32.mrb[0].mxu0
  %v3945 = vadd.f32 %v3856, %v3944
  %v3946 = vpop.f32.mrb[0].mxu0
  %3947 = vdwg.mxu0
  %3948 = vmatprep.subr.mxu0 0.0
  %v3949 = vand.u32 %v3466, 4294901760
  %v3950 = vsub.f32 %v3466, %v3949
  %v3951 = vand.u32 %v3950, 4294901760
  %3952 = vmatpush1.xpose.msra.mxu0 %v3951
  %3953 = vmatprep.subr.mxu0 0.0
  %v3954 = vand.u32 %v3469, 4294901760
  %v3955 = vsub.f32 %v3469, %v3954
  %v3956 = vand.u32 %v3955, 4294901760
  %3957 = vmatpush1.xpose.msra.mxu0 %v3956
  %3958 = vmatprep.subr.mxu0 0.0
  %v3959 = vand.u32 %v3472, 4294901760
  %v3960 = vsub.f32 %v3472, %v3959
  %v3961 = vand.u32 %v3960, 4294901760
  %3962 = vmatpush1.xpose.msra.mxu0 %v3961
  %3963 = vmatprep.subr.mxu0 0.0
  %v3964 = vand.u32 %v3475, 4294901760
  %v3965 = vsub.f32 %v3475, %v3964
  %v3966 = vand.u32 %v3965, 4294901760
  %3967 = vmatpush1.xpose.msra.mxu0 %v3966
  %3968 = vmatprep.subr.mxu0 0.0
  %v3969 = vand.u32 %v3478, 4294901760
  %v3970 = vsub.f32 %v3478, %v3969
  %v3971 = vand.u32 %v3970, 4294901760
  %3972 = vmatpush1.xpose.msra.mxu0 %v3971
  %3973 = vmatprep.subr.mxu0 0.0
  %v3974 = vand.u32 %v3481, 4294901760
  %v3975 = vsub.f32 %v3481, %v3974
  %v3976 = vand.u32 %v3975, 4294901760
  %3977 = vmatpush1.xpose.msra.mxu0 %v3976
  %3978 = vmatprep.subr.mxu0 0.0
  %v3979 = vand.u32 %v3484, 4294901760
  %v3980 = vsub.f32 %v3484, %v3979
  %v3981 = vand.u32 %v3980, 4294901760
  %3982 = vmatpush1.xpose.msra.mxu0 %v3981
  %3983 = vmatprep.subr.mxu0 0.0
  %v3984 = vand.u32 %v3487, 4294901760
  %v3985 = vsub.f32 %v3487, %v3984
  %v3986 = vand.u32 %v3985, 4294901760
  %3987 = vmatpush1.xpose.msra.mxu0 %v3986
  %3988 = vmatprep.subr.mxu0 0.0
  %v3989 = vand.u32 %v3490, 4294901760
  %v3990 = vsub.f32 %v3490, %v3989
  %v3991 = vand.u32 %v3990, 4294901760
  %3992 = vmatpush1.xpose.msra.mxu0 %v3991
  %3993 = vmatprep.subr.mxu0 0.0
  %v3994 = vand.u32 %v3493, 4294901760
  %v3995 = vsub.f32 %v3493, %v3994
  %v3996 = vand.u32 %v3995, 4294901760
  %3997 = vmatpush1.xpose.msra.mxu0 %v3996
  %3998 = vmatprep.subr.mxu0 0.0
  %v3999 = vand.u32 %v3496, 4294901760
  %v4000 = vsub.f32 %v3496, %v3999
  %v4001 = vand.u32 %v4000, 4294901760
  %4002 = vmatpush1.xpose.msra.mxu0 %v4001
  %4003 = vmatprep.subr.mxu0 0.0
  %v4004 = vand.u32 %v3499, 4294901760
  %v4005 = vsub.f32 %v3499, %v4004
  %v4006 = vand.u32 %v4005, 4294901760
  %4007 = vmatpush1.xpose.msra.mxu0 %v4006
  %4008 = vmatprep.subr.mxu0 0.0
  %v4009 = vand.u32 %v3502, 4294901760
  %v4010 = vsub.f32 %v3502, %v4009
  %v4011 = vand.u32 %v4010, 4294901760
  %4012 = vmatpush1.xpose.msra.mxu0 %v4011
  %4013 = vmatprep.subr.mxu0 0.0
  %v4014 = vand.u32 %v3505, 4294901760
  %v4015 = vsub.f32 %v3505, %v4014
  %v4016 = vand.u32 %v4015, 4294901760
  %4017 = vmatpush1.xpose.msra.mxu0 %v4016
  %4018 = vmatprep.subr.mxu0 0.0
  %v4019 = vand.u32 %v3508, 4294901760
  %v4020 = vsub.f32 %v3508, %v4019
  %v4021 = vand.u32 %v4020, 4294901760
  %4022 = vmatpush1.xpose.msra.mxu0 %v4021
  %4023 = vmatprep.subr.mxu0 0.0
  %v4024 = vand.u32 %v3511, 4294901760
  %v4025 = vsub.f32 %v3511, %v4024
  %v4026 = vand.u32 %v4025, 4294901760
  %4027 = vmatpush1.xpose.msra.mxu0 %v4026
  %4028 = vmatprep.subr.mxu0 0.0
  %4029 = vmatpush1.xpose.msra.mxu0 0.0
  %4030 = vmatprep.subr.mxu0 0.0
  %4031 = vmatpush1.xpose.msra.mxu0 0.0
  %4032 = vmatprep.subr.mxu0 0.0
  %4033 = vmatpush1.xpose.msra.mxu0 0.0
  %4034 = vmatprep.subr.mxu0 0.0
  %4035 = vmatpush1.xpose.msra.mxu0 0.0
  %4036 = vmatprep.subr.mxu0 0.0
  %4037 = vmatpush1.xpose.msra.mxu0 0.0
  %4038 = vmatprep.subr.mxu0 0.0
  %4039 = vmatpush1.xpose.msra.mxu0 0.0
  %4040 = vmatprep.subr.mxu0 0.0
  %4041 = vmatpush1.xpose.msra.mxu0 0.0
  %4042 = vmatprep.subr.mxu0 0.0
  %4043 = vmatpush1.xpose.msra.mxu0 0.0
  %4044 = vmatprep.subr.mxu0 0.0
  %4045 = vmatpush1.xpose.msra.mxu0 0.0
  %4046 = vmatprep.subr.mxu0 0.0
  %4047 = vmatpush1.xpose.msra.mxu0 0.0
  %4048 = vmatprep.subr.mxu0 0.0
  %4049 = vmatpush1.xpose.msra.mxu0 0.0
  %4050 = vmatprep.subr.mxu0 0.0
  %4051 = vmatpush1.xpose.msra.mxu0 0.0
  %4052 = vmatprep.subr.mxu0 0.0
  %4053 = vmatpush1.xpose.msra.mxu0 0.0
  %4054 = vmatprep.subr.mxu0 0.0
  %4055 = vmatpush1.xpose.msra.mxu0 0.0
  %4056 = vmatprep.subr.mxu0 0.0
  %4057 = vmatpush1.xpose.msra.mxu0 0.0
  %4058 = vmatprep.subr.mxu0 0.0
  %4059 = vmatpush1.xpose.msra.mxu0 0.0
  %4060 = vmatprep.mubr.f32.mxu0 0.0
  %v4061 = vand.u32 %v3463, 4294901760
  %4062 = vmatmul.mubr.f32.gmra.mrb[0].mxu0 %v4061
  %v4063 = vpop.f32.mrb[0].mxu0
  %v4064 = vadd.f32 %v3945, %v4063
  %v4065 = vpop.f32.mrb[0].mxu0
  %4066 = vdwg.mxu0
  %4067 = vmatprep.subr.mxu0 0.0
  %v4068 = vand.u32 %v3466, 4294901760
  %4069 = vmatpush1.xpose.msra.mxu0 %v4068
  %4070 = vmatprep.subr.mxu0 0.0
  %v4071 = vand.u32 %v3469, 4294901760
  %4072 = vmatpush1.xpose.msra.mxu0 %v4071
  %4073 = vmatprep.subr.mxu0 0.0
  %v4074 = vand.u32 %v3472, 4294901760
  %4075 = vmatpush1.xpose.msra.mxu0 %v4074
  %4076 = vmatprep.subr.mxu0 0.0
  %v4077 = vand.u32 %v3475, 4294901760
  %4078 = vmatpush1.xpose.msra.mxu0 %v4077
  %4079 = vmatprep.subr.mxu0 0.0
  %v4080 = vand.u32 %v3478, 4294901760
  %4081 = vmatpush1.xpose.msra.mxu0 %v4080
  %4082 = vmatprep.subr.mxu0 0.0
  %v4083 = vand.u32 %v3481, 4294901760
  %4084 = vmatpush1.xpose.msra.mxu0 %v4083
  %4085 = vmatprep.subr.mxu0 0.0
  %v4086 = vand.u32 %v3484, 4294901760
  %4087 = vmatpush1.xpose.msra.mxu0 %v4086
  %4088 = vmatprep.subr.mxu0 0.0
  %v4089 = vand.u32 %v3487, 4294901760
  %4090 = vmatpush1.xpose.msra.mxu0 %v4089
  %4091 = vmatprep.subr.mxu0 0.0
  %v4092 = vand.u32 %v3490, 4294901760
  %4093 = vmatpush1.xpose.msra.mxu0 %v4092
  %4094 = vmatprep.subr.mxu0 0.0
  %v4095 = vand.u32 %v3493, 4294901760
  %4096 = vmatpush1.xpose.msra.mxu0 %v4095
  %4097 = vmatprep.subr.mxu0 0.0
  %v4098 = vand.u32 %v3496, 4294901760
  %4099 = vmatpush1.xpose.msra.mxu0 %v4098
  %4100 = vmatprep.subr.mxu0 0.0
  %v4101 = vand.u32 %v3499, 4294901760
  %4102 = vmatpush1.xpose.msra.mxu0 %v4101
  %4103 = vmatprep.subr.mxu0 0.0
  %v4104 = vand.u32 %v3502, 4294901760
  %4105 = vmatpush1.xpose.msra.mxu0 %v4104
  %4106 = vmatprep.subr.mxu0 0.0
  %v4107 = vand.u32 %v3505, 4294901760
  %4108 = vmatpush1.xpose.msra.mxu0 %v4107
  %4109 = vmatprep.subr.mxu0 0.0
  %v4110 = vand.u32 %v3508, 4294901760
  %4111 = vmatpush1.xpose.msra.mxu0 %v4110
  %4112 = vmatprep.subr.mxu0 0.0
  %v4113 = vand.u32 %v3511, 4294901760
  %4114 = vmatpush1.xpose.msra.mxu0 %v4113
  %4115 = vmatprep.subr.mxu0 0.0
  %4116 = vmatpush1.xpose.msra.mxu0 0.0
  %4117 = vmatprep.subr.mxu0 0.0
  %4118 = vmatpush1.xpose.msra.mxu0 0.0
  %4119 = vmatprep.subr.mxu0 0.0
  %4120 = vmatpush1.xpose.msra.mxu0 0.0
  %4121 = vmatprep.subr.mxu0 0.0
  %4122 = vmatpush1.xpose.msra.mxu0 0.0
  %4123 = vmatprep.subr.mxu0 0.0
  %4124 = vmatpush1.xpose.msra.mxu0 0.0
  %4125 = vmatprep.subr.mxu0 0.0
  %4126 = vmatpush1.xpose.msra.mxu0 0.0
  %4127 = vmatprep.subr.mxu0 0.0
  %4128 = vmatpush1.xpose.msra.mxu0 0.0
  %4129 = vmatprep.subr.mxu0 0.0
  %4130 = vmatpush1.xpose.msra.mxu0 0.0
  %4131 = vmatprep.subr.mxu0 0.0
  %4132 = vmatpush1.xpose.msra.mxu0 0.0
  %4133 = vmatprep.subr.mxu0 0.0
  %4134 = vmatpush1.xpose.msra.mxu0 0.0
  %4135 = vmatprep.subr.mxu0 0.0
  %4136 = vmatpush1.xpose.msra.mxu0 0.0
  %4137 = vmatprep.subr.mxu0 0.0
  %4138 = vmatpush1.xpose.msra.mxu0 0.0
  %4139 = vmatprep.subr.mxu0 0.0
  %4140 = vmatpush1.xpose.msra.mxu0 0.0
  %4141 = vmatprep.subr.mxu0 0.0
  %4142 = vmatpush1.xpose.msra.mxu0 0.0
  %4143 = vmatprep.subr.mxu0 0.0
  %4144 = vmatpush1.xpose.msra.mxu0 0.0
  %4145 = vmatprep.subr.mxu0 0.0
  %4146 = vmatpush1.xpose.msra.mxu0 0.0
  %4147 = vmatprep.mubr.f32.mxu0 0.0
  %v4148 = vand.u32 %v3463, 4294901760
  %4149 = vmatmul.mubr.f32.gmra.mrb[0].mxu0 %v4148
  %v4150 = vpop.f32.mrb[0].mxu0
  %v4151 = vadd.f32 %v4064, %v4150
  %v4152 = vpop.f32.mrb[0].mxu0
  %4153 = vdwg.mxu0
  %4154 = vadd.xlane.f32.xlu0 %v4151
  %v4155 = vpop.xlane.xlu0 %4154
  %v4156 = vmul.f32 %v4155, %v2547
  %v4157 = vsub.f32 %v4151, %v4156
  %v4158 = vmul.f32 %v4157, %v4157
  %4159 = vadd.xlane.f32.xlu0 %v4158
  %v4160 = vpop.xlane.xlu0 %4159
  %v4161 = vmul.f32 %v4160, %v2547
  %v4162 = vadd.f32 %v4161, 1e-05
  %v4163 = vrsqrt.pop %v4162
  %v4164 = vmul.f32 %v4157, %v4163
  %v4165 = vld [vmem:[%s5] sm:$0xff]
  %4167 = vset.pattern.permute.xlu0 0
  %4168 = vperm.xlu0 %4167, %v4165
  %v4169 = vpop.permute.xlu0 %4168
  %v4171 = vmul.f32 %v4164, %v4169
  %v4172 = vld [vmem:[%s6] sm:$0xff]
  %4174 = vset.pattern.permute.xlu0 0
  %4175 = vperm.xlu0 %4174, %v4172
  %v4176 = vpop.permute.xlu0 %4175
  %v4178 = vadd.f32 %v4171, %v4176
  %v4179 = vmax.f32 %v4178, 0.0
  %4180 = vst [vmem:[%s7] sm:$0xff] %v4179
  // Predicated region
  $region30: #{down_forward.1} parent=0 // pred_check
    _
  $region31: #{down_forward.1} parent=0 // pred_check_branch
    %4182 = sbr.rel (0) target = $region33
  $region32: #{down_forward.1} parent=0 // pred_region
    _
  $region33: #{down_forward.1} parent=0 // pred_fallthru
    _
  // Predicated region
  $region34: #{down_forward.1} parent=0 // pred_check
    _
  $region35: #{down_forward.1} parent=0 // pred_check_branch
    %4184 = sbr.rel (0) target = $region37
  $region36: #{down_forward.1} parent=0 // pred_region
    _
  $region37: #{down_forward.1} parent=0 // pred_fallthru
    _

</llo_original>
